<compile_context>
chip_gen: v5e
topology: v5e:2x2
jax: 0.10.0
libtpu: 0.0.40
codegen_flags: <defaults>
</compile_context>

<pallas_src>
import functools

import jax
import jax.numpy as jnp
from jax.experimental import pallas as pl
from jax.experimental.pallas import tpu as pltpu

_VMEM = pl.BlockSpec(memory_space=pltpu.MemorySpace.VMEM)

# (num_blocks, first-block stride) for torchvision resnet101 layers 1..4.
_LAYER_CFG = ((3, 1), (4, 2), (23, 2), (3, 2))


# ----------------------------- Pallas kernels --------------------------------

def _mm_bias_kernel(a_ref, w_ref, b_ref, o_ref, acc_ref, *, relu):
    """Tiled  out = maybe_relu(A @ W + bias)  with f32 accumulation over the K grid axis."""
    @pl.when(pl.program_id(2) == 0)
    def _():
        acc_ref[...] = jnp.zeros_like(acc_ref)

    acc_ref[...] += jnp.dot(a_ref[...], w_ref[...],
                            preferred_element_type=jnp.float32)

    @pl.when(pl.program_id(2) == pl.num_programs(2) - 1)
    def _():
        y = acc_ref[...] + b_ref[...]
        if relu:
            y = jnp.maximum(y, 0.0)
        o_ref[...] = y.astype(o_ref.dtype)


def _mm_bias_res_kernel(a_ref, w_ref, b_ref, r_ref, o_ref, acc_ref, *, relu):
    """Tiled  out = maybe_relu(A @ W + bias + residual)  (bottleneck tail)."""
    @pl.when(pl.program_id(2) == 0)
    def _():
        acc_ref[...] = jnp.zeros_like(acc_ref)

    acc_ref[...] += jnp.dot(a_ref[...], w_ref[...],
                            preferred_element_type=jnp.float32)

    @pl.when(pl.program_id(2) == pl.num_programs(2) - 1)
    def _():
        y = acc_ref[...] + b_ref[...] + r_ref[...].astype(jnp.float32)
        if relu:
            y = jnp.maximum(y, 0.0)
        o_ref[...] = y.astype(o_ref.dtype)


def _max9_kernel(*refs):
    """Elementwise max of 9 equally-shaped [M, C] views (3x3 max-pool reduction)."""
    x_refs, o_ref = refs[:-1], refs[-1]
    m = x_refs[0][...]
    for r in x_refs[1:]:
        m = jnp.maximum(m, r[...])
    o_ref[...] = m


def _avgpool_fc_kernel(x_ref, w_ref, b_ref, o_ref):
    """Global average pool over spatial axis then Linear: x [B, S, C] -> [B, num_classes]."""
    pooled = jnp.mean(x_ref[...].astype(jnp.float32), axis=1)       # [B, C] in f32
    y = jnp.dot(pooled, w_ref[...].astype(jnp.float32),
                preferred_element_type=jnp.float32) + b_ref[...]
    o_ref[...] = y


# ----------------------------- kernel wrappers --------------------------------

def _pick_tile(dim, cap, unit):
    """Largest tile <= cap that divides dim and is a multiple of `unit`; else full dim."""
    if dim <= cap:
        return dim
    t = (cap // unit) * unit
    while t >= unit:
        if dim % t == 0:
            return t
        t -= unit
    return dim


def _matmul_bias(a, w, bias, *, relu, residual=None, out_dtype=jnp.bfloat16):
    """Tiled, pipelined matmul with fused bias / residual / ReLU epilogue."""
    M, K = a.shape
    K2, N = w.shape
    assert K == K2, (K, K2)

    # Activations are small (M <= 2048, usually <= 512), weights dominate HBM traffic:
    # make the weight-facing tiles (tk x tn) as large as comfortably fits in VMEM so
    # each weight matrix streams in few, large DMAs with minimal grid-step overhead.
    tm = _pick_tile(M, 512, 8)
    tn = _pick_tile(N, 512, 128)
    tk = _pick_tile(K, 1024, 128)
    grid = (M // tm, N // tn, K // tk)

    a_spec = pl.BlockSpec((tm, tk), lambda i, j, k: (i, k))
    w_spec = pl.BlockSpec((tk, tn), lambda i, j, k: (k, j))
    b_spec = pl.BlockSpec((1, tn), lambda i, j, k: (0, j))
    o_spec = pl.BlockSpec((tm, tn), lambda i, j, k: (i, j))
    scratch = [pltpu.VMEM((tm, tn), jnp.float32)]
    cparams = pltpu.CompilerParams(
        dimension_semantics=("parallel", "parallel", "arbitrary"),
        vmem_limit_bytes=32 * 1024 * 1024)
    out_shape = jax.ShapeDtypeStruct((M, N), out_dtype)

    if residual is None:
        return pl.pallas_call(
            functools.partial(_mm_bias_kernel, relu=relu),
            out_shape=out_shape,
            grid_spec=pltpu.PrefetchScalarGridSpec(
                num_scalar_prefetch=0, grid=grid,
                in_specs=[a_spec, w_spec, b_spec],
                out_specs=o_spec, scratch_shapes=scratch),
            compiler_params=cparams,
        )(a, w, bias)

    r_spec = pl.BlockSpec((tm, tn), lambda i, j, k: (i, j))
    return pl.pallas_call(
        functools.partial(_mm_bias_res_kernel, relu=relu),
        out_shape=out_shape,
        grid_spec=pltpu.PrefetchScalarGridSpec(
            num_scalar_prefetch=0, grid=grid,
            in_specs=[a_spec, w_spec, b_spec, r_spec],
            out_specs=o_spec, scratch_shapes=scratch),
        compiler_params=cparams,
    )(a, w, bias, residual)


def _im2col(x, kh, kw, stride, pad, pad_k_to=None):
    """x: [B, H, W, C] NHWC -> patches [B*Ho*Wo, kh*kw*C (zero-padded to pad_k_to)]."""
    B, H, W, C = x.shape
    if pad:
        x = jnp.pad(x, ((0, 0), (pad, pad), (pad, pad), (0, 0)))
    Hp, Wp = H + 2 * pad, W + 2 * pad
    Ho = (Hp - kh) // stride + 1
    Wo = (Wp - kw) // stride + 1
    cols = []
    for i in range(kh):
        for j in range(kw):
            cols.append(x[:, i:i + stride * (Ho - 1) + 1:stride,
                          j:j + stride * (Wo - 1) + 1:stride, :])
    k = kh * kw * C
    if pad_k_to is not None and pad_k_to > k:
        cols.append(jnp.zeros((B, Ho, Wo, pad_k_to - k), x.dtype))
        k = pad_k_to
    patches = jnp.concatenate(cols, axis=-1)                    # [B, Ho, Wo, K]
    return patches.reshape(B * Ho * Wo, k), Ho, Wo


def conv2d(x, wmat, bias, *, kh=1, kw=1, stride=1, pad=0, relu=True,
           residual=None, pad_k_to=None):
    """Conv2d with pre-folded BN, weights already in (kh*kw*Cin, Cout) bf16 layout."""
    B = x.shape[0]
    if kh == 1 and kw == 1:
        xs = x if stride == 1 else x[:, ::stride, ::stride, :]
        Ho, Wo = xs.shape[1], xs.shape[2]
        a = xs.reshape(B * Ho * Wo, xs.shape[3])
    else:
        a, Ho, Wo = _im2col(x, kh, kw, stride, pad, pad_k_to)
    res = None if residual is None else residual.reshape(B * Ho * Wo, -1)
    out = _matmul_bias(a, wmat, bias, relu=relu, residual=res)
    return out.reshape(B, Ho, Wo, -1)


def maxpool_3x3_s2(x):
    """MaxPool2d(kernel=3, stride=2, padding=1) on NHWC input.

    The 9 shifted strided views are passed as separate operands (no stacked [9,M,C]
    HBM tensor); -inf padding is safe because the preceding ReLU makes inputs >= 0.
    """
    B, H, W, C = x.shape
    xp = jnp.pad(x, ((0, 0), (1, 1), (1, 1), (0, 0)), constant_values=-jnp.inf)
    Ho = (H + 2 - 3) // 2 + 1
    Wo = (W + 2 - 3) // 2 + 1
    views = []
    for i in range(3):
        for j in range(3):
            v = xp[:, i:i + 2 * (Ho - 1) + 1:2, j:j + 2 * (Wo - 1) + 1:2, :]
            views.append(v.reshape(B * Ho * Wo, C))
    out = pl.pallas_call(
        _max9_kernel,
        out_shape=jax.ShapeDtypeStruct((B * Ho * Wo, C), x.dtype),
        in_specs=[_VMEM] * 9,
        out_specs=_VMEM,
    )(*views)
    return out.reshape(B, Ho, Wo, C)


def avgpool_fc(x, fc_w, fc_b):
    """AdaptiveAvgPool2d((1,1)) + flatten + Linear, fused in one kernel."""
    B, H, W, C = x.shape
    xf = x.reshape(B, H * W, C)
    return pl.pallas_call(
        _avgpool_fc_kernel,
        out_shape=jax.ShapeDtypeStruct((B, fc_w.shape[1]), jnp.float32),
        in_specs=[_VMEM, _VMEM, _VMEM],
        out_specs=_VMEM,
    )(xf, fc_w, fc_b)


# ----------------------------- parameter init / prep ---------------------------

def _conv_init(key, cout, cin, kh, kw):
    fan_in = cin * kh * kw
    return jax.random.normal(key, (cout, cin, kh, kw), jnp.float32) * jnp.sqrt(2.0 / fan_in)


def _bn_init(c):
    return dict(gamma=jnp.ones((c,), jnp.float32),
                beta=jnp.zeros((c,), jnp.float32),
                mean=jnp.zeros((c,), jnp.float32),
                var=jnp.ones((c,), jnp.float32))


def init_params(key, num_classes=2, in_ch=19):
    """Deterministic synthetic ResNet-101 parameters (torchvision layout [3,4,23,3])."""
    keys = iter(jax.random.split(key, 256))
    params = {
        "conv1": _conv_init(next(keys), 64, in_ch, 7, 7),
        "bn1": _bn_init(64),
    }
    inplanes = 64
    layers = []
    for (nblocks, stride), planes in zip(_LAYER_CFG, (64, 128, 256, 512)):
        blocks = []
        for b in range(nblocks):
            blk = {
                "w1": _conv_init(next(keys), planes, inplanes, 1, 1), "bn1": _bn_init(planes),
                "w2": _conv_init(next(keys), planes, planes, 3, 3), "bn2": _bn_init(planes),
                "w3": _conv_init(next(keys), planes * 4, planes, 1, 1), "bn3": _bn_init(planes * 4),
            }
            if b == 0:
                blk["wd"] = _conv_init(next(keys), planes * 4, inplanes, 1, 1)
                blk["bnd"] = _bn_init(planes * 4)
            blocks.append(blk)
            inplanes = planes * 4
        layers.append(blocks)
    params["layers"] = layers
    params["fc_w"] = jax.random.normal(next(keys), (2048, num_classes), jnp.float32) * 0.02
    params["fc_b"] = jnp.zeros((1, num_classes), jnp.float32)
    return params


def prepare_params(raw, eps=1e-5):
    """One-time weight prep (NOT per forward): fold BN into the conv weights, reshape
    to the (kh*kw*Cin, Cout) matmul layout, zero-pad conv1's K to a multiple of 128,
    and cast weights to bf16 (bias/shift stays f32)."""
    def fold(w, bn, pad_k_to=None):
        cout, cin, kh, kw = w.shape
        inv = jax.lax.rsqrt(bn["var"] + eps)
        scale = bn["gamma"] * inv                                    # [Cout]
        shift = bn["beta"] - bn["mean"] * scale                      # [Cout]
        wmat = jnp.transpose(w, (2, 3, 1, 0)).reshape(kh * kw * cin, cout)
        wmat = wmat * scale[None, :]
        if pad_k_to is not None and pad_k_to > wmat.shape[0]:
            wmat = jnp.pad(wmat, ((0, pad_k_to - wmat.shape[0]), (0, 0)))
        return {"w": wmat.astype(jnp.bfloat16),
                "b": shift.reshape(1, cout).astype(jnp.float32)}

    k1 = raw["conv1"].shape[1] * 7 * 7
    k1_pad = ((k1 + 127) // 128) * 128                               # 931 -> 1024
    prepared = {"conv1": fold(raw["conv1"], raw["bn1"], pad_k_to=k1_pad)}
    layers = []
    for blocks in raw["layers"]:
        pblocks = []
        for blk in blocks:
            p = {"c1": fold(blk["w1"], blk["bn1"]),
                 "c2": fold(blk["w2"], blk["bn2"]),
                 "c3": fold(blk["w3"], blk["bn3"])}
            if "wd" in blk:
                p["down"] = fold(blk["wd"], blk["bnd"])
            pblocks.append(p)
        layers.append(pblocks)
    prepared["layers"] = layers
    prepared["fc_w"] = raw["fc_w"].astype(jnp.bfloat16)
    prepared["fc_b"] = raw["fc_b"].astype(jnp.float32)
    return prepared


# ----------------------------- forward pass ------------------------------------

def _bottleneck(x, blk, s):
    if "down" in blk:
        identity = conv2d(x, blk["down"]["w"], blk["down"]["b"],
                          kh=1, kw=1, stride=s, pad=0, relu=False)
    else:
        identity = x
    out = conv2d(x, blk["c1"]["w"], blk["c1"]["b"], kh=1, kw=1, relu=True)
    out = conv2d(out, blk["c2"]["w"], blk["c2"]["b"], kh=3, kw=3, stride=s, pad=1, relu=True)
    out = conv2d(out, blk["c3"]["w"], blk["c3"]["b"], kh=1, kw=1, relu=True,
                 residual=identity)
    return out


def discriminator_forward(params, x_nchw):
    # layout: input is PyTorch NCHW; transposed once to NHWC (bf16) for all kernel work.
    x = jnp.transpose(x_nchw, (0, 2, 3, 1)).astype(jnp.bfloat16)
    c1 = params["conv1"]
    x = conv2d(x, c1["w"], c1["b"], kh=7, kw=7, stride=2, pad=3, relu=True,
               pad_k_to=c1["w"].shape[0])
    x = maxpool_3x3_s2(x)
    for (nblocks, stride), blocks in zip(_LAYER_CFG, params["layers"]):
        for b in range(nblocks):
            s = stride if b == 0 else 1
            x = _bottleneck(x, blocks[b], s)
    return avgpool_fc(x, params["fc_w"], params["fc_b"])


# ----------------------------- driver -------------------------------------------

if __name__ == "__main__":
    key = jax.random.PRNGKey(0)
    pkey, xkey = jax.random.split(key)
    raw = init_params(pkey, num_classes=2, in_ch=19)
    params = prepare_params(raw)          # one-time: BN folding + bf16 matmul layout
    # Small input consistent with the module: batch=2, 19 channels, 64x64 spatial
    # (64 is the smallest comfortable size given the 32x total downsampling).
    x = jax.random.normal(xkey, (2, 19, 64, 64), jnp.float32)
    logits = discriminator_forward(params, x)
    jax.block_until_ready(logits)
    assert logits.shape == (2, 2), logits.shape
    assert bool(jnp.all(jnp.isfinite(logits)))
    print("KERNEL_OK")
</pallas_src>

<mosaic_0001>
module attributes {stable_mosaic.version = 11 : i64} {
  func.func @_mm_bias_kernel(%arg0: i32, %arg1: i32, %arg2: i32, %arg3: memref<512x1024xbf16, #tpu.memory_space<vmem>>, %arg4: memref<1024x64xbf16, #tpu.memory_space<vmem>>, %arg5: memref<1x64xf32, #tpu.memory_space<vmem>>, %arg6: memref<512x64xbf16, #tpu.memory_space<vmem>>, %arg7: memref<512x64xf32, #tpu.memory_space<vmem>>) attributes {dimension_semantics = [#tpu.dimension_semantics<parallel>, #tpu.dimension_semantics<parallel>, #tpu.dimension_semantics<arbitrary>], iteration_bounds = array<i64: 4, 1, 1>, scalar_prefetch = 0 : i64, scratch_operands = 1 : i64, tpu.core_type = #tpu.core_type<tc>, window_params = [{transform_indices = @transform_0, window_bounds = array<i64: 512, 1024>}, {transform_indices = @transform_1, window_bounds = array<i64: 1024, 64>}, {transform_indices = @transform_2, window_bounds = array<i64: 1, 64>}, {transform_indices = @transform_3, window_bounds = array<i64: 512, 64>}]} {
    %c0_i32 = arith.constant 0 : i32
    %0 = arith.cmpi eq, %arg2, %c0_i32 : i32
    %1 = arith.extui %0 : i1 to i32
    %c0_i32_0 = arith.constant 0 : i32
    %2 = arith.cmpi ne, %1, %c0_i32_0 : i32
    scf.if %2 {
      %cst_10 = arith.constant 0.000000e+00 : f32
      %12 = vector.broadcast %cst_10 : f32 to vector<512x64xf32>
      %c0_11 = arith.constant 0 : index
      %c0_12 = arith.constant 0 : index
      %13 = vector.load %arg7[%c0_11, %c0_12] : memref<512x64xf32, #tpu.memory_space<vmem>>, vector<512x64xf32>
      tpu.vector_store %arg7[%c0_11, %c0_12], %12 {strides = array<i32>} : memref<512x64xf32, #tpu.memory_space<vmem>>, vector<512x64xf32>,
    } else {
    }
    %c0 = arith.constant 0 : index
    %c0_1 = arith.constant 0 : index
    %3 = vector.load %arg7[%c0, %c0_1] : memref<512x64xf32, #tpu.memory_space<vmem>>, vector<512x64xf32>
    %c0_2 = arith.constant 0 : index
    %c0_3 = arith.constant 0 : index
    %4 = vector.load %arg3[%c0_2, %c0_3] : memref<512x1024xbf16, #tpu.memory_space<vmem>>, vector<512x1024xbf16>
    %c0_4 = arith.constant 0 : index
    %c0_5 = arith.constant 0 : index
    %5 = vector.load %arg4[%c0_4, %c0_5] : memref<1024x64xbf16, #tpu.memory_space<vmem>>, vector<1024x64xbf16>
    %cst = arith.constant dense<0.000000e+00> : vector<512x64xf32>
    %6 = tpu.matmul %4, %5, %cst {dimension_numbers = #tpu.dot_dimension_numbers<[1], [0], [0], [1], [0, 0, 1, 1], [], []>} : vector<512x1024xbf16>, vector<1024x64xbf16>, vector<512x64xf32> -> vector<512x64xf32>
    %7 = arith.addf %3, %6 : vector<512x64xf32>
    %c0_6 = arith.constant 0 : index
    %c0_7 = arith.constant 0 : index
    %8 = vector.load %arg7[%c0_6, %c0_7] : memref<512x64xf32, #tpu.memory_space<vmem>>, vector<512x64xf32>
    tpu.vector_store %arg7[%c0_6, %c0_7], %7 {strides = array<i32>} : memref<512x64xf32, #tpu.memory_space<vmem>>, vector<512x64xf32>,
    %c0_i32_8 = arith.constant 0 : i32
    %9 = arith.cmpi eq, %arg2, %c0_i32_8 : i32
    %10 = arith.extui %9 : i1 to i32
    %c0_i32_9 = arith.constant 0 : i32
    %11 = arith.cmpi ne, %10, %c0_i32_9 : i32
    scf.if %11 {
      %c0_10 = arith.constant 0 : index
      %c0_11 = arith.constant 0 : index
      %12 = vector.load %arg7[%c0_10, %c0_11] : memref<512x64xf32, #tpu.memory_space<vmem>>, vector<512x64xf32>
      %c0_12 = arith.constant 0 : index
      %c0_13 = arith.constant 0 : index
      %13 = vector.load %arg5[%c0_12, %c0_13] : memref<1x64xf32, #tpu.memory_space<vmem>>, vector<1x64xf32>
      %14 = vector.broadcast %13 : vector<1x64xf32> to vector<512x64xf32>
      %15 = arith.addf %12, %14 : vector<512x64xf32>
      %cst_14 = arith.constant 0.000000e+00 : f32
      %16 = vector.broadcast %cst_14 : f32 to vector<512x64xf32>
      %17 = arith.maximumf %15, %16 : vector<512x64xf32>
      %18 = arith.truncf %17 : vector<512x64xf32> to vector<512x64xbf16>
      %c0_15 = arith.constant 0 : index
      %c0_16 = arith.constant 0 : index
      %19 = vector.load %arg6[%c0_15, %c0_16] : memref<512x64xbf16, #tpu.memory_space<vmem>>, vector<512x64xbf16>
      tpu.vector_store %arg6[%c0_15, %c0_16], %18 {strides = array<i32>} : memref<512x64xbf16, #tpu.memory_space<vmem>>, vector<512x64xbf16>,
    } else {
    }
    return
  }
  func.func @transform_0(%arg0: i32, %arg1: i32, %arg2: i32) -> (i32, i32) {
    %c0_i32 = arith.constant 0 : i32
    return %arg0, %arg2 : i32, i32
  }
  func.func @transform_1(%arg0: i32, %arg1: i32, %arg2: i32) -> (i32, i32) {
    %c0_i32 = arith.constant 0 : i32
    return %arg2, %arg1 : i32, i32
  }
  func.func @transform_2(%arg0: i32, %arg1: i32, %arg2: i32) -> (i32, i32) {
    %c0_i32 = arith.constant 0 : i32
    %c0_i32_0 = arith.constant 0 : i32
    return %c0_i32, %arg1 : i32, i32
  }
  func.func @transform_3(%arg0: i32, %arg1: i32, %arg2: i32) -> (i32, i32) {
    %c0_i32 = arith.constant 0 : i32
    return %arg0, %arg1 : i32, i32
  }
}

</mosaic_0001>

<llo_original>
// kernel: tpu_custom_call.1
$region0: #{tpu_custom_call.1}
  #allocation0 [shape = 'u32[]', space=smem, size = 0x4, offset = 0x4, fixed_abs, tag = 'smem constant byte address 0x4 - core index']
  #allocation1 [shape = 'u32[72,128]{1,0:T(1,128)}', space=vmem, size = 0x9000, scoped, tag = 'internal scratch']
  #allocation2 [shape = 'f32[512,64]{1,0:T(8,128)}', space=vmem, size = 0x40000, scoped, tag = 'scratch operand']
  %s0 = inlined_call_operand.hbm [shape: bf16[2048,1024], index: 0, kind: input, shape index: {}]
  %s1 = inlined_call_operand.vmem [shape: bf16[1024,64], index: 1, kind: input, shape index: {}]
  %s2 = inlined_call_operand.hbm [shape: f32[1,64], index: 2, kind: input, shape index: {}]
  %s3 = inlined_call_operand.vmem [shape: bf16[2048,64], index: 3, kind: output, shape index: {}]
  %s4 = sld [smem:[#allocation0]]
  $region61: #{tpu_custom_call.1} parent=0
    _
  %s6 = ssub.s32 1, %s4
  %s7 = scalar_select 0, %s6, %s4
  $region1: #{tpu_custom_call.1} parent=0
    #allocation3 [shape = 'u8[2097152]{0}', space=vmem, size = 0x200000, scoped, tag = 'input window, operand 0']
    #allocation4 [shape = 's32[2]{0}', space=sflag, size = 0x8, scoped, tag = 'scoped memory for tpu_custom_call.1']
    #allocation5 [shape = 'u8[512]{0}', space=vmem, size = 0x400, scoped, tag = 'input window, operand 2, single buffered']
    #allocation6 [shape = 's32[1]{0}', space=sflag, size = 0x4, scoped, tag = 'scoped memory for tpu_custom_call.1']
    %8 = vsyncpa [#allocation4], 0
    %s9 = scalar_lea.sflag [#allocation4], 1
    %10 = vsyncpa %s9, 0
    %11 = vsyncpa [#allocation6], 0
    loop: start=0, step=1, limit=6
    $region2: #{tpu_custom_call.1} parent=1 // loop_pre_header
      _
    $region3: #{tpu_custom_call.1} parent=1 // loop_header
      %s13 = sphi 0, %s17
      %p14 = scmp.ge.s32.totalorder %s13, 6
      %s20 = sphi 0, %s39
      %s21 = sphi 0, %s35
      %s22 = sphi 0, %s31
      %s23 = sphi 0, %s20
      %s24 = sphi 0, %s21
      %s25 = sphi 0, %s22
      %s26 = sphi 0, %s23
      %s27 = sphi 0, %s24
      %s28 = sphi 0, %s25
      %s44 = sphi 0, %s46
      %s47 = sphi 0, %s44
      %s48 = sphi 0, %s47
      %s64 = sphi 0, %s48
      %s72 = sphi 0, %s74
      %s75 = sphi 0, %s72
      %s76 = sphi 0, %s75
      %s92 = sphi 0, %s76
      %s98 = sphi 0, %s100
      %s101 = sphi 0, %s98
      %s102 = sphi 0, %s101
      %s118 = sphi 0, %s102
      %s126 = sphi 0, %s128
      %s129 = sphi 0, %s126
      %s130 = sphi 0, %s129
      %s146 = sphi 0, %s130
    $region4: #{tpu_custom_call.1} parent=1 // loop_header_branch
      %16 = sbr.rel (%p14) target = $region8
    $region5: #{tpu_custom_call.1} parent=1 // loop_body
      %s18 = ssub.s32 %s13, 1
      %s19 = ssub.s32 %s13, 2
      %s29 = sadd.s32 1, %s22
      %p30 = scmp.ge.s32.totalorder %s29, 1
      %s31 = scalar_select %p30, 0, %s29
      %s32 = sadd.s32 1, %s21
      %s33 = scalar_select %p30, %s32, %s21
      %p34 = scmp.ge.s32.totalorder %s33, 1
      %s35 = scalar_select %p34, 0, %s33
      %s36 = sadd.s32 1, %s20
      %s37 = scalar_select %p34, %s36, %s20
      %p38 = scmp.ge.s32.totalorder %s37, 4
      %s39 = scalar_select %p38, 0, %s37
      %s40 = ssub.s32 %s20, %s39
      %s41 = ssub.s32 %s22, %s31
      %s42 = sor.u32 %s40, %s41
      %p43 = scmp.eq.s32.totalorder %s42, 0
      %s45 = sadd.s32 %s44, 1
      %s46 = scalar_select %p43, %s44, %s45
      %p49 = pneg %p43
      %p50 = scmp.eq.s32.totalorder %s13, 3
      %p51 = por %p49, %p50
      %p52 = scmp.ne.s32.totalorder %s44, %s47
      %p53 = scmp.eq.s32.totalorder %s13, 0
      %p54 = por %p52, %p53
      %p55 = scmp.ne.s32.totalorder %s44, %s47
      %p56 = scmp.eq.s32.totalorder %s18, 3
      %p57 = por %p55, %p56
      %p58 = scmp.ne.s32.totalorder %s47, %s48
      %p59 = scmp.eq.s32.totalorder %s18, 0
      %p60 = por %p58, %p59
      %p61 = scmp.ne.s32.totalorder %s47, %s48
      %p62 = scmp.eq.s32.totalorder %s19, 3
      %p63 = por %p61, %p62
      %p65 = scmp.ne.s32.totalorder %s48, %s64
      %p66 = scmp.eq.s32.totalorder %s19, 0
      %p67 = por %p65, %p66
      %s68 = ssub.s32 %s22, %s31
      %s69 = ssub.s32 %s21, %s35
      %s70 = sor.u32 %s68, %s69
      %p71 = scmp.eq.s32.totalorder %s70, 0
      %s73 = sadd.s32 %s72, 1
      %s74 = scalar_select %p71, %s72, %s73
      %p77 = pneg %p71
      %p78 = scmp.eq.s32.totalorder %s13, 3
      %p79 = por %p77, %p78
      %p80 = scmp.ne.s32.totalorder %s72, %s75
      %p81 = scmp.eq.s32.totalorder %s13, 0
      %p82 = por %p80, %p81
      %p83 = scmp.ne.s32.totalorder %s72, %s75
      %p84 = scmp.eq.s32.totalorder %s18, 3
      %p85 = por %p83, %p84
      %p86 = scmp.ne.s32.totalorder %s75, %s76
      %p87 = scmp.eq.s32.totalorder %s18, 0
      %p88 = por %p86, %p87
      %p89 = scmp.ne.s32.totalorder %s75, %s76
      %p90 = scmp.eq.s32.totalorder %s19, 3
      %p91 = por %p89, %p90
      %p93 = scmp.ne.s32.totalorder %s76, %s92
      %p94 = scmp.eq.s32.totalorder %s19, 0
      %p95 = por %p93, %p94
      %s96 = ssub.s32 %s21, %s35
      %p97 = scmp.eq.s32.totalorder %s96, 0
      %s99 = sadd.s32 %s98, 1
      %s100 = scalar_select %p97, %s98, %s99
      %p103 = pneg %p97
      %p104 = scmp.eq.s32.totalorder %s13, 3
      %p105 = por %p103, %p104
      %p106 = scmp.ne.s32.totalorder %s98, %s101
      %p107 = scmp.eq.s32.totalorder %s13, 0
      %p108 = por %p106, %p107
      %p109 = scmp.ne.s32.totalorder %s98, %s101
      %p110 = scmp.eq.s32.totalorder %s18, 3
      %p111 = por %p109, %p110
      %p112 = scmp.ne.s32.totalorder %s101, %s102
      %p113 = scmp.eq.s32.totalorder %s18, 0
      %p114 = por %p112, %p113
      %p115 = scmp.ne.s32.totalorder %s101, %s102
      %p116 = scmp.eq.s32.totalorder %s19, 3
      %p117 = por %p115, %p116
      %p119 = scmp.ne.s32.totalorder %s102, %s118
      %p120 = scmp.eq.s32.totalorder %s19, 0
      %p121 = por %p119, %p120
      %s122 = ssub.s32 %s20, %s39
      %s123 = ssub.s32 %s21, %s35
      %s124 = sor.u32 %s122, %s123
      %p125 = scmp.eq.s32.totalorder %s124, 0
      %s127 = sadd.s32 %s126, 1
      %s128 = scalar_select %p125, %s126, %s127
      %p131 = pneg %p125
      %p132 = scmp.eq.s32.totalorder %s13, 3
      %p133 = por %p131, %p132
      %p134 = scmp.ne.s32.totalorder %s126, %s129
      %p135 = scmp.eq.s32.totalorder %s13, 0
      %p136 = por %p134, %p135
      %p137 = scmp.ne.s32.totalorder %s126, %s129
      %p138 = scmp.eq.s32.totalorder %s18, 3
      %p139 = por %p137, %p138
      %p140 = scmp.ne.s32.totalorder %s129, %s130
      %p141 = scmp.eq.s32.totalorder %s18, 0
      %p142 = por %p140, %p141
      %p143 = scmp.ne.s32.totalorder %s129, %s130
      %p144 = scmp.eq.s32.totalorder %s19, 3
      %p145 = por %p143, %p144
      %p147 = scmp.ne.s32.totalorder %s130, %s146
      %p148 = scmp.eq.s32.totalorder %s19, 0
      %p149 = por %p147, %p148
      %p150 = scmp.le.s32.totalorder 1, %s13
      %p151 = scmp.lt.s32.totalorder %s13, 5
      %p152 = pnand %p150, %p151
      %p153 = pneg %p152
      // Predicated region
      $region9: #{tpu_custom_call.1} parent=5 // pred_check
        _
      $region10: #{tpu_custom_call.1} parent=5 // pred_check_branch
        %155 = sbr.rel (%p152) target = $region12
      $region11: #{tpu_custom_call.1} parent=5 // pred_region
        %s156 = ssub.s32 %s13, 1
        // Predicated region
        $region13: #{tpu_custom_call.1} parent=11 // pred_check
          %p157 = pneg %p88
        $region14: #{tpu_custom_call.1} parent=11 // pred_check_branch
          %159 = sbr.rel (%p157) target = $region16
        $region15: #{tpu_custom_call.1} parent=11 // pred_region
          %s160 = smul.u32 128, %s25
          %p161 = scmp.lt.s32.totalorder %s160, 127
          %s162 = scalar_select %p161, %s160, 127
          %p163 = scmp.lt.s32.totalorder %s24, 0
          %s164 = scalar_select %p163, %s24, 0
          %s165 = sadd.s32 %s164, %s162
          %s166 = smul.addr %s165, 4
          %s167 = scalar_lea.vmem %s1, %s166
          %s168 = smul.u32 128, %s25
        $region16: #{tpu_custom_call.1} parent=11 // pred_fallthru
          _
        // Predicated region
        $region17: #{tpu_custom_call.1} parent=11 // pred_check
          %p169 = pneg %p114
        $region18: #{tpu_custom_call.1} parent=11 // pred_check_branch
          %171 = sbr.rel (%p169) target = $region20
        $region19: #{tpu_custom_call.1} parent=11 // pred_region
          %173 = vsyncadd [#allocation6], 0
          %s174 = scalar_lea.hbm %s2, %s24
          %s176 = sshll.u32 %s174, 4
          %s177 = int_to_ptr.hbm [resolvable:$true] %s176
          %s178 = sshll.u32 [#allocation5], 4
          %s179 = int_to_ptr.vmem [resolvable:$true] %s178
          %181 = dma.hbm_to_vmem [thread:$0]  %s177, 16, %s179, [#allocation6]
        $region20: #{tpu_custom_call.1} parent=11 // pred_fallthru
          _
      $region12: #{tpu_custom_call.1} parent=5 // pred_fallthru
        _
      %p182 = scmp.lt.s32.totalorder %s13, 4
      // Predicated region
      $region21: #{tpu_custom_call.1} parent=5 // pred_check
        %p183 = pneg %p182
      $region22: #{tpu_custom_call.1} parent=5 // pred_check_branch
        %185 = sbr.rel (%p183) target = $region24
      $region23: #{tpu_custom_call.1} parent=5 // pred_region
        // Predicated region
        $region25: #{tpu_custom_call.1} parent=23 // pred_check
          %p186 = pneg %p54
        $region26: #{tpu_custom_call.1} parent=23 // pred_check_branch
          %188 = sbr.rel (%p186) target = $region28
        $region27: #{tpu_custom_call.1} parent=23 // pred_region
          %s189 = sand.u32 %s44, 1
          %s190 = scalar_lea.sflag [#allocation4], %s189
          %s191 = sand.u32 %s44, 1
          %s192 = smul.addr %s191, 2048
          %s193 = scalar_lea.vmem [#allocation3], %s192
          %s194 = smul.u32 64, %s20
          %s195 = smul.u32 8, %s22
          %197 = vsyncadd %s190, 0
          %s198 = smul.addr %s194, 8
          %s199 = sadd.s32 %s195, %s198
          %s200 = smul.addr %s199, 4
          %s201 = scalar_lea.hbm %s0, %s200
          %s202 = sshll.u32 %s201, 4
          %s203 = int_to_ptr.hbm [resolvable:$true] %s202
          %s204 = sshll.u32 %s193, 4
          %s205 = int_to_ptr.vmem [resolvable:$true] %s204
          %210 = dma.hbm_to_vmem [thread:$0]  %s203, 32768, %s205, %s190, 512, 512, 32
        $region28: #{tpu_custom_call.1} parent=23 // pred_fallthru
          _
      $region24: #{tpu_custom_call.1} parent=5 // pred_fallthru
        _
      %p211 = scmp.le.s32.totalorder 1, %s13
      %p212 = scmp.lt.s32.totalorder %s13, 5
      %p213 = pnand %p211, %p212
      %p214 = pneg %p213
      // Predicated region
      $region29: #{tpu_custom_call.1} parent=5 // pred_check
        _
      $region30: #{tpu_custom_call.1} parent=5 // pred_check_branch
        %216 = sbr.rel (%p213) target = $region32
      $region31: #{tpu_custom_call.1} parent=5 // pred_region
        %s217 = ssub.s32 %s13, 1
        %s218 = sand.u32 %s47, 1
        %s219 = scalar_lea.sflag [#allocation4], %s218
        %s220 = sand.u32 %s47, 1
        %s221 = smul.addr %s220, 2048
        %s222 = scalar_lea.vmem [#allocation3], %s221
        // Predicated region
        $region33: #{tpu_custom_call.1} parent=31 // pred_check
          %p223 = pneg %p60
        $region34: #{tpu_custom_call.1} parent=31 // pred_check_branch
          %225 = sbr.rel (%p223) target = $region36
        $region35: #{tpu_custom_call.1} parent=31 // pred_region
          %227 = dma.done %s219, 32768
        $region36: #{tpu_custom_call.1} parent=31 // pred_fallthru
          _
        // Predicated region
        $region37: #{tpu_custom_call.1} parent=31 // pred_check
          %p228 = pneg %p114
        $region38: #{tpu_custom_call.1} parent=31 // pred_check_branch
          %230 = sbr.rel (%p228) target = $region40
        $region39: #{tpu_custom_call.1} parent=31 // pred_region
          %232 = dma.done [#allocation6], 16
        $region40: #{tpu_custom_call.1} parent=31 // pred_fallthru
          _
        %s233 = sand.u32 %s47, 1
        %s234 = scalar_lea.sflag [#allocation4], %s233
        %s235 = sand.u32 %s47, 1
        %s236 = smul.addr %s235, 2048
        %s237 = scalar_lea.vmem [#allocation3], %s236
        %p238 = pneg %p60
        %p239 = pneg %p57
        %s240 = smul.u32 128, %s25
        %p241 = scmp.lt.s32.totalorder %s240, 127
        %s242 = scalar_select %p241, %s240, 127
        %p243 = scmp.lt.s32.totalorder %s24, 0
        %s244 = scalar_select %p243, %s24, 0
        %s245 = sadd.s32 %s244, %s242
        %s246 = smul.addr %s245, 4
        %s247 = scalar_lea.vmem %s1, %s246
        %p248 = pneg %p88
        %p249 = pneg %p85
        %p250 = pneg %p114
        %p251 = pneg %p111
        %p252 = pneg %p142
        %p253 = pneg %p139
        %s254 = smul.u32 64, %s23
        %p255 = scmp.lt.s32.totalorder %s254, 255
        %s256 = scalar_select %p255, %s254, 255
        %p257 = scmp.lt.s32.totalorder %s24, 0
        %s258 = scalar_select %p257, %s24, 0
        %s259 = sadd.s32 %s258, %s256
        %s260 = smul.addr %s259, 4
        %s261 = scalar_lea.vmem %s3, %s260
        %s262 = smul.u32 64, %s23
        %s263 = smul.u32 8, %s25
        %s264 = smul.u32 128, %s25
        %p265 = scmp.lt.s32.totalorder %s264, 127
        %s266 = scalar_select %p265, %s264, 127
        %p267 = scmp.lt.s32.totalorder %s24, 0
        %s268 = scalar_select %p267, %s24, 0
        %s269 = sadd.s32 %s268, %s266
        %s270 = smul.addr %s269, 4
        %s271 = scalar_lea.vmem %s1, %s270
        %s272 = smul.u32 128, %s25
        %s273 = smul.u32 64, %s23
        %p274 = scmp.lt.s32.totalorder %s273, 255
        %s275 = scalar_select %p274, %s273, 255
        %p276 = scmp.lt.s32.totalorder %s24, 0
        %s277 = scalar_select %p276, %s24, 0
        %s278 = sadd.s32 %s277, %s275
        %s279 = smul.addr %s278, 4
        %s280 = scalar_lea.vmem %s3, %s279
        %s281 = smul.u32 64, %s23
        %p282 = scmp.eq.s32.totalorder %s25, 0
        // Predicated region
        $region41: #{tpu_custom_call.1} parent=31 // pred_check
          %p283 = pneg %p282
        $region42: #{tpu_custom_call.1} parent=31 // pred_check_branch
          %285 = sbr.rel (%p283) target = $region44
        $region43: #{tpu_custom_call.1} parent=31 // pred_region
          %vm286 = vcmask 523264
          %287 = vst.msk [vmem:[#allocation2] sm:$0xff] %vm286, 0.0
          %288 = vst.msk [vmem:[#allocation2 + $0x8] sm:$0xff] %vm286, 0.0
          %289 = vst.msk [vmem:[#allocation2 + $0x10] sm:$0xff] %vm286, 0.0
          %290 = vst.msk [vmem:[#allocation2 + $0x18] sm:$0xff] %vm286, 0.0
          %291 = vst.msk [vmem:[#allocation2 + $0x20] sm:$0xff] %vm286, 0.0
          %292 = vst.msk [vmem:[#allocation2 + $0x28] sm:$0xff] %vm286, 0.0
          %293 = vst.msk [vmem:[#allocation2 + $0x30] sm:$0xff] %vm286, 0.0
          %294 = vst.msk [vmem:[#allocation2 + $0x38] sm:$0xff] %vm286, 0.0
          %295 = vst.msk [vmem:[#allocation2 + $0x40] sm:$0xff] %vm286, 0.0
          %296 = vst.msk [vmem:[#allocation2 + $0x48] sm:$0xff] %vm286, 0.0
          %297 = vst.msk [vmem:[#allocation2 + $0x50] sm:$0xff] %vm286, 0.0
          %298 = vst.msk [vmem:[#allocation2 + $0x58] sm:$0xff] %vm286, 0.0
          %299 = vst.msk [vmem:[#allocation2 + $0x60] sm:$0xff] %vm286, 0.0
          %300 = vst.msk [vmem:[#allocation2 + $0x68] sm:$0xff] %vm286, 0.0
          %301 = vst.msk [vmem:[#allocation2 + $0x70] sm:$0xff] %vm286, 0.0
          %302 = vst.msk [vmem:[#allocation2 + $0x78] sm:$0xff] %vm286, 0.0
          %303 = vst.msk [vmem:[#allocation2 + $0x80] sm:$0xff] %vm286, 0.0
          %304 = vst.msk [vmem:[#allocation2 + $0x88] sm:$0xff] %vm286, 0.0
          %305 = vst.msk [vmem:[#allocation2 + $0x90] sm:$0xff] %vm286, 0.0
          %306 = vst.msk [vmem:[#allocation2 + $0x98] sm:$0xff] %vm286, 0.0
          %307 = vst.msk [vmem:[#allocation2 + $0xa0] sm:$0xff] %vm286, 0.0
          %308 = vst.msk [vmem:[#allocation2 + $0xa8] sm:$0xff] %vm286, 0.0
          %309 = vst.msk [vmem:[#allocation2 + $0xb0] sm:$0xff] %vm286, 0.0
          %310 = vst.msk [vmem:[#allocation2 + $0xb8] sm:$0xff] %vm286, 0.0
          %311 = vst.msk [vmem:[#allocation2 + $0xc0] sm:$0xff] %vm286, 0.0
          %312 = vst.msk [vmem:[#allocation2 + $0xc8] sm:$0xff] %vm286, 0.0
          %313 = vst.msk [vmem:[#allocation2 + $0xd0] sm:$0xff] %vm286, 0.0
          %314 = vst.msk [vmem:[#allocation2 + $0xd8] sm:$0xff] %vm286, 0.0
          %315 = vst.msk [vmem:[#allocation2 + $0xe0] sm:$0xff] %vm286, 0.0
          %316 = vst.msk [vmem:[#allocation2 + $0xe8] sm:$0xff] %vm286, 0.0
          %317 = vst.msk [vmem:[#allocation2 + $0xf0] sm:$0xff] %vm286, 0.0
          %318 = vst.msk [vmem:[#allocation2 + $0xf8] sm:$0xff] %vm286, 0.0
          %319 = vst.msk [vmem:[#allocation2 + $0x100] sm:$0xff] %vm286, 0.0
          %320 = vst.msk [vmem:[#allocation2 + $0x108] sm:$0xff] %vm286, 0.0
          %321 = vst.msk [vmem:[#allocation2 + $0x110] sm:$0xff] %vm286, 0.0
          %322 = vst.msk [vmem:[#allocation2 + $0x118] sm:$0xff] %vm286, 0.0
          %323 = vst.msk [vmem:[#allocation2 + $0x120] sm:$0xff] %vm286, 0.0
          %324 = vst.msk [vmem:[#allocation2 + $0x128] sm:$0xff] %vm286, 0.0
          %325 = vst.msk [vmem:[#allocation2 + $0x130] sm:$0xff] %vm286, 0.0
          %326 = vst.msk [vmem:[#allocation2 + $0x138] sm:$0xff] %vm286, 0.0
          %327 = vst.msk [vmem:[#allocation2 + $0x140] sm:$0xff] %vm286, 0.0
          %328 = vst.msk [vmem:[#allocation2 + $0x148] sm:$0xff] %vm286, 0.0
          %329 = vst.msk [vmem:[#allocation2 + $0x150] sm:$0xff] %vm286, 0.0
          %330 = vst.msk [vmem:[#allocation2 + $0x158] sm:$0xff] %vm286, 0.0
          %331 = vst.msk [vmem:[#allocation2 + $0x160] sm:$0xff] %vm286, 0.0
          %332 = vst.msk [vmem:[#allocation2 + $0x168] sm:$0xff] %vm286, 0.0
          %333 = vst.msk [vmem:[#allocation2 + $0x170] sm:$0xff] %vm286, 0.0
          %334 = vst.msk [vmem:[#allocation2 + $0x178] sm:$0xff] %vm286, 0.0
          %335 = vst.msk [vmem:[#allocation2 + $0x180] sm:$0xff] %vm286, 0.0
          %336 = vst.msk [vmem:[#allocation2 + $0x188] sm:$0xff] %vm286, 0.0
          %337 = vst.msk [vmem:[#allocation2 + $0x190] sm:$0xff] %vm286, 0.0
          %338 = vst.msk [vmem:[#allocation2 + $0x198] sm:$0xff] %vm286, 0.0
          %339 = vst.msk [vmem:[#allocation2 + $0x1a0] sm:$0xff] %vm286, 0.0
          %340 = vst.msk [vmem:[#allocation2 + $0x1a8] sm:$0xff] %vm286, 0.0
          %341 = vst.msk [vmem:[#allocation2 + $0x1b0] sm:$0xff] %vm286, 0.0
          %342 = vst.msk [vmem:[#allocation2 + $0x1b8] sm:$0xff] %vm286, 0.0
          %343 = vst.msk [vmem:[#allocation2 + $0x1c0] sm:$0xff] %vm286, 0.0
          %344 = vst.msk [vmem:[#allocation2 + $0x1c8] sm:$0xff] %vm286, 0.0
          %345 = vst.msk [vmem:[#allocation2 + $0x1d0] sm:$0xff] %vm286, 0.0
          %346 = vst.msk [vmem:[#allocation2 + $0x1d8] sm:$0xff] %vm286, 0.0
          %347 = vst.msk [vmem:[#allocation2 + $0x1e0] sm:$0xff] %vm286, 0.0
          %348 = vst.msk [vmem:[#allocation2 + $0x1e8] sm:$0xff] %vm286, 0.0
          %349 = vst.msk [vmem:[#allocation2 + $0x1f0] sm:$0xff] %vm286, 0.0
          %350 = vst.msk [vmem:[#allocation2 + $0x1f8] sm:$0xff] %vm286, 0.0
        $region44: #{tpu_custom_call.1} parent=31 // pred_fallthru
          _
        %v351 = vld [vmem:[#allocation2] sm:$0xff]
        %v352 = vld [vmem:[#allocation2 + $0x8] sm:$0xff]
        %v353 = vld [vmem:[#allocation2 + $0x10] sm:$0xff]
        %v354 = vld [vmem:[#allocation2 + $0x18] sm:$0xff]
        %v355 = vld [vmem:[#allocation2 + $0x20] sm:$0xff]
        %v356 = vld [vmem:[#allocation2 + $0x28] sm:$0xff]
        %v357 = vld [vmem:[#allocation2 + $0x30] sm:$0xff]
        %v358 = vld [vmem:[#allocation2 + $0x38] sm:$0xff]
        %v359 = vld [vmem:[#allocation2 + $0x40] sm:$0xff]
        %v360 = vld [vmem:[#allocation2 + $0x48] sm:$0xff]
        %v361 = vld [vmem:[#allocation2 + $0x50] sm:$0xff]
        %v362 = vld [vmem:[#allocation2 + $0x58] sm:$0xff]
        %v363 = vld [vmem:[#allocation2 + $0x60] sm:$0xff]
        %v364 = vld [vmem:[#allocation2 + $0x68] sm:$0xff]
        %v365 = vld [vmem:[#allocation2 + $0x70] sm:$0xff]
        %v366 = vld [vmem:[#allocation2 + $0x78] sm:$0xff]
        %v367 = vld [vmem:[#allocation2 + $0x80] sm:$0xff]
        %v368 = vld [vmem:[#allocation2 + $0x88] sm:$0xff]
        %v369 = vld [vmem:[#allocation2 + $0x90] sm:$0xff]
        %v370 = vld [vmem:[#allocation2 + $0x98] sm:$0xff]
        %v371 = vld [vmem:[#allocation2 + $0xa0] sm:$0xff]
        %v372 = vld [vmem:[#allocation2 + $0xa8] sm:$0xff]
        %v373 = vld [vmem:[#allocation2 + $0xb0] sm:$0xff]
        %v374 = vld [vmem:[#allocation2 + $0xb8] sm:$0xff]
        %v375 = vld [vmem:[#allocation2 + $0xc0] sm:$0xff]
        %v376 = vld [vmem:[#allocation2 + $0xc8] sm:$0xff]
        %v377 = vld [vmem:[#allocation2 + $0xd0] sm:$0xff]
        %v378 = vld [vmem:[#allocation2 + $0xd8] sm:$0xff]
        %v379 = vld [vmem:[#allocation2 + $0xe0] sm:$0xff]
        %v380 = vld [vmem:[#allocation2 + $0xe8] sm:$0xff]
        %v381 = vld [vmem:[#allocation2 + $0xf0] sm:$0xff]
        %v382 = vld [vmem:[#allocation2 + $0xf8] sm:$0xff]
        %v383 = vld [vmem:[#allocation2 + $0x100] sm:$0xff]
        %v384 = vld [vmem:[#allocation2 + $0x108] sm:$0xff]
        %v385 = vld [vmem:[#allocation2 + $0x110] sm:$0xff]
        %v386 = vld [vmem:[#allocation2 + $0x118] sm:$0xff]
        %v387 = vld [vmem:[#allocation2 + $0x120] sm:$0xff]
        %v388 = vld [vmem:[#allocation2 + $0x128] sm:$0xff]
        %v389 = vld [vmem:[#allocation2 + $0x130] sm:$0xff]
        %v390 = vld [vmem:[#allocation2 + $0x138] sm:$0xff]
        %v391 = vld [vmem:[#allocation2 + $0x140] sm:$0xff]
        %v392 = vld [vmem:[#allocation2 + $0x148] sm:$0xff]
        %v393 = vld [vmem:[#allocation2 + $0x150] sm:$0xff]
        %v394 = vld [vmem:[#allocation2 + $0x158] sm:$0xff]
        %v395 = vld [vmem:[#allocation2 + $0x160] sm:$0xff]
        %v396 = vld [vmem:[#allocation2 + $0x168] sm:$0xff]
        %v397 = vld [vmem:[#allocation2 + $0x170] sm:$0xff]
        %v398 = vld [vmem:[#allocation2 + $0x178] sm:$0xff]
        %v399 = vld [vmem:[#allocation2 + $0x180] sm:$0xff]
        %v400 = vld [vmem:[#allocation2 + $0x188] sm:$0xff]
        %v401 = vld [vmem:[#allocation2 + $0x190] sm:$0xff]
        %v402 = vld [vmem:[#allocation2 + $0x198] sm:$0xff]
        %v403 = vld [vmem:[#allocation2 + $0x1a0] sm:$0xff]
        %v404 = vld [vmem:[#allocation2 + $0x1a8] sm:$0xff]
        %v405 = vld [vmem:[#allocation2 + $0x1b0] sm:$0xff]
        %v406 = vld [vmem:[#allocation2 + $0x1b8] sm:$0xff]
        %v407 = vld [vmem:[#allocation2 + $0x1c0] sm:$0xff]
        %v408 = vld [vmem:[#allocation2 + $0x1c8] sm:$0xff]
        %v409 = vld [vmem:[#allocation2 + $0x1d0] sm:$0xff]
        %v410 = vld [vmem:[#allocation2 + $0x1d8] sm:$0xff]
        %v411 = vld [vmem:[#allocation2 + $0x1e0] sm:$0xff]
        %v412 = vld [vmem:[#allocation2 + $0x1e8] sm:$0xff]
        %v413 = vld [vmem:[#allocation2 + $0x1f0] sm:$0xff]
        %v414 = vld [vmem:[#allocation2 + $0x1f8] sm:$0xff]
        %v415 = vld [vmem:[%s222] sm:$0xff]
        %v416 = vld [vmem:[%s222 + $0x8] sm:$0xff]
        %v417 = vld [vmem:[%s222 + $0x10] sm:$0xff]
        %v418 = vld [vmem:[%s222 + $0x18] sm:$0xff]
        %v419 = vld [vmem:[%s222 + $0x20] sm:$0xff]
        %v420 = vld [vmem:[%s222 + $0x28] sm:$0xff]
        %v421 = vld [vmem:[%s222 + $0x30] sm:$0xff]
        %v422 = vld [vmem:[%s222 + $0x38] sm:$0xff]
        %v423 = vld [vmem:[%s222 + $0x40] sm:$0xff]
        %v424 = vld [vmem:[%s222 + $0x48] sm:$0xff]
        %v425 = vld [vmem:[%s222 + $0x50] sm:$0xff]
        %v426 = vld [vmem:[%s222 + $0x58] sm:$0xff]
        %v427 = vld [vmem:[%s222 + $0x60] sm:$0xff]
        %v428 = vld [vmem:[%s222 + $0x68] sm:$0xff]
        %v429 = vld [vmem:[%s222 + $0x70] sm:$0xff]
        %v430 = vld [vmem:[%s222 + $0x78] sm:$0xff]
        %v431 = vld [vmem:[%s222 + $0x80] sm:$0xff]
        %v432 = vld [vmem:[%s222 + $0x88] sm:$0xff]
        %v433 = vld [vmem:[%s222 + $0x90] sm:$0xff]
        %v434 = vld [vmem:[%s222 + $0x98] sm:$0xff]
        %v435 = vld [vmem:[%s222 + $0xa0] sm:$0xff]
        %v436 = vld [vmem:[%s222 + $0xa8] sm:$0xff]
        %v437 = vld [vmem:[%s222 + $0xb0] sm:$0xff]
        %v438 = vld [vmem:[%s222 + $0xb8] sm:$0xff]
        %v439 = vld [vmem:[%s222 + $0xc0] sm:$0xff]
        %v440 = vld [vmem:[%s222 + $0xc8] sm:$0xff]
        %v441 = vld [vmem:[%s222 + $0xd0] sm:$0xff]
        %v442 = vld [vmem:[%s222 + $0xd8] sm:$0xff]
        %v443 = vld [vmem:[%s222 + $0xe0] sm:$0xff]
        %v444 = vld [vmem:[%s222 + $0xe8] sm:$0xff]
        %v445 = vld [vmem:[%s222 + $0xf0] sm:$0xff]
        %v446 = vld [vmem:[%s222 + $0xf8] sm:$0xff]
        %v447 = vld [vmem:[%s222 + $0x100] sm:$0xff]
        %v448 = vld [vmem:[%s222 + $0x108] sm:$0xff]
        %v449 = vld [vmem:[%s222 + $0x110] sm:$0xff]
        %v450 = vld [vmem:[%s222 + $0x118] sm:$0xff]
        %v451 = vld [vmem:[%s222 + $0x120] sm:$0xff]
        %v452 = vld [vmem:[%s222 + $0x128] sm:$0xff]
        %v453 = vld [vmem:[%s222 + $0x130] sm:$0xff]
        %v454 = vld [vmem:[%s222 + $0x138] sm:$0xff]
        %v455 = vld [vmem:[%s222 + $0x140] sm:$0xff]
        %v456 = vld [vmem:[%s222 + $0x148] sm:$0xff]
        %v457 = vld [vmem:[%s222 + $0x150] sm:$0xff]
        %v458 = vld [vmem:[%s222 + $0x158] sm:$0xff]
        %v459 = vld [vmem:[%s222 + $0x160] sm:$0xff]
        %v460 = vld [vmem:[%s222 + $0x168] sm:$0xff]
        %v461 = vld [vmem:[%s222 + $0x170] sm:$0xff]
        %v462 = vld [vmem:[%s222 + $0x178] sm:$0xff]
        %v463 = vld [vmem:[%s222 + $0x180] sm:$0xff]
        %v464 = vld [vmem:[%s222 + $0x188] sm:$0xff]
        %v465 = vld [vmem:[%s222 + $0x190] sm:$0xff]
        %v466 = vld [vmem:[%s222 + $0x198] sm:$0xff]
        %v467 = vld [vmem:[%s222 + $0x1a0] sm:$0xff]
        %v468 = vld [vmem:[%s222 + $0x1a8] sm:$0xff]
        %v469 = vld [vmem:[%s222 + $0x1b0] sm:$0xff]
        %v470 = vld [vmem:[%s222 + $0x1b8] sm:$0xff]
        %v471 = vld [vmem:[%s222 + $0x1c0] sm:$0xff]
        %v472 = vld [vmem:[%s222 + $0x1c8] sm:$0xff]
        %v473 = vld [vmem:[%s222 + $0x1d0] sm:$0xff]
        %v474 = vld [vmem:[%s222 + $0x1d8] sm:$0xff]
        %v475 = vld [vmem:[%s222 + $0x1e0] sm:$0xff]
        %v476 = vld [vmem:[%s222 + $0x1e8] sm:$0xff]
        %v477 = vld [vmem:[%s222 + $0x1f0] sm:$0xff]
        %v478 = vld [vmem:[%s222 + $0x1f8] sm:$0xff]
        %v479 = vld [vmem:[%s222 + $0x200] sm:$0xff]
        %v480 = vld [vmem:[%s222 + $0x208] sm:$0xff]
        %v481 = vld [vmem:[%s222 + $0x210] sm:$0xff]
        %v482 = vld [vmem:[%s222 + $0x218] sm:$0xff]
        %v483 = vld [vmem:[%s222 + $0x220] sm:$0xff]
        %v484 = vld [vmem:[%s222 + $0x228] sm:$0xff]
        %v485 = vld [vmem:[%s222 + $0x230] sm:$0xff]
        %v486 = vld [vmem:[%s222 + $0x238] sm:$0xff]
        %v487 = vld [vmem:[%s222 + $0x240] sm:$0xff]
        %v488 = vld [vmem:[%s222 + $0x248] sm:$0xff]
        %v489 = vld [vmem:[%s222 + $0x250] sm:$0xff]
        %v490 = vld [vmem:[%s222 + $0x258] sm:$0xff]
        %v491 = vld [vmem:[%s222 + $0x260] sm:$0xff]
        %v492 = vld [vmem:[%s222 + $0x268] sm:$0xff]
        %v493 = vld [vmem:[%s222 + $0x270] sm:$0xff]
        %v494 = vld [vmem:[%s222 + $0x278] sm:$0xff]
        %v495 = vld [vmem:[%s222 + $0x280] sm:$0xff]
        %v496 = vld [vmem:[%s222 + $0x288] sm:$0xff]
        %v497 = vld [vmem:[%s222 + $0x290] sm:$0xff]
        %v498 = vld [vmem:[%s222 + $0x298] sm:$0xff]
        %v499 = vld [vmem:[%s222 + $0x2a0] sm:$0xff]
        %v500 = vld [vmem:[%s222 + $0x2a8] sm:$0xff]
        %v501 = vld [vmem:[%s222 + $0x2b0] sm:$0xff]
        %v502 = vld [vmem:[%s222 + $0x2b8] sm:$0xff]
        %v503 = vld [vmem:[%s222 + $0x2c0] sm:$0xff]
        %v504 = vld [vmem:[%s222 + $0x2c8] sm:$0xff]
        %v505 = vld [vmem:[%s222 + $0x2d0] sm:$0xff]
        %v506 = vld [vmem:[%s222 + $0x2d8] sm:$0xff]
        %v507 = vld [vmem:[%s222 + $0x2e0] sm:$0xff]
        %v508 = vld [vmem:[%s222 + $0x2e8] sm:$0xff]
        %v509 = vld [vmem:[%s222 + $0x2f0] sm:$0xff]
        %v510 = vld [vmem:[%s222 + $0x2f8] sm:$0xff]
        %v511 = vld [vmem:[%s222 + $0x300] sm:$0xff]
        %v512 = vld [vmem:[%s222 + $0x308] sm:$0xff]
        %v513 = vld [vmem:[%s222 + $0x310] sm:$0xff]
        %v514 = vld [vmem:[%s222 + $0x318] sm:$0xff]
        %v515 = vld [vmem:[%s222 + $0x320] sm:$0xff]
        %v516 = vld [vmem:[%s222 + $0x328] sm:$0xff]
        %v517 = vld [vmem:[%s222 + $0x330] sm:$0xff]
        %v518 = vld [vmem:[%s222 + $0x338] sm:$0xff]
        %v519 = vld [vmem:[%s222 + $0x340] sm:$0xff]
        %v520 = vld [vmem:[%s222 + $0x348] sm:$0xff]
        %v521 = vld [vmem:[%s222 + $0x350] sm:$0xff]
        %v522 = vld [vmem:[%s222 + $0x358] sm:$0xff]
        %v523 = vld [vmem:[%s222 + $0x360] sm:$0xff]
        %v524 = vld [vmem:[%s222 + $0x368] sm:$0xff]
        %v525 = vld [vmem:[%s222 + $0x370] sm:$0xff]
        %v526 = vld [vmem:[%s222 + $0x378] sm:$0xff]
        %v527 = vld [vmem:[%s222 + $0x380] sm:$0xff]
        %v528 = vld [vmem:[%s222 + $0x388] sm:$0xff]
        %v529 = vld [vmem:[%s222 + $0x390] sm:$0xff]
        %v530 = vld [vmem:[%s222 + $0x398] sm:$0xff]
        %v531 = vld [vmem:[%s222 + $0x3a0] sm:$0xff]
        %v532 = vld [vmem:[%s222 + $0x3a8] sm:$0xff]
        %v533 = vld [vmem:[%s222 + $0x3b0] sm:$0xff]
        %v534 = vld [vmem:[%s222 + $0x3b8] sm:$0xff]
        %v535 = vld [vmem:[%s222 + $0x3c0] sm:$0xff]
        %v536 = vld [vmem:[%s222 + $0x3c8] sm:$0xff]
        %v537 = vld [vmem:[%s222 + $0x3d0] sm:$0xff]
        %v538 = vld [vmem:[%s222 + $0x3d8] sm:$0xff]
        %v539 = vld [vmem:[%s222 + $0x3e0] sm:$0xff]
        %v540 = vld [vmem:[%s222 + $0x3e8] sm:$0xff]
        %v541 = vld [vmem:[%s222 + $0x3f0] sm:$0xff]
        %v542 = vld [vmem:[%s222 + $0x3f8] sm:$0xff]
        %v543 = vld [vmem:[%s222 + $0x400] sm:$0xff]
        %v544 = vld [vmem:[%s222 + $0x408] sm:$0xff]
        %v545 = vld [vmem:[%s222 + $0x410] sm:$0xff]
        %v546 = vld [vmem:[%s222 + $0x418] sm:$0xff]
        %v547 = vld [vmem:[%s222 + $0x420] sm:$0xff]
        %v548 = vld [vmem:[%s222 + $0x428] sm:$0xff]
        %v549 = vld [vmem:[%s222 + $0x430] sm:$0xff]
        %v550 = vld [vmem:[%s222 + $0x438] sm:$0xff]
        %v551 = vld [vmem:[%s222 + $0x440] sm:$0xff]
        %v552 = vld [vmem:[%s222 + $0x448] sm:$0xff]
        %v553 = vld [vmem:[%s222 + $0x450] sm:$0xff]
        %v554 = vld [vmem:[%s222 + $0x458] sm:$0xff]
        %v555 = vld [vmem:[%s222 + $0x460] sm:$0xff]
        %v556 = vld [vmem:[%s222 + $0x468] sm:$0xff]
        %v557 = vld [vmem:[%s222 + $0x470] sm:$0xff]
        %v558 = vld [vmem:[%s222 + $0x478] sm:$0xff]
        %v559 = vld [vmem:[%s222 + $0x480] sm:$0xff]
        %v560 = vld [vmem:[%s222 + $0x488] sm:$0xff]
        %v561 = vld [vmem:[%s222 + $0x490] sm:$0xff]
        %v562 = vld [vmem:[%s222 + $0x498] sm:$0xff]
        %v563 = vld [vmem:[%s222 + $0x4a0] sm:$0xff]
        %v564 = vld [vmem:[%s222 + $0x4a8] sm:$0xff]
        %v565 = vld [vmem:[%s222 + $0x4b0] sm:$0xff]
        %v566 = vld [vmem:[%s222 + $0x4b8] sm:$0xff]
        %v567 = vld [vmem:[%s222 + $0x4c0] sm:$0xff]
        %v568 = vld [vmem:[%s222 + $0x4c8] sm:$0xff]
        %v569 = vld [vmem:[%s222 + $0x4d0] sm:$0xff]
        %v570 = vld [vmem:[%s222 + $0x4d8] sm:$0xff]
        %v571 = vld [vmem:[%s222 + $0x4e0] sm:$0xff]
        %v572 = vld [vmem:[%s222 + $0x4e8] sm:$0xff]
        %v573 = vld [vmem:[%s222 + $0x4f0] sm:$0xff]
        %v574 = vld [vmem:[%s222 + $0x4f8] sm:$0xff]
        %v575 = vld [vmem:[%s222 + $0x500] sm:$0xff]
        %v576 = vld [vmem:[%s222 + $0x508] sm:$0xff]
        %v577 = vld [vmem:[%s222 + $0x510] sm:$0xff]
        %v578 = vld [vmem:[%s222 + $0x518] sm:$0xff]
        %v579 = vld [vmem:[%s222 + $0x520] sm:$0xff]
        %v580 = vld [vmem:[%s222 + $0x528] sm:$0xff]
        %v581 = vld [vmem:[%s222 + $0x530] sm:$0xff]
        %v582 = vld [vmem:[%s222 + $0x538] sm:$0xff]
        %v583 = vld [vmem:[%s222 + $0x540] sm:$0xff]
        %v584 = vld [vmem:[%s222 + $0x548] sm:$0xff]
        %v585 = vld [vmem:[%s222 + $0x550] sm:$0xff]
        %v586 = vld [vmem:[%s222 + $0x558] sm:$0xff]
        %v587 = vld [vmem:[%s222 + $0x560] sm:$0xff]
        %v588 = vld [vmem:[%s222 + $0x568] sm:$0xff]
        %v589 = vld [vmem:[%s222 + $0x570] sm:$0xff]
        %v590 = vld [vmem:[%s222 + $0x578] sm:$0xff]
        %v591 = vld [vmem:[%s222 + $0x580] sm:$0xff]
        %v592 = vld [vmem:[%s222 + $0x588] sm:$0xff]
        %v593 = vld [vmem:[%s222 + $0x590] sm:$0xff]
        %v594 = vld [vmem:[%s222 + $0x598] sm:$0xff]
        %v595 = vld [vmem:[%s222 + $0x5a0] sm:$0xff]
        %v596 = vld [vmem:[%s222 + $0x5a8] sm:$0xff]
        %v597 = vld [vmem:[%s222 + $0x5b0] sm:$0xff]
        %v598 = vld [vmem:[%s222 + $0x5b8] sm:$0xff]
        %v599 = vld [vmem:[%s222 + $0x5c0] sm:$0xff]
        %v600 = vld [vmem:[%s222 + $0x5c8] sm:$0xff]
        %v601 = vld [vmem:[%s222 + $0x5d0] sm:$0xff]
        %v602 = vld [vmem:[%s222 + $0x5d8] sm:$0xff]
        %v603 = vld [vmem:[%s222 + $0x5e0] sm:$0xff]
        %v604 = vld [vmem:[%s222 + $0x5e8] sm:$0xff]
        %v605 = vld [vmem:[%s222 + $0x5f0] sm:$0xff]
        %v606 = vld [vmem:[%s222 + $0x5f8] sm:$0xff]
        %v607 = vld [vmem:[%s222 + $0x600] sm:$0xff]
        %v608 = vld [vmem:[%s222 + $0x608] sm:$0xff]
        %v609 = vld [vmem:[%s222 + $0x610] sm:$0xff]
        %v610 = vld [vmem:[%s222 + $0x618] sm:$0xff]
        %v611 = vld [vmem:[%s222 + $0x620] sm:$0xff]
        %v612 = vld [vmem:[%s222 + $0x628] sm:$0xff]
        %v613 = vld [vmem:[%s222 + $0x630] sm:$0xff]
        %v614 = vld [vmem:[%s222 + $0x638] sm:$0xff]
        %v615 = vld [vmem:[%s222 + $0x640] sm:$0xff]
        %v616 = vld [vmem:[%s222 + $0x648] sm:$0xff]
        %v617 = vld [vmem:[%s222 + $0x650] sm:$0xff]
        %v618 = vld [vmem:[%s222 + $0x658] sm:$0xff]
        %v619 = vld [vmem:[%s222 + $0x660] sm:$0xff]
        %v620 = vld [vmem:[%s222 + $0x668] sm:$0xff]
        %v621 = vld [vmem:[%s222 + $0x670] sm:$0xff]
        %v622 = vld [vmem:[%s222 + $0x678] sm:$0xff]
        %v623 = vld [vmem:[%s222 + $0x680] sm:$0xff]
        %v624 = vld [vmem:[%s222 + $0x688] sm:$0xff]
        %v625 = vld [vmem:[%s222 + $0x690] sm:$0xff]
        %v626 = vld [vmem:[%s222 + $0x698] sm:$0xff]
        %v627 = vld [vmem:[%s222 + $0x6a0] sm:$0xff]
        %v628 = vld [vmem:[%s222 + $0x6a8] sm:$0xff]
        %v629 = vld [vmem:[%s222 + $0x6b0] sm:$0xff]
        %v630 = vld [vmem:[%s222 + $0x6b8] sm:$0xff]
        %v631 = vld [vmem:[%s222 + $0x6c0] sm:$0xff]
        %v632 = vld [vmem:[%s222 + $0x6c8] sm:$0xff]
        %v633 = vld [vmem:[%s222 + $0x6d0] sm:$0xff]
        %v634 = vld [vmem:[%s222 + $0x6d8] sm:$0xff]
        %v635 = vld [vmem:[%s222 + $0x6e0] sm:$0xff]
        %v636 = vld [vmem:[%s222 + $0x6e8] sm:$0xff]
        %v637 = vld [vmem:[%s222 + $0x6f0] sm:$0xff]
        %v638 = vld [vmem:[%s222 + $0x6f8] sm:$0xff]
        %v639 = vld [vmem:[%s222 + $0x700] sm:$0xff]
        %v640 = vld [vmem:[%s222 + $0x708] sm:$0xff]
        %v641 = vld [vmem:[%s222 + $0x710] sm:$0xff]
        %v642 = vld [vmem:[%s222 + $0x718] sm:$0xff]
        %v643 = vld [vmem:[%s222 + $0x720] sm:$0xff]
        %v644 = vld [vmem:[%s222 + $0x728] sm:$0xff]
        %v645 = vld [vmem:[%s222 + $0x730] sm:$0xff]
        %v646 = vld [vmem:[%s222 + $0x738] sm:$0xff]
        %v647 = vld [vmem:[%s222 + $0x740] sm:$0xff]
        %v648 = vld [vmem:[%s222 + $0x748] sm:$0xff]
        %v649 = vld [vmem:[%s222 + $0x750] sm:$0xff]
        %v650 = vld [vmem:[%s222 + $0x758] sm:$0xff]
        %v651 = vld [vmem:[%s222 + $0x760] sm:$0xff]
        %v652 = vld [vmem:[%s222 + $0x768] sm:$0xff]
        %v653 = vld [vmem:[%s222 + $0x770] sm:$0xff]
        %v654 = vld [vmem:[%s222 + $0x778] sm:$0xff]
        %v655 = vld [vmem:[%s222 + $0x780] sm:$0xff]
        %v656 = vld [vmem:[%s222 + $0x788] sm:$0xff]
        %v657 = vld [vmem:[%s222 + $0x790] sm:$0xff]
        %v658 = vld [vmem:[%s222 + $0x798] sm:$0xff]
        %v659 = vld [vmem:[%s222 + $0x7a0] sm:$0xff]
        %v660 = vld [vmem:[%s222 + $0x7a8] sm:$0xff]
        %v661 = vld [vmem:[%s222 + $0x7b0] sm:$0xff]
        %v662 = vld [vmem:[%s222 + $0x7b8] sm:$0xff]
        %v663 = vld [vmem:[%s222 + $0x7c0] sm:$0xff]
        %v664 = vld [vmem:[%s222 + $0x7c8] sm:$0xff]
        %v665 = vld [vmem:[%s222 + $0x7d0] sm:$0xff]
        %v666 = vld [vmem:[%s222 + $0x7d8] sm:$0xff]
        %v667 = vld [vmem:[%s222 + $0x7e0] sm:$0xff]
        %v668 = vld [vmem:[%s222 + $0x7e8] sm:$0xff]
        %v669 = vld [vmem:[%s222 + $0x7f0] sm:$0xff]
        %v670 = vld [vmem:[%s222 + $0x7f8] sm:$0xff]
        %v671 = vld [vmem:[%s271] sm:$0xf]
        %v672 = vld [vmem:[%s271 + $0x4] sm:$0xf]
        %v673 = vld [vmem:[%s271 + $0x8] sm:$0xf]
        %v674 = vld [vmem:[%s271 + $0xc] sm:$0xf]
        %v675 = vld [vmem:[%s271 + $0x10] sm:$0xf]
        %v676 = vld [vmem:[%s271 + $0x14] sm:$0xf]
        %v677 = vld [vmem:[%s271 + $0x18] sm:$0xf]
        %v678 = vld [vmem:[%s271 + $0x1c] sm:$0xf]
        %v679 = vld [vmem:[%s271 + $0x20] sm:$0xf]
        %v680 = vld [vmem:[%s271 + $0x24] sm:$0xf]
        %v681 = vld [vmem:[%s271 + $0x28] sm:$0xf]
        %v682 = vld [vmem:[%s271 + $0x2c] sm:$0xf]
        %v683 = vld [vmem:[%s271 + $0x30] sm:$0xf]
        %v684 = vld [vmem:[%s271 + $0x34] sm:$0xf]
        %v685 = vld [vmem:[%s271 + $0x38] sm:$0xf]
        %v686 = vld [vmem:[%s271 + $0x3c] sm:$0xf]
        %v687 = vld [vmem:[%s271 + $0x40] sm:$0xf]
        %v688 = vld [vmem:[%s271 + $0x44] sm:$0xf]
        %v689 = vld [vmem:[%s271 + $0x48] sm:$0xf]
        %v690 = vld [vmem:[%s271 + $0x4c] sm:$0xf]
        %v691 = vld [vmem:[%s271 + $0x50] sm:$0xf]
        %v692 = vld [vmem:[%s271 + $0x54] sm:$0xf]
        %v693 = vld [vmem:[%s271 + $0x58] sm:$0xf]
        %v694 = vld [vmem:[%s271 + $0x5c] sm:$0xf]
        %v695 = vld [vmem:[%s271 + $0x60] sm:$0xf]
        %v696 = vld [vmem:[%s271 + $0x64] sm:$0xf]
        %v697 = vld [vmem:[%s271 + $0x68] sm:$0xf]
        %v698 = vld [vmem:[%s271 + $0x6c] sm:$0xf]
        %v699 = vld [vmem:[%s271 + $0x70] sm:$0xf]
        %v700 = vld [vmem:[%s271 + $0x74] sm:$0xf]
        %v701 = vld [vmem:[%s271 + $0x78] sm:$0xf]
        %v702 = vld [vmem:[%s271 + $0x7c] sm:$0xf]
        %v703 = vld [vmem:[%s271 + $0x80] sm:$0xf]
        %v704 = vld [vmem:[%s271 + $0x84] sm:$0xf]
        %v705 = vld [vmem:[%s271 + $0x88] sm:$0xf]
        %v706 = vld [vmem:[%s271 + $0x8c] sm:$0xf]
        %v707 = vld [vmem:[%s271 + $0x90] sm:$0xf]
        %v708 = vld [vmem:[%s271 + $0x94] sm:$0xf]
        %v709 = vld [vmem:[%s271 + $0x98] sm:$0xf]
        %v710 = vld [vmem:[%s271 + $0x9c] sm:$0xf]
        %v711 = vld [vmem:[%s271 + $0xa0] sm:$0xf]
        %v712 = vld [vmem:[%s271 + $0xa4] sm:$0xf]
        %v713 = vld [vmem:[%s271 + $0xa8] sm:$0xf]
        %v714 = vld [vmem:[%s271 + $0xac] sm:$0xf]
        %v715 = vld [vmem:[%s271 + $0xb0] sm:$0xf]
        %v716 = vld [vmem:[%s271 + $0xb4] sm:$0xf]
        %v717 = vld [vmem:[%s271 + $0xb8] sm:$0xf]
        %v718 = vld [vmem:[%s271 + $0xbc] sm:$0xf]
        %v719 = vld [vmem:[%s271 + $0xc0] sm:$0xf]
        %v720 = vld [vmem:[%s271 + $0xc4] sm:$0xf]
        %v721 = vld [vmem:[%s271 + $0xc8] sm:$0xf]
        %v722 = vld [vmem:[%s271 + $0xcc] sm:$0xf]
        %v723 = vld [vmem:[%s271 + $0xd0] sm:$0xf]
        %v724 = vld [vmem:[%s271 + $0xd4] sm:$0xf]
        %v725 = vld [vmem:[%s271 + $0xd8] sm:$0xf]
        %v726 = vld [vmem:[%s271 + $0xdc] sm:$0xf]
        %v727 = vld [vmem:[%s271 + $0xe0] sm:$0xf]
        %v728 = vld [vmem:[%s271 + $0xe4] sm:$0xf]
        %v729 = vld [vmem:[%s271 + $0xe8] sm:$0xf]
        %v730 = vld [vmem:[%s271 + $0xec] sm:$0xf]
        %v731 = vld [vmem:[%s271 + $0xf0] sm:$0xf]
        %v732 = vld [vmem:[%s271 + $0xf4] sm:$0xf]
        %v733 = vld [vmem:[%s271 + $0xf8] sm:$0xf]
        %v734 = vld [vmem:[%s271 + $0xfc] sm:$0xf]
        %v735 = vld [vmem:[%s271 + $0x100] sm:$0xf]
        %v736 = vld [vmem:[%s271 + $0x104] sm:$0xf]
        %v737 = vld [vmem:[%s271 + $0x108] sm:$0xf]
        %v738 = vld [vmem:[%s271 + $0x10c] sm:$0xf]
        %v739 = vld [vmem:[%s271 + $0x110] sm:$0xf]
        %v740 = vld [vmem:[%s271 + $0x114] sm:$0xf]
        %v741 = vld [vmem:[%s271 + $0x118] sm:$0xf]
        %v742 = vld [vmem:[%s271 + $0x11c] sm:$0xf]
        %v743 = vld [vmem:[%s271 + $0x120] sm:$0xf]
        %v744 = vld [vmem:[%s271 + $0x124] sm:$0xf]
        %v745 = vld [vmem:[%s271 + $0x128] sm:$0xf]
        %v746 = vld [vmem:[%s271 + $0x12c] sm:$0xf]
        %v747 = vld [vmem:[%s271 + $0x130] sm:$0xf]
        %v748 = vld [vmem:[%s271 + $0x134] sm:$0xf]
        %v749 = vld [vmem:[%s271 + $0x138] sm:$0xf]
        %v750 = vld [vmem:[%s271 + $0x13c] sm:$0xf]
        %v751 = vld [vmem:[%s271 + $0x140] sm:$0xf]
        %v752 = vld [vmem:[%s271 + $0x144] sm:$0xf]
        %v753 = vld [vmem:[%s271 + $0x148] sm:$0xf]
        %v754 = vld [vmem:[%s271 + $0x14c] sm:$0xf]
        %v755 = vld [vmem:[%s271 + $0x150] sm:$0xf]
        %v756 = vld [vmem:[%s271 + $0x154] sm:$0xf]
        %v757 = vld [vmem:[%s271 + $0x158] sm:$0xf]
        %v758 = vld [vmem:[%s271 + $0x15c] sm:$0xf]
        %v759 = vld [vmem:[%s271 + $0x160] sm:$0xf]
        %v760 = vld [vmem:[%s271 + $0x164] sm:$0xf]
        %v761 = vld [vmem:[%s271 + $0x168] sm:$0xf]
        %v762 = vld [vmem:[%s271 + $0x16c] sm:$0xf]
        %v763 = vld [vmem:[%s271 + $0x170] sm:$0xf]
        %v764 = vld [vmem:[%s271 + $0x174] sm:$0xf]
        %v765 = vld [vmem:[%s271 + $0x178] sm:$0xf]
        %v766 = vld [vmem:[%s271 + $0x17c] sm:$0xf]
        %v767 = vld [vmem:[%s271 + $0x180] sm:$0xf]
        %v768 = vld [vmem:[%s271 + $0x184] sm:$0xf]
        %v769 = vld [vmem:[%s271 + $0x188] sm:$0xf]
        %v770 = vld [vmem:[%s271 + $0x18c] sm:$0xf]
        %v771 = vld [vmem:[%s271 + $0x190] sm:$0xf]
        %v772 = vld [vmem:[%s271 + $0x194] sm:$0xf]
        %v773 = vld [vmem:[%s271 + $0x198] sm:$0xf]
        %v774 = vld [vmem:[%s271 + $0x19c] sm:$0xf]
        %v775 = vld [vmem:[%s271 + $0x1a0] sm:$0xf]
        %v776 = vld [vmem:[%s271 + $0x1a4] sm:$0xf]
        %v777 = vld [vmem:[%s271 + $0x1a8] sm:$0xf]
        %v778 = vld [vmem:[%s271 + $0x1ac] sm:$0xf]
        %v779 = vld [vmem:[%s271 + $0x1b0] sm:$0xf]
        %v780 = vld [vmem:[%s271 + $0x1b4] sm:$0xf]
        %v781 = vld [vmem:[%s271 + $0x1b8] sm:$0xf]
        %v782 = vld [vmem:[%s271 + $0x1bc] sm:$0xf]
        %v783 = vld [vmem:[%s271 + $0x1c0] sm:$0xf]
        %v784 = vld [vmem:[%s271 + $0x1c4] sm:$0xf]
        %v785 = vld [vmem:[%s271 + $0x1c8] sm:$0xf]
        %v786 = vld [vmem:[%s271 + $0x1cc] sm:$0xf]
        %v787 = vld [vmem:[%s271 + $0x1d0] sm:$0xf]
        %v788 = vld [vmem:[%s271 + $0x1d4] sm:$0xf]
        %v789 = vld [vmem:[%s271 + $0x1d8] sm:$0xf]
        %v790 = vld [vmem:[%s271 + $0x1dc] sm:$0xf]
        %v791 = vld [vmem:[%s271 + $0x1e0] sm:$0xf]
        %v792 = vld [vmem:[%s271 + $0x1e4] sm:$0xf]
        %v793 = vld [vmem:[%s271 + $0x1e8] sm:$0xf]
        %v794 = vld [vmem:[%s271 + $0x1ec] sm:$0xf]
        %v795 = vld [vmem:[%s271 + $0x1f0] sm:$0xf]
        %v796 = vld [vmem:[%s271 + $0x1f4] sm:$0xf]
        %v797 = vld [vmem:[%s271 + $0x1f8] sm:$0xf]
        %v798 = vld [vmem:[%s271 + $0x1fc] sm:$0xf]
        %v1055 = vunpack.c.l.b16 %v415
        %v1056 = vunpack.c.h.b16 %v415
        %v1057 = vunpack.c.l.b16 %v416
        %v1058 = vunpack.c.h.b16 %v416
        %v1059 = vunpack.c.l.b16 %v417
        %v1060 = vunpack.c.h.b16 %v417
        %v1061 = vunpack.c.l.b16 %v418
        %v1062 = vunpack.c.h.b16 %v418
        %v1063 = vunpack.c.l.b16 %v419
        %v1064 = vunpack.c.h.b16 %v419
        %v1065 = vunpack.c.l.b16 %v420
        %v1066 = vunpack.c.h.b16 %v420
        %v1067 = vunpack.c.l.b16 %v421
        %v1068 = vunpack.c.h.b16 %v421
        %v1069 = vunpack.c.l.b16 %v422
        %v1070 = vunpack.c.h.b16 %v422
        %v1071 = vunpack.c.l.b16 %v423
        %v1072 = vunpack.c.h.b16 %v423
        %v1073 = vunpack.c.l.b16 %v424
        %v1074 = vunpack.c.h.b16 %v424
        %v1075 = vunpack.c.l.b16 %v425
        %v1076 = vunpack.c.h.b16 %v425
        %v1077 = vunpack.c.l.b16 %v426
        %v1078 = vunpack.c.h.b16 %v426
        %v1079 = vunpack.c.l.b16 %v427
        %v1080 = vunpack.c.h.b16 %v427
        %v1081 = vunpack.c.l.b16 %v428
        %v1082 = vunpack.c.h.b16 %v428
        %v1083 = vunpack.c.l.b16 %v429
        %v1084 = vunpack.c.h.b16 %v429
        %v1085 = vunpack.c.l.b16 %v430
        %v1086 = vunpack.c.h.b16 %v430
        %v1087 = vunpack.c.l.b16 %v431
        %v1088 = vunpack.c.h.b16 %v431
        %v1089 = vunpack.c.l.b16 %v432
        %v1090 = vunpack.c.h.b16 %v432
        %v1091 = vunpack.c.l.b16 %v433
        %v1092 = vunpack.c.h.b16 %v433
        %v1093 = vunpack.c.l.b16 %v434
        %v1094 = vunpack.c.h.b16 %v434
        %v1095 = vunpack.c.l.b16 %v435
        %v1096 = vunpack.c.h.b16 %v435
        %v1097 = vunpack.c.l.b16 %v436
        %v1098 = vunpack.c.h.b16 %v436
        %v1099 = vunpack.c.l.b16 %v437
        %v1100 = vunpack.c.h.b16 %v437
        %v1101 = vunpack.c.l.b16 %v438
        %v1102 = vunpack.c.h.b16 %v438
        %v1103 = vunpack.c.l.b16 %v439
        %v1104 = vunpack.c.h.b16 %v439
        %v1105 = vunpack.c.l.b16 %v440
        %v1106 = vunpack.c.h.b16 %v440
        %v1107 = vunpack.c.l.b16 %v441
        %v1108 = vunpack.c.h.b16 %v441
        %v1109 = vunpack.c.l.b16 %v442
        %v1110 = vunpack.c.h.b16 %v442
        %v1111 = vunpack.c.l.b16 %v443
        %v1112 = vunpack.c.h.b16 %v443
        %v1113 = vunpack.c.l.b16 %v444
        %v1114 = vunpack.c.h.b16 %v444
        %v1115 = vunpack.c.l.b16 %v445
        %v1116 = vunpack.c.h.b16 %v445
        %v1117 = vunpack.c.l.b16 %v446
        %v1118 = vunpack.c.h.b16 %v446
        %v1119 = vunpack.c.l.b16 %v447
        %v1120 = vunpack.c.h.b16 %v447
        %v1121 = vunpack.c.l.b16 %v448
        %v1122 = vunpack.c.h.b16 %v448
        %v1123 = vunpack.c.l.b16 %v449
        %v1124 = vunpack.c.h.b16 %v449
        %v1125 = vunpack.c.l.b16 %v450
        %v1126 = vunpack.c.h.b16 %v450
        %v1127 = vunpack.c.l.b16 %v451
        %v1128 = vunpack.c.h.b16 %v451
        %v1129 = vunpack.c.l.b16 %v452
        %v1130 = vunpack.c.h.b16 %v452
        %v1131 = vunpack.c.l.b16 %v453
        %v1132 = vunpack.c.h.b16 %v453
        %v1133 = vunpack.c.l.b16 %v454
        %v1134 = vunpack.c.h.b16 %v454
        %v1135 = vunpack.c.l.b16 %v455
        %v1136 = vunpack.c.h.b16 %v455
        %v1137 = vunpack.c.l.b16 %v456
        %v1138 = vunpack.c.h.b16 %v456
        %v1139 = vunpack.c.l.b16 %v457
        %v1140 = vunpack.c.h.b16 %v457
        %v1141 = vunpack.c.l.b16 %v458
        %v1142 = vunpack.c.h.b16 %v458
        %v1143 = vunpack.c.l.b16 %v459
        %v1144 = vunpack.c.h.b16 %v459
        %v1145 = vunpack.c.l.b16 %v460
        %v1146 = vunpack.c.h.b16 %v460
        %v1147 = vunpack.c.l.b16 %v461
        %v1148 = vunpack.c.h.b16 %v461
        %v1149 = vunpack.c.l.b16 %v462
        %v1150 = vunpack.c.h.b16 %v462
        %v1151 = vunpack.c.l.b16 %v463
        %v1152 = vunpack.c.h.b16 %v463
        %v1153 = vunpack.c.l.b16 %v464
        %v1154 = vunpack.c.h.b16 %v464
        %v1155 = vunpack.c.l.b16 %v465
        %v1156 = vunpack.c.h.b16 %v465
        %v1157 = vunpack.c.l.b16 %v466
        %v1158 = vunpack.c.h.b16 %v466
        %v1159 = vunpack.c.l.b16 %v467
        %v1160 = vunpack.c.h.b16 %v467
        %v1161 = vunpack.c.l.b16 %v468
        %v1162 = vunpack.c.h.b16 %v468
        %v1163 = vunpack.c.l.b16 %v469
        %v1164 = vunpack.c.h.b16 %v469
        %v1165 = vunpack.c.l.b16 %v470
        %v1166 = vunpack.c.h.b16 %v470
        %v1167 = vunpack.c.l.b16 %v471
        %v1168 = vunpack.c.h.b16 %v471
        %v1169 = vunpack.c.l.b16 %v472
        %v1170 = vunpack.c.h.b16 %v472
        %v1171 = vunpack.c.l.b16 %v473
        %v1172 = vunpack.c.h.b16 %v473
        %v1173 = vunpack.c.l.b16 %v474
        %v1174 = vunpack.c.h.b16 %v474
        %v1175 = vunpack.c.l.b16 %v475
        %v1176 = vunpack.c.h.b16 %v475
        %v1177 = vunpack.c.l.b16 %v476
        %v1178 = vunpack.c.h.b16 %v476
        %v1179 = vunpack.c.l.b16 %v477
        %v1180 = vunpack.c.h.b16 %v477
        %v1181 = vunpack.c.l.b16 %v478
        %v1182 = vunpack.c.h.b16 %v478
        %v1183 = vunpack.c.l.b16 %v479
        %v1184 = vunpack.c.h.b16 %v479
        %v1185 = vunpack.c.l.b16 %v480
        %v1186 = vunpack.c.h.b16 %v480
        %v1187 = vunpack.c.l.b16 %v481
        %v1188 = vunpack.c.h.b16 %v481
        %v1189 = vunpack.c.l.b16 %v482
        %v1190 = vunpack.c.h.b16 %v482
        %v1191 = vunpack.c.l.b16 %v483
        %v1192 = vunpack.c.h.b16 %v483
        %v1193 = vunpack.c.l.b16 %v484
        %v1194 = vunpack.c.h.b16 %v484
        %v1195 = vunpack.c.l.b16 %v485
        %v1196 = vunpack.c.h.b16 %v485
        %v1197 = vunpack.c.l.b16 %v486
        %v1198 = vunpack.c.h.b16 %v486
        %v1199 = vunpack.c.l.b16 %v487
        %v1200 = vunpack.c.h.b16 %v487
        %v1201 = vunpack.c.l.b16 %v488
        %v1202 = vunpack.c.h.b16 %v488
        %v1203 = vunpack.c.l.b16 %v489
        %v1204 = vunpack.c.h.b16 %v489
        %v1205 = vunpack.c.l.b16 %v490
        %v1206 = vunpack.c.h.b16 %v490
        %v1207 = vunpack.c.l.b16 %v491
        %v1208 = vunpack.c.h.b16 %v491
        %v1209 = vunpack.c.l.b16 %v492
        %v1210 = vunpack.c.h.b16 %v492
        %v1211 = vunpack.c.l.b16 %v493
        %v1212 = vunpack.c.h.b16 %v493
        %v1213 = vunpack.c.l.b16 %v494
        %v1214 = vunpack.c.h.b16 %v494
        %v1215 = vunpack.c.l.b16 %v495
        %v1216 = vunpack.c.h.b16 %v495
        %v1217 = vunpack.c.l.b16 %v496
        %v1218 = vunpack.c.h.b16 %v496
        %v1219 = vunpack.c.l.b16 %v497
        %v1220 = vunpack.c.h.b16 %v497
        %v1221 = vunpack.c.l.b16 %v498
        %v1222 = vunpack.c.h.b16 %v498
        %v1223 = vunpack.c.l.b16 %v499
        %v1224 = vunpack.c.h.b16 %v499
        %v1225 = vunpack.c.l.b16 %v500
        %v1226 = vunpack.c.h.b16 %v500
        %v1227 = vunpack.c.l.b16 %v501
        %v1228 = vunpack.c.h.b16 %v501
        %v1229 = vunpack.c.l.b16 %v502
        %v1230 = vunpack.c.h.b16 %v502
        %v1231 = vunpack.c.l.b16 %v503
        %v1232 = vunpack.c.h.b16 %v503
        %v1233 = vunpack.c.l.b16 %v504
        %v1234 = vunpack.c.h.b16 %v504
        %v1235 = vunpack.c.l.b16 %v505
        %v1236 = vunpack.c.h.b16 %v505
        %v1237 = vunpack.c.l.b16 %v506
        %v1238 = vunpack.c.h.b16 %v506
        %v1239 = vunpack.c.l.b16 %v507
        %v1240 = vunpack.c.h.b16 %v507
        %v1241 = vunpack.c.l.b16 %v508
        %v1242 = vunpack.c.h.b16 %v508
        %v1243 = vunpack.c.l.b16 %v509
        %v1244 = vunpack.c.h.b16 %v509
        %v1245 = vunpack.c.l.b16 %v510
        %v1246 = vunpack.c.h.b16 %v510
        %v1247 = vunpack.c.l.b16 %v511
        %v1248 = vunpack.c.h.b16 %v511
        %v1249 = vunpack.c.l.b16 %v512
        %v1250 = vunpack.c.h.b16 %v512
        %v1251 = vunpack.c.l.b16 %v513
        %v1252 = vunpack.c.h.b16 %v513
        %v1253 = vunpack.c.l.b16 %v514
        %v1254 = vunpack.c.h.b16 %v514
        %v1255 = vunpack.c.l.b16 %v515
        %v1256 = vunpack.c.h.b16 %v515
        %v1257 = vunpack.c.l.b16 %v516
        %v1258 = vunpack.c.h.b16 %v516
        %v1259 = vunpack.c.l.b16 %v517
        %v1260 = vunpack.c.h.b16 %v517
        %v1261 = vunpack.c.l.b16 %v518
        %v1262 = vunpack.c.h.b16 %v518
        %v1263 = vunpack.c.l.b16 %v519
        %v1264 = vunpack.c.h.b16 %v519
        %v1265 = vunpack.c.l.b16 %v520
        %v1266 = vunpack.c.h.b16 %v520
        %v1267 = vunpack.c.l.b16 %v521
        %v1268 = vunpack.c.h.b16 %v521
        %v1269 = vunpack.c.l.b16 %v522
        %v1270 = vunpack.c.h.b16 %v522
        %v1271 = vunpack.c.l.b16 %v523
        %v1272 = vunpack.c.h.b16 %v523
        %v1273 = vunpack.c.l.b16 %v524
        %v1274 = vunpack.c.h.b16 %v524
        %v1275 = vunpack.c.l.b16 %v525
        %v1276 = vunpack.c.h.b16 %v525
        %v1277 = vunpack.c.l.b16 %v526
        %v1278 = vunpack.c.h.b16 %v526
        %v1279 = vunpack.c.l.b16 %v527
        %v1280 = vunpack.c.h.b16 %v527
        %v1281 = vunpack.c.l.b16 %v528
        %v1282 = vunpack.c.h.b16 %v528
        %v1283 = vunpack.c.l.b16 %v529
        %v1284 = vunpack.c.h.b16 %v529
        %v1285 = vunpack.c.l.b16 %v530
        %v1286 = vunpack.c.h.b16 %v530
        %v1287 = vunpack.c.l.b16 %v531
        %v1288 = vunpack.c.h.b16 %v531
        %v1289 = vunpack.c.l.b16 %v532
        %v1290 = vunpack.c.h.b16 %v532
        %v1291 = vunpack.c.l.b16 %v533
        %v1292 = vunpack.c.h.b16 %v533
        %v1293 = vunpack.c.l.b16 %v534
        %v1294 = vunpack.c.h.b16 %v534
        %v1295 = vunpack.c.l.b16 %v535
        %v1296 = vunpack.c.h.b16 %v535
        %v1297 = vunpack.c.l.b16 %v536
        %v1298 = vunpack.c.h.b16 %v536
        %v1299 = vunpack.c.l.b16 %v537
        %v1300 = vunpack.c.h.b16 %v537
        %v1301 = vunpack.c.l.b16 %v538
        %v1302 = vunpack.c.h.b16 %v538
        %v1303 = vunpack.c.l.b16 %v539
        %v1304 = vunpack.c.h.b16 %v539
        %v1305 = vunpack.c.l.b16 %v540
        %v1306 = vunpack.c.h.b16 %v540
        %v1307 = vunpack.c.l.b16 %v541
        %v1308 = vunpack.c.h.b16 %v541
        %v1309 = vunpack.c.l.b16 %v542
        %v1310 = vunpack.c.h.b16 %v542
        %v1311 = vunpack.c.l.b16 %v543
        %v1312 = vunpack.c.h.b16 %v543
        %v1313 = vunpack.c.l.b16 %v544
        %v1314 = vunpack.c.h.b16 %v544
        %v1315 = vunpack.c.l.b16 %v545
        %v1316 = vunpack.c.h.b16 %v545
        %v1317 = vunpack.c.l.b16 %v546
        %v1318 = vunpack.c.h.b16 %v546
        %v1319 = vunpack.c.l.b16 %v547
        %v1320 = vunpack.c.h.b16 %v547
        %v1321 = vunpack.c.l.b16 %v548
        %v1322 = vunpack.c.h.b16 %v548
        %v1323 = vunpack.c.l.b16 %v549
        %v1324 = vunpack.c.h.b16 %v549
        %v1325 = vunpack.c.l.b16 %v550
        %v1326 = vunpack.c.h.b16 %v550
        %v1327 = vunpack.c.l.b16 %v551
        %v1328 = vunpack.c.h.b16 %v551
        %v1329 = vunpack.c.l.b16 %v552
        %v1330 = vunpack.c.h.b16 %v552
        %v1331 = vunpack.c.l.b16 %v553
        %v1332 = vunpack.c.h.b16 %v553
        %v1333 = vunpack.c.l.b16 %v554
        %v1334 = vunpack.c.h.b16 %v554
        %v1335 = vunpack.c.l.b16 %v555
        %v1336 = vunpack.c.h.b16 %v555
        %v1337 = vunpack.c.l.b16 %v556
        %v1338 = vunpack.c.h.b16 %v556
        %v1339 = vunpack.c.l.b16 %v557
        %v1340 = vunpack.c.h.b16 %v557
        %v1341 = vunpack.c.l.b16 %v558
        %v1342 = vunpack.c.h.b16 %v558
        %v1343 = vunpack.c.l.b16 %v559
        %v1344 = vunpack.c.h.b16 %v559
        %v1345 = vunpack.c.l.b16 %v560
        %v1346 = vunpack.c.h.b16 %v560
        %v1347 = vunpack.c.l.b16 %v561
        %v1348 = vunpack.c.h.b16 %v561
        %v1349 = vunpack.c.l.b16 %v562
        %v1350 = vunpack.c.h.b16 %v562
        %v1351 = vunpack.c.l.b16 %v563
        %v1352 = vunpack.c.h.b16 %v563
        %v1353 = vunpack.c.l.b16 %v564
        %v1354 = vunpack.c.h.b16 %v564
        %v1355 = vunpack.c.l.b16 %v565
        %v1356 = vunpack.c.h.b16 %v565
        %v1357 = vunpack.c.l.b16 %v566
        %v1358 = vunpack.c.h.b16 %v566
        %v1359 = vunpack.c.l.b16 %v567
        %v1360 = vunpack.c.h.b16 %v567
        %v1361 = vunpack.c.l.b16 %v568
        %v1362 = vunpack.c.h.b16 %v568
        %v1363 = vunpack.c.l.b16 %v569
        %v1364 = vunpack.c.h.b16 %v569
        %v1365 = vunpack.c.l.b16 %v570
        %v1366 = vunpack.c.h.b16 %v570
        %v1367 = vunpack.c.l.b16 %v571
        %v1368 = vunpack.c.h.b16 %v571
        %v1369 = vunpack.c.l.b16 %v572
        %v1370 = vunpack.c.h.b16 %v572
        %v1371 = vunpack.c.l.b16 %v573
        %v1372 = vunpack.c.h.b16 %v573
        %v1373 = vunpack.c.l.b16 %v574
        %v1374 = vunpack.c.h.b16 %v574
        %v1375 = vunpack.c.l.b16 %v575
        %v1376 = vunpack.c.h.b16 %v575
        %v1377 = vunpack.c.l.b16 %v576
        %v1378 = vunpack.c.h.b16 %v576
        %v1379 = vunpack.c.l.b16 %v577
        %v1380 = vunpack.c.h.b16 %v577
        %v1381 = vunpack.c.l.b16 %v578
        %v1382 = vunpack.c.h.b16 %v578
        %v1383 = vunpack.c.l.b16 %v579
        %v1384 = vunpack.c.h.b16 %v579
        %v1385 = vunpack.c.l.b16 %v580
        %v1386 = vunpack.c.h.b16 %v580
        %v1387 = vunpack.c.l.b16 %v581
        %v1388 = vunpack.c.h.b16 %v581
        %v1389 = vunpack.c.l.b16 %v582
        %v1390 = vunpack.c.h.b16 %v582
        %v1391 = vunpack.c.l.b16 %v583
        %v1392 = vunpack.c.h.b16 %v583
        %v1393 = vunpack.c.l.b16 %v584
        %v1394 = vunpack.c.h.b16 %v584
        %v1395 = vunpack.c.l.b16 %v585
        %v1396 = vunpack.c.h.b16 %v585
        %v1397 = vunpack.c.l.b16 %v586
        %v1398 = vunpack.c.h.b16 %v586
        %v1399 = vunpack.c.l.b16 %v587
        %v1400 = vunpack.c.h.b16 %v587
        %v1401 = vunpack.c.l.b16 %v588
        %v1402 = vunpack.c.h.b16 %v588
        %v1403 = vunpack.c.l.b16 %v589
        %v1404 = vunpack.c.h.b16 %v589
        %v1405 = vunpack.c.l.b16 %v590
        %v1406 = vunpack.c.h.b16 %v590
        %v1407 = vunpack.c.l.b16 %v591
        %v1408 = vunpack.c.h.b16 %v591
        %v1409 = vunpack.c.l.b16 %v592
        %v1410 = vunpack.c.h.b16 %v592
        %v1411 = vunpack.c.l.b16 %v593
        %v1412 = vunpack.c.h.b16 %v593
        %v1413 = vunpack.c.l.b16 %v594
        %v1414 = vunpack.c.h.b16 %v594
        %v1415 = vunpack.c.l.b16 %v595
        %v1416 = vunpack.c.h.b16 %v595
        %v1417 = vunpack.c.l.b16 %v596
        %v1418 = vunpack.c.h.b16 %v596
        %v1419 = vunpack.c.l.b16 %v597
        %v1420 = vunpack.c.h.b16 %v597
        %v1421 = vunpack.c.l.b16 %v598
        %v1422 = vunpack.c.h.b16 %v598
        %v1423 = vunpack.c.l.b16 %v599
        %v1424 = vunpack.c.h.b16 %v599
        %v1425 = vunpack.c.l.b16 %v600
        %v1426 = vunpack.c.h.b16 %v600
        %v1427 = vunpack.c.l.b16 %v601
        %v1428 = vunpack.c.h.b16 %v601
        %v1429 = vunpack.c.l.b16 %v602
        %v1430 = vunpack.c.h.b16 %v602
        %v1431 = vunpack.c.l.b16 %v603
        %v1432 = vunpack.c.h.b16 %v603
        %v1433 = vunpack.c.l.b16 %v604
        %v1434 = vunpack.c.h.b16 %v604
        %v1435 = vunpack.c.l.b16 %v605
        %v1436 = vunpack.c.h.b16 %v605
        %v1437 = vunpack.c.l.b16 %v606
        %v1438 = vunpack.c.h.b16 %v606
        %v1439 = vunpack.c.l.b16 %v607
        %v1440 = vunpack.c.h.b16 %v607
        %v1441 = vunpack.c.l.b16 %v608
        %v1442 = vunpack.c.h.b16 %v608
        %v1443 = vunpack.c.l.b16 %v609
        %v1444 = vunpack.c.h.b16 %v609
        %v1445 = vunpack.c.l.b16 %v610
        %v1446 = vunpack.c.h.b16 %v610
        %v1447 = vunpack.c.l.b16 %v611
        %v1448 = vunpack.c.h.b16 %v611
        %v1449 = vunpack.c.l.b16 %v612
        %v1450 = vunpack.c.h.b16 %v612
        %v1451 = vunpack.c.l.b16 %v613
        %v1452 = vunpack.c.h.b16 %v613
        %v1453 = vunpack.c.l.b16 %v614
        %v1454 = vunpack.c.h.b16 %v614
        %v1455 = vunpack.c.l.b16 %v615
        %v1456 = vunpack.c.h.b16 %v615
        %v1457 = vunpack.c.l.b16 %v616
        %v1458 = vunpack.c.h.b16 %v616
        %v1459 = vunpack.c.l.b16 %v617
        %v1460 = vunpack.c.h.b16 %v617
        %v1461 = vunpack.c.l.b16 %v618
        %v1462 = vunpack.c.h.b16 %v618
        %v1463 = vunpack.c.l.b16 %v619
        %v1464 = vunpack.c.h.b16 %v619
        %v1465 = vunpack.c.l.b16 %v620
        %v1466 = vunpack.c.h.b16 %v620
        %v1467 = vunpack.c.l.b16 %v621
        %v1468 = vunpack.c.h.b16 %v621
        %v1469 = vunpack.c.l.b16 %v622
        %v1470 = vunpack.c.h.b16 %v622
        %v1471 = vunpack.c.l.b16 %v623
        %v1472 = vunpack.c.h.b16 %v623
        %v1473 = vunpack.c.l.b16 %v624
        %v1474 = vunpack.c.h.b16 %v624
        %v1475 = vunpack.c.l.b16 %v625
        %v1476 = vunpack.c.h.b16 %v625
        %v1477 = vunpack.c.l.b16 %v626
        %v1478 = vunpack.c.h.b16 %v626
        %v1479 = vunpack.c.l.b16 %v627
        %v1480 = vunpack.c.h.b16 %v627
        %v1481 = vunpack.c.l.b16 %v628
        %v1482 = vunpack.c.h.b16 %v628
        %v1483 = vunpack.c.l.b16 %v629
        %v1484 = vunpack.c.h.b16 %v629
        %v1485 = vunpack.c.l.b16 %v630
        %v1486 = vunpack.c.h.b16 %v630
        %v1487 = vunpack.c.l.b16 %v631
        %v1488 = vunpack.c.h.b16 %v631
        %v1489 = vunpack.c.l.b16 %v632
        %v1490 = vunpack.c.h.b16 %v632
        %v1491 = vunpack.c.l.b16 %v633
        %v1492 = vunpack.c.h.b16 %v633
        %v1493 = vunpack.c.l.b16 %v634
        %v1494 = vunpack.c.h.b16 %v634
        %v1495 = vunpack.c.l.b16 %v635
        %v1496 = vunpack.c.h.b16 %v635
        %v1497 = vunpack.c.l.b16 %v636
        %v1498 = vunpack.c.h.b16 %v636
        %v1499 = vunpack.c.l.b16 %v637
        %v1500 = vunpack.c.h.b16 %v637
        %v1501 = vunpack.c.l.b16 %v638
        %v1502 = vunpack.c.h.b16 %v638
        %v1503 = vunpack.c.l.b16 %v639
        %v1504 = vunpack.c.h.b16 %v639
        %v1505 = vunpack.c.l.b16 %v640
        %v1506 = vunpack.c.h.b16 %v640
        %v1507 = vunpack.c.l.b16 %v641
        %v1508 = vunpack.c.h.b16 %v641
        %v1509 = vunpack.c.l.b16 %v642
        %v1510 = vunpack.c.h.b16 %v642
        %v1511 = vunpack.c.l.b16 %v643
        %v1512 = vunpack.c.h.b16 %v643
        %v1513 = vunpack.c.l.b16 %v644
        %v1514 = vunpack.c.h.b16 %v644
        %v1515 = vunpack.c.l.b16 %v645
        %v1516 = vunpack.c.h.b16 %v645
        %v1517 = vunpack.c.l.b16 %v646
        %v1518 = vunpack.c.h.b16 %v646
        %v1519 = vunpack.c.l.b16 %v647
        %v1520 = vunpack.c.h.b16 %v647
        %v1521 = vunpack.c.l.b16 %v648
        %v1522 = vunpack.c.h.b16 %v648
        %v1523 = vunpack.c.l.b16 %v649
        %v1524 = vunpack.c.h.b16 %v649
        %v1525 = vunpack.c.l.b16 %v650
        %v1526 = vunpack.c.h.b16 %v650
        %v1527 = vunpack.c.l.b16 %v651
        %v1528 = vunpack.c.h.b16 %v651
        %v1529 = vunpack.c.l.b16 %v652
        %v1530 = vunpack.c.h.b16 %v652
        %v1531 = vunpack.c.l.b16 %v653
        %v1532 = vunpack.c.h.b16 %v653
        %v1533 = vunpack.c.l.b16 %v654
        %v1534 = vunpack.c.h.b16 %v654
        %v1535 = vunpack.c.l.b16 %v655
        %v1536 = vunpack.c.h.b16 %v655
        %v1537 = vunpack.c.l.b16 %v656
        %v1538 = vunpack.c.h.b16 %v656
        %v1539 = vunpack.c.l.b16 %v657
        %v1540 = vunpack.c.h.b16 %v657
        %v1541 = vunpack.c.l.b16 %v658
        %v1542 = vunpack.c.h.b16 %v658
        %v1543 = vunpack.c.l.b16 %v659
        %v1544 = vunpack.c.h.b16 %v659
        %v1545 = vunpack.c.l.b16 %v660
        %v1546 = vunpack.c.h.b16 %v660
        %v1547 = vunpack.c.l.b16 %v661
        %v1548 = vunpack.c.h.b16 %v661
        %v1549 = vunpack.c.l.b16 %v662
        %v1550 = vunpack.c.h.b16 %v662
        %v1551 = vunpack.c.l.b16 %v663
        %v1552 = vunpack.c.h.b16 %v663
        %v1553 = vunpack.c.l.b16 %v664
        %v1554 = vunpack.c.h.b16 %v664
        %v1555 = vunpack.c.l.b16 %v665
        %v1556 = vunpack.c.h.b16 %v665
        %v1557 = vunpack.c.l.b16 %v666
        %v1558 = vunpack.c.h.b16 %v666
        %v1559 = vunpack.c.l.b16 %v667
        %v1560 = vunpack.c.h.b16 %v667
        %v1561 = vunpack.c.l.b16 %v668
        %v1562 = vunpack.c.h.b16 %v668
        %v1563 = vunpack.c.l.b16 %v669
        %v1564 = vunpack.c.h.b16 %v669
        %v1565 = vunpack.c.l.b16 %v670
        %v1566 = vunpack.c.h.b16 %v670
        %v1567 = vpack.c.b16 %v1063, %v1055
        %v1568 = vpack.c.b16 %v1064, %v1056
        %v1569 = vpack.c.b16 %v1065, %v1057
        %v1570 = vpack.c.b16 %v1066, %v1058
        %v1571 = vpack.c.b16 %v1067, %v1059
        %v1572 = vpack.c.b16 %v1068, %v1060
        %v1573 = vpack.c.b16 %v1069, %v1061
        %v1574 = vpack.c.b16 %v1070, %v1062
        %v1575 = vpack.c.b16 %v1079, %v1071
        %v1576 = vpack.c.b16 %v1080, %v1072
        %v1577 = vpack.c.b16 %v1081, %v1073
        %v1578 = vpack.c.b16 %v1082, %v1074
        %v1579 = vpack.c.b16 %v1083, %v1075
        %v1580 = vpack.c.b16 %v1084, %v1076
        %v1581 = vpack.c.b16 %v1085, %v1077
        %v1582 = vpack.c.b16 %v1086, %v1078
        %v1583 = vpack.c.b16 %v1095, %v1087
        %v1584 = vpack.c.b16 %v1096, %v1088
        %v1585 = vpack.c.b16 %v1097, %v1089
        %v1586 = vpack.c.b16 %v1098, %v1090
        %v1587 = vpack.c.b16 %v1099, %v1091
        %v1588 = vpack.c.b16 %v1100, %v1092
        %v1589 = vpack.c.b16 %v1101, %v1093
        %v1590 = vpack.c.b16 %v1102, %v1094
        %v1591 = vpack.c.b16 %v1111, %v1103
        %v1592 = vpack.c.b16 %v1112, %v1104
        %v1593 = vpack.c.b16 %v1113, %v1105
        %v1594 = vpack.c.b16 %v1114, %v1106
        %v1595 = vpack.c.b16 %v1115, %v1107
        %v1596 = vpack.c.b16 %v1116, %v1108
        %v1597 = vpack.c.b16 %v1117, %v1109
        %v1598 = vpack.c.b16 %v1118, %v1110
        %v1599 = vpack.c.b16 %v1127, %v1119
        %v1600 = vpack.c.b16 %v1128, %v1120
        %v1601 = vpack.c.b16 %v1129, %v1121
        %v1602 = vpack.c.b16 %v1130, %v1122
        %v1603 = vpack.c.b16 %v1131, %v1123
        %v1604 = vpack.c.b16 %v1132, %v1124
        %v1605 = vpack.c.b16 %v1133, %v1125
        %v1606 = vpack.c.b16 %v1134, %v1126
        %v1607 = vpack.c.b16 %v1143, %v1135
        %v1608 = vpack.c.b16 %v1144, %v1136
        %v1609 = vpack.c.b16 %v1145, %v1137
        %v1610 = vpack.c.b16 %v1146, %v1138
        %v1611 = vpack.c.b16 %v1147, %v1139
        %v1612 = vpack.c.b16 %v1148, %v1140
        %v1613 = vpack.c.b16 %v1149, %v1141
        %v1614 = vpack.c.b16 %v1150, %v1142
        %v1615 = vpack.c.b16 %v1159, %v1151
        %v1616 = vpack.c.b16 %v1160, %v1152
        %v1617 = vpack.c.b16 %v1161, %v1153
        %v1618 = vpack.c.b16 %v1162, %v1154
        %v1619 = vpack.c.b16 %v1163, %v1155
        %v1620 = vpack.c.b16 %v1164, %v1156
        %v1621 = vpack.c.b16 %v1165, %v1157
        %v1622 = vpack.c.b16 %v1166, %v1158
        %v1623 = vpack.c.b16 %v1175, %v1167
        %v1624 = vpack.c.b16 %v1176, %v1168
        %v1625 = vpack.c.b16 %v1177, %v1169
        %v1626 = vpack.c.b16 %v1178, %v1170
        %v1627 = vpack.c.b16 %v1179, %v1171
        %v1628 = vpack.c.b16 %v1180, %v1172
        %v1629 = vpack.c.b16 %v1181, %v1173
        %v1630 = vpack.c.b16 %v1182, %v1174
        %v1631 = vpack.c.b16 %v1191, %v1183
        %v1632 = vpack.c.b16 %v1192, %v1184
        %v1633 = vpack.c.b16 %v1193, %v1185
        %v1634 = vpack.c.b16 %v1194, %v1186
        %v1635 = vpack.c.b16 %v1195, %v1187
        %v1636 = vpack.c.b16 %v1196, %v1188
        %v1637 = vpack.c.b16 %v1197, %v1189
        %v1638 = vpack.c.b16 %v1198, %v1190
        %v1639 = vpack.c.b16 %v1207, %v1199
        %v1640 = vpack.c.b16 %v1208, %v1200
        %v1641 = vpack.c.b16 %v1209, %v1201
        %v1642 = vpack.c.b16 %v1210, %v1202
        %v1643 = vpack.c.b16 %v1211, %v1203
        %v1644 = vpack.c.b16 %v1212, %v1204
        %v1645 = vpack.c.b16 %v1213, %v1205
        %v1646 = vpack.c.b16 %v1214, %v1206
        %v1647 = vpack.c.b16 %v1223, %v1215
        %v1648 = vpack.c.b16 %v1224, %v1216
        %v1649 = vpack.c.b16 %v1225, %v1217
        %v1650 = vpack.c.b16 %v1226, %v1218
        %v1651 = vpack.c.b16 %v1227, %v1219
        %v1652 = vpack.c.b16 %v1228, %v1220
        %v1653 = vpack.c.b16 %v1229, %v1221
        %v1654 = vpack.c.b16 %v1230, %v1222
        %v1655 = vpack.c.b16 %v1239, %v1231
        %v1656 = vpack.c.b16 %v1240, %v1232
        %v1657 = vpack.c.b16 %v1241, %v1233
        %v1658 = vpack.c.b16 %v1242, %v1234
        %v1659 = vpack.c.b16 %v1243, %v1235
        %v1660 = vpack.c.b16 %v1244, %v1236
        %v1661 = vpack.c.b16 %v1245, %v1237
        %v1662 = vpack.c.b16 %v1246, %v1238
        %v1663 = vpack.c.b16 %v1255, %v1247
        %v1664 = vpack.c.b16 %v1256, %v1248
        %v1665 = vpack.c.b16 %v1257, %v1249
        %v1666 = vpack.c.b16 %v1258, %v1250
        %v1667 = vpack.c.b16 %v1259, %v1251
        %v1668 = vpack.c.b16 %v1260, %v1252
        %v1669 = vpack.c.b16 %v1261, %v1253
        %v1670 = vpack.c.b16 %v1262, %v1254
        %v1671 = vpack.c.b16 %v1271, %v1263
        %v1672 = vpack.c.b16 %v1272, %v1264
        %v1673 = vpack.c.b16 %v1273, %v1265
        %v1674 = vpack.c.b16 %v1274, %v1266
        %v1675 = vpack.c.b16 %v1275, %v1267
        %v1676 = vpack.c.b16 %v1276, %v1268
        %v1677 = vpack.c.b16 %v1277, %v1269
        %v1678 = vpack.c.b16 %v1278, %v1270
        %v1679 = vpack.c.b16 %v1287, %v1279
        %v1680 = vpack.c.b16 %v1288, %v1280
        %v1681 = vpack.c.b16 %v1289, %v1281
        %v1682 = vpack.c.b16 %v1290, %v1282
        %v1683 = vpack.c.b16 %v1291, %v1283
        %v1684 = vpack.c.b16 %v1292, %v1284
        %v1685 = vpack.c.b16 %v1293, %v1285
        %v1686 = vpack.c.b16 %v1294, %v1286
        %v1687 = vpack.c.b16 %v1303, %v1295
        %v1688 = vpack.c.b16 %v1304, %v1296
        %v1689 = vpack.c.b16 %v1305, %v1297
        %v1690 = vpack.c.b16 %v1306, %v1298
        %v1691 = vpack.c.b16 %v1307, %v1299
        %v1692 = vpack.c.b16 %v1308, %v1300
        %v1693 = vpack.c.b16 %v1309, %v1301
        %v1694 = vpack.c.b16 %v1310, %v1302
        %v1695 = vpack.c.b16 %v1319, %v1311
        %v1696 = vpack.c.b16 %v1320, %v1312
        %v1697 = vpack.c.b16 %v1321, %v1313
        %v1698 = vpack.c.b16 %v1322, %v1314
        %v1699 = vpack.c.b16 %v1323, %v1315
        %v1700 = vpack.c.b16 %v1324, %v1316
        %v1701 = vpack.c.b16 %v1325, %v1317
        %v1702 = vpack.c.b16 %v1326, %v1318
        %v1703 = vpack.c.b16 %v1335, %v1327
        %v1704 = vpack.c.b16 %v1336, %v1328
        %v1705 = vpack.c.b16 %v1337, %v1329
        %v1706 = vpack.c.b16 %v1338, %v1330
        %v1707 = vpack.c.b16 %v1339, %v1331
        %v1708 = vpack.c.b16 %v1340, %v1332
        %v1709 = vpack.c.b16 %v1341, %v1333
        %v1710 = vpack.c.b16 %v1342, %v1334
        %v1711 = vpack.c.b16 %v1351, %v1343
        %v1712 = vpack.c.b16 %v1352, %v1344
        %v1713 = vpack.c.b16 %v1353, %v1345
        %v1714 = vpack.c.b16 %v1354, %v1346
        %v1715 = vpack.c.b16 %v1355, %v1347
        %v1716 = vpack.c.b16 %v1356, %v1348
        %v1717 = vpack.c.b16 %v1357, %v1349
        %v1718 = vpack.c.b16 %v1358, %v1350
        %v1719 = vpack.c.b16 %v1367, %v1359
        %v1720 = vpack.c.b16 %v1368, %v1360
        %v1721 = vpack.c.b16 %v1369, %v1361
        %v1722 = vpack.c.b16 %v1370, %v1362
        %v1723 = vpack.c.b16 %v1371, %v1363
        %v1724 = vpack.c.b16 %v1372, %v1364
        %v1725 = vpack.c.b16 %v1373, %v1365
        %v1726 = vpack.c.b16 %v1374, %v1366
        %v1727 = vpack.c.b16 %v1383, %v1375
        %v1728 = vpack.c.b16 %v1384, %v1376
        %v1729 = vpack.c.b16 %v1385, %v1377
        %v1730 = vpack.c.b16 %v1386, %v1378
        %v1731 = vpack.c.b16 %v1387, %v1379
        %v1732 = vpack.c.b16 %v1388, %v1380
        %v1733 = vpack.c.b16 %v1389, %v1381
        %v1734 = vpack.c.b16 %v1390, %v1382
        %v1735 = vpack.c.b16 %v1399, %v1391
        %v1736 = vpack.c.b16 %v1400, %v1392
        %v1737 = vpack.c.b16 %v1401, %v1393
        %v1738 = vpack.c.b16 %v1402, %v1394
        %v1739 = vpack.c.b16 %v1403, %v1395
        %v1740 = vpack.c.b16 %v1404, %v1396
        %v1741 = vpack.c.b16 %v1405, %v1397
        %v1742 = vpack.c.b16 %v1406, %v1398
        %v1743 = vpack.c.b16 %v1415, %v1407
        %v1744 = vpack.c.b16 %v1416, %v1408
        %v1745 = vpack.c.b16 %v1417, %v1409
        %v1746 = vpack.c.b16 %v1418, %v1410
        %v1747 = vpack.c.b16 %v1419, %v1411
        %v1748 = vpack.c.b16 %v1420, %v1412
        %v1749 = vpack.c.b16 %v1421, %v1413
        %v1750 = vpack.c.b16 %v1422, %v1414
        %v1751 = vpack.c.b16 %v1431, %v1423
        %v1752 = vpack.c.b16 %v1432, %v1424
        %v1753 = vpack.c.b16 %v1433, %v1425
        %v1754 = vpack.c.b16 %v1434, %v1426
        %v1755 = vpack.c.b16 %v1435, %v1427
        %v1756 = vpack.c.b16 %v1436, %v1428
        %v1757 = vpack.c.b16 %v1437, %v1429
        %v1758 = vpack.c.b16 %v1438, %v1430
        %v1759 = vpack.c.b16 %v1447, %v1439
        %v1760 = vpack.c.b16 %v1448, %v1440
        %v1761 = vpack.c.b16 %v1449, %v1441
        %v1762 = vpack.c.b16 %v1450, %v1442
        %v1763 = vpack.c.b16 %v1451, %v1443
        %v1764 = vpack.c.b16 %v1452, %v1444
        %v1765 = vpack.c.b16 %v1453, %v1445
        %v1766 = vpack.c.b16 %v1454, %v1446
        %v1767 = vpack.c.b16 %v1463, %v1455
        %v1768 = vpack.c.b16 %v1464, %v1456
        %v1769 = vpack.c.b16 %v1465, %v1457
        %v1770 = vpack.c.b16 %v1466, %v1458
        %v1771 = vpack.c.b16 %v1467, %v1459
        %v1772 = vpack.c.b16 %v1468, %v1460
        %v1773 = vpack.c.b16 %v1469, %v1461
        %v1774 = vpack.c.b16 %v1470, %v1462
        %v1775 = vpack.c.b16 %v1479, %v1471
        %v1776 = vpack.c.b16 %v1480, %v1472
        %v1777 = vpack.c.b16 %v1481, %v1473
        %v1778 = vpack.c.b16 %v1482, %v1474
        %v1779 = vpack.c.b16 %v1483, %v1475
        %v1780 = vpack.c.b16 %v1484, %v1476
        %v1781 = vpack.c.b16 %v1485, %v1477
        %v1782 = vpack.c.b16 %v1486, %v1478
        %v1783 = vpack.c.b16 %v1495, %v1487
        %v1784 = vpack.c.b16 %v1496, %v1488
        %v1785 = vpack.c.b16 %v1497, %v1489
        %v1786 = vpack.c.b16 %v1498, %v1490
        %v1787 = vpack.c.b16 %v1499, %v1491
        %v1788 = vpack.c.b16 %v1500, %v1492
        %v1789 = vpack.c.b16 %v1501, %v1493
        %v1790 = vpack.c.b16 %v1502, %v1494
        %v1791 = vpack.c.b16 %v1511, %v1503
        %v1792 = vpack.c.b16 %v1512, %v1504
        %v1793 = vpack.c.b16 %v1513, %v1505
        %v1794 = vpack.c.b16 %v1514, %v1506
        %v1795 = vpack.c.b16 %v1515, %v1507
        %v1796 = vpack.c.b16 %v1516, %v1508
        %v1797 = vpack.c.b16 %v1517, %v1509
        %v1798 = vpack.c.b16 %v1518, %v1510
        %v1799 = vpack.c.b16 %v1527, %v1519
        %v1800 = vpack.c.b16 %v1528, %v1520
        %v1801 = vpack.c.b16 %v1529, %v1521
        %v1802 = vpack.c.b16 %v1530, %v1522
        %v1803 = vpack.c.b16 %v1531, %v1523
        %v1804 = vpack.c.b16 %v1532, %v1524
        %v1805 = vpack.c.b16 %v1533, %v1525
        %v1806 = vpack.c.b16 %v1534, %v1526
        %v1807 = vpack.c.b16 %v1543, %v1535
        %v1808 = vpack.c.b16 %v1544, %v1536
        %v1809 = vpack.c.b16 %v1545, %v1537
        %v1810 = vpack.c.b16 %v1546, %v1538
        %v1811 = vpack.c.b16 %v1547, %v1539
        %v1812 = vpack.c.b16 %v1548, %v1540
        %v1813 = vpack.c.b16 %v1549, %v1541
        %v1814 = vpack.c.b16 %v1550, %v1542
        %v1815 = vpack.c.b16 %v1559, %v1551
        %v1816 = vpack.c.b16 %v1560, %v1552
        %v1817 = vpack.c.b16 %v1561, %v1553
        %v1818 = vpack.c.b16 %v1562, %v1554
        %v1819 = vpack.c.b16 %v1563, %v1555
        %v1820 = vpack.c.b16 %v1564, %v1556
        %v1821 = vpack.c.b16 %v1565, %v1557
        %v1822 = vpack.c.b16 %v1566, %v1558
        %v2207 = vunpack.c.l.b16 %v671
        %v2208 = vunpack.c.l.b16 %v672
        %v2209 = vunpack.c.l.b16 %v673
        %v2210 = vunpack.c.l.b16 %v674
        %v2211 = vunpack.c.l.b16 %v675
        %v2212 = vunpack.c.l.b16 %v676
        %v2213 = vunpack.c.l.b16 %v677
        %v2214 = vunpack.c.l.b16 %v678
        %v2215 = vunpack.c.l.b16 %v679
        %v2216 = vunpack.c.l.b16 %v680
        %v2217 = vunpack.c.l.b16 %v681
        %v2218 = vunpack.c.l.b16 %v682
        %v2219 = vunpack.c.l.b16 %v683
        %v2220 = vunpack.c.l.b16 %v684
        %v2221 = vunpack.c.l.b16 %v685
        %v2222 = vunpack.c.l.b16 %v686
        %v2223 = vunpack.c.l.b16 %v687
        %v2224 = vunpack.c.l.b16 %v688
        %v2225 = vunpack.c.l.b16 %v689
        %v2226 = vunpack.c.l.b16 %v690
        %v2227 = vunpack.c.l.b16 %v691
        %v2228 = vunpack.c.l.b16 %v692
        %v2229 = vunpack.c.l.b16 %v693
        %v2230 = vunpack.c.l.b16 %v694
        %v2231 = vunpack.c.l.b16 %v695
        %v2232 = vunpack.c.l.b16 %v696
        %v2233 = vunpack.c.l.b16 %v697
        %v2234 = vunpack.c.l.b16 %v698
        %v2235 = vunpack.c.l.b16 %v699
        %v2236 = vunpack.c.l.b16 %v700
        %v2237 = vunpack.c.l.b16 %v701
        %v2238 = vunpack.c.l.b16 %v702
        %v2239 = vunpack.c.l.b16 %v703
        %v2240 = vunpack.c.l.b16 %v704
        %v2241 = vunpack.c.l.b16 %v705
        %v2242 = vunpack.c.l.b16 %v706
        %v2243 = vunpack.c.l.b16 %v707
        %v2244 = vunpack.c.l.b16 %v708
        %v2245 = vunpack.c.l.b16 %v709
        %v2246 = vunpack.c.l.b16 %v710
        %v2247 = vunpack.c.l.b16 %v711
        %v2248 = vunpack.c.l.b16 %v712
        %v2249 = vunpack.c.l.b16 %v713
        %v2250 = vunpack.c.l.b16 %v714
        %v2251 = vunpack.c.l.b16 %v715
        %v2252 = vunpack.c.l.b16 %v716
        %v2253 = vunpack.c.l.b16 %v717
        %v2254 = vunpack.c.l.b16 %v718
        %v2255 = vunpack.c.l.b16 %v719
        %v2256 = vunpack.c.l.b16 %v720
        %v2257 = vunpack.c.l.b16 %v721
        %v2258 = vunpack.c.l.b16 %v722
        %v2259 = vunpack.c.l.b16 %v723
        %v2260 = vunpack.c.l.b16 %v724
        %v2261 = vunpack.c.l.b16 %v725
        %v2262 = vunpack.c.l.b16 %v726
        %v2263 = vunpack.c.l.b16 %v727
        %v2264 = vunpack.c.l.b16 %v728
        %v2265 = vunpack.c.l.b16 %v729
        %v2266 = vunpack.c.l.b16 %v730
        %v2267 = vunpack.c.l.b16 %v731
        %v2268 = vunpack.c.l.b16 %v732
        %v2269 = vunpack.c.l.b16 %v733
        %v2270 = vunpack.c.l.b16 %v734
        %v2271 = vunpack.c.l.b16 %v735
        %v2272 = vunpack.c.l.b16 %v736
        %v2273 = vunpack.c.l.b16 %v737
        %v2274 = vunpack.c.l.b16 %v738
        %v2275 = vunpack.c.l.b16 %v739
        %v2276 = vunpack.c.l.b16 %v740
        %v2277 = vunpack.c.l.b16 %v741
        %v2278 = vunpack.c.l.b16 %v742
        %v2279 = vunpack.c.l.b16 %v743
        %v2280 = vunpack.c.l.b16 %v744
        %v2281 = vunpack.c.l.b16 %v745
        %v2282 = vunpack.c.l.b16 %v746
        %v2283 = vunpack.c.l.b16 %v747
        %v2284 = vunpack.c.l.b16 %v748
        %v2285 = vunpack.c.l.b16 %v749
        %v2286 = vunpack.c.l.b16 %v750
        %v2287 = vunpack.c.l.b16 %v751
        %v2288 = vunpack.c.l.b16 %v752
        %v2289 = vunpack.c.l.b16 %v753
        %v2290 = vunpack.c.l.b16 %v754
        %v2291 = vunpack.c.l.b16 %v755
        %v2292 = vunpack.c.l.b16 %v756
        %v2293 = vunpack.c.l.b16 %v757
        %v2294 = vunpack.c.l.b16 %v758
        %v2295 = vunpack.c.l.b16 %v759
        %v2296 = vunpack.c.l.b16 %v760
        %v2297 = vunpack.c.l.b16 %v761
        %v2298 = vunpack.c.l.b16 %v762
        %v2299 = vunpack.c.l.b16 %v763
        %v2300 = vunpack.c.l.b16 %v764
        %v2301 = vunpack.c.l.b16 %v765
        %v2302 = vunpack.c.l.b16 %v766
        %v2303 = vunpack.c.l.b16 %v767
        %v2304 = vunpack.c.l.b16 %v768
        %v2305 = vunpack.c.l.b16 %v769
        %v2306 = vunpack.c.l.b16 %v770
        %v2307 = vunpack.c.l.b16 %v771
        %v2308 = vunpack.c.l.b16 %v772
        %v2309 = vunpack.c.l.b16 %v773
        %v2310 = vunpack.c.l.b16 %v774
        %v2311 = vunpack.c.l.b16 %v775
        %v2312 = vunpack.c.l.b16 %v776
        %v2313 = vunpack.c.l.b16 %v777
        %v2314 = vunpack.c.l.b16 %v778
        %v2315 = vunpack.c.l.b16 %v779
        %v2316 = vunpack.c.l.b16 %v780
        %v2317 = vunpack.c.l.b16 %v781
        %v2318 = vunpack.c.l.b16 %v782
        %v2319 = vunpack.c.l.b16 %v783
        %v2320 = vunpack.c.l.b16 %v784
        %v2321 = vunpack.c.l.b16 %v785
        %v2322 = vunpack.c.l.b16 %v786
        %v2323 = vunpack.c.l.b16 %v787
        %v2324 = vunpack.c.l.b16 %v788
        %v2325 = vunpack.c.l.b16 %v789
        %v2326 = vunpack.c.l.b16 %v790
        %v2327 = vunpack.c.l.b16 %v791
        %v2328 = vunpack.c.l.b16 %v792
        %v2329 = vunpack.c.l.b16 %v793
        %v2330 = vunpack.c.l.b16 %v794
        %v2331 = vunpack.c.l.b16 %v795
        %v2332 = vunpack.c.l.b16 %v796
        %v2333 = vunpack.c.l.b16 %v797
        %v2334 = vunpack.c.l.b16 %v798
        %v2335 = vpack.c.b16 %v2208, %v2207
        %v2336 = vpack.c.b16 %v2210, %v2209
        %v2337 = vpack.c.b16 %v2212, %v2211
        %v2338 = vpack.c.b16 %v2214, %v2213
        %v2339 = vpack.c.b16 %v2216, %v2215
        %v2340 = vpack.c.b16 %v2218, %v2217
        %v2341 = vpack.c.b16 %v2220, %v2219
        %v2342 = vpack.c.b16 %v2222, %v2221
        %v2343 = vpack.c.b16 %v2224, %v2223
        %v2344 = vpack.c.b16 %v2226, %v2225
        %v2345 = vpack.c.b16 %v2228, %v2227
        %v2346 = vpack.c.b16 %v2230, %v2229
        %v2347 = vpack.c.b16 %v2232, %v2231
        %v2348 = vpack.c.b16 %v2234, %v2233
        %v2349 = vpack.c.b16 %v2236, %v2235
        %v2350 = vpack.c.b16 %v2238, %v2237
        %v2351 = vpack.c.b16 %v2240, %v2239
        %v2352 = vpack.c.b16 %v2242, %v2241
        %v2353 = vpack.c.b16 %v2244, %v2243
        %v2354 = vpack.c.b16 %v2246, %v2245
        %v2355 = vpack.c.b16 %v2248, %v2247
        %v2356 = vpack.c.b16 %v2250, %v2249
        %v2357 = vpack.c.b16 %v2252, %v2251
        %v2358 = vpack.c.b16 %v2254, %v2253
        %v2359 = vpack.c.b16 %v2256, %v2255
        %v2360 = vpack.c.b16 %v2258, %v2257
        %v2361 = vpack.c.b16 %v2260, %v2259
        %v2362 = vpack.c.b16 %v2262, %v2261
        %v2363 = vpack.c.b16 %v2264, %v2263
        %v2364 = vpack.c.b16 %v2266, %v2265
        %v2365 = vpack.c.b16 %v2268, %v2267
        %v2366 = vpack.c.b16 %v2270, %v2269
        %v2367 = vpack.c.b16 %v2272, %v2271
        %v2368 = vpack.c.b16 %v2274, %v2273
        %v2369 = vpack.c.b16 %v2276, %v2275
        %v2370 = vpack.c.b16 %v2278, %v2277
        %v2371 = vpack.c.b16 %v2280, %v2279
        %v2372 = vpack.c.b16 %v2282, %v2281
        %v2373 = vpack.c.b16 %v2284, %v2283
        %v2374 = vpack.c.b16 %v2286, %v2285
        %v2375 = vpack.c.b16 %v2288, %v2287
        %v2376 = vpack.c.b16 %v2290, %v2289
        %v2377 = vpack.c.b16 %v2292, %v2291
        %v2378 = vpack.c.b16 %v2294, %v2293
        %v2379 = vpack.c.b16 %v2296, %v2295
        %v2380 = vpack.c.b16 %v2298, %v2297
        %v2381 = vpack.c.b16 %v2300, %v2299
        %v2382 = vpack.c.b16 %v2302, %v2301
        %v2383 = vpack.c.b16 %v2304, %v2303
        %v2384 = vpack.c.b16 %v2306, %v2305
        %v2385 = vpack.c.b16 %v2308, %v2307
        %v2386 = vpack.c.b16 %v2310, %v2309
        %v2387 = vpack.c.b16 %v2312, %v2311
        %v2388 = vpack.c.b16 %v2314, %v2313
        %v2389 = vpack.c.b16 %v2316, %v2315
        %v2390 = vpack.c.b16 %v2318, %v2317
        %v2391 = vpack.c.b16 %v2320, %v2319
        %v2392 = vpack.c.b16 %v2322, %v2321
        %v2393 = vpack.c.b16 %v2324, %v2323
        %v2394 = vpack.c.b16 %v2326, %v2325
        %v2395 = vpack.c.b16 %v2328, %v2327
        %v2396 = vpack.c.b16 %v2330, %v2329
        %v2397 = vpack.c.b16 %v2332, %v2331
        %v2398 = vpack.c.b16 %v2334, %v2333
        %2463 = vmatpush.bf16.msra.mxu0 %v2342
        %2464 = vmatpush.bf16.msra.mxu0 %v2341
        %2465 = vmatpush.bf16.msra.mxu0 %v2340
        %2466 = vmatpush.bf16.msra.mxu0 %v2339
        %2467 = vmatpush.bf16.msra.mxu0 %v2338
        %2468 = vmatpush.bf16.msra.mxu0 %v2337
        %2469 = vmatpush.bf16.msra.mxu0 %v2336
        %2470 = vmatpush.bf16.msra.mxu0 %v2335
        %2471 = vmatmul.bf16.gmra.mxu0 %v1567
        %v2472 = vpop.f32.mrf.mxu0
        %v2473 = vadd.f32 0.0, %v2472
        %v2474 = vpop.f32.mrf.mxu0
        %v2475 = vadd.f32 0.0, %v2474
        %2476 = vmatmul.bf16.gmra.mxu0 %v1575
        %v2477 = vpop.f32.mrf.mxu0
        %v2478 = vadd.f32 0.0, %v2477
        %v2479 = vpop.f32.mrf.mxu0
        %v2480 = vadd.f32 0.0, %v2479
        %2481 = vmatmul.bf16.gmra.mxu0 %v1583
        %v2482 = vpop.f32.mrf.mxu0
        %v2483 = vadd.f32 0.0, %v2482
        %v2484 = vpop.f32.mrf.mxu0
        %v2485 = vadd.f32 0.0, %v2484
        %2486 = vmatmul.bf16.gmra.mxu0 %v1591
        %v2487 = vpop.f32.mrf.mxu0
        %v2488 = vadd.f32 0.0, %v2487
        %v2489 = vpop.f32.mrf.mxu0
        %v2490 = vadd.f32 0.0, %v2489
        %2491 = vmatmul.bf16.gmra.mxu0 %v1599
        %v2492 = vpop.f32.mrf.mxu0
        %v2493 = vadd.f32 0.0, %v2492
        %v2494 = vpop.f32.mrf.mxu0
        %v2495 = vadd.f32 0.0, %v2494
        %2496 = vmatmul.bf16.gmra.mxu0 %v1607
        %v2497 = vpop.f32.mrf.mxu0
        %v2498 = vadd.f32 0.0, %v2497
        %v2499 = vpop.f32.mrf.mxu0
        %v2500 = vadd.f32 0.0, %v2499
        %2501 = vmatmul.bf16.gmra.mxu0 %v1615
        %v2502 = vpop.f32.mrf.mxu0
        %v2503 = vadd.f32 0.0, %v2502
        %v2504 = vpop.f32.mrf.mxu0
        %v2505 = vadd.f32 0.0, %v2504
        %2506 = vmatmul.bf16.gmra.mxu0 %v1623
        %v2507 = vpop.f32.mrf.mxu0
        %v2508 = vadd.f32 0.0, %v2507
        %v2509 = vpop.f32.mrf.mxu0
        %v2510 = vadd.f32 0.0, %v2509
        %2511 = vmatmul.bf16.gmra.mxu0 %v1631
        %v2512 = vpop.f32.mrf.mxu0
        %v2513 = vadd.f32 0.0, %v2512
        %v2514 = vpop.f32.mrf.mxu0
        %v2515 = vadd.f32 0.0, %v2514
        %2516 = vmatmul.bf16.gmra.mxu0 %v1639
        %v2517 = vpop.f32.mrf.mxu0
        %v2518 = vadd.f32 0.0, %v2517
        %v2519 = vpop.f32.mrf.mxu0
        %v2520 = vadd.f32 0.0, %v2519
        %2521 = vmatmul.bf16.gmra.mxu0 %v1647
        %v2522 = vpop.f32.mrf.mxu0
        %v2523 = vadd.f32 0.0, %v2522
        %v2524 = vpop.f32.mrf.mxu0
        %v2525 = vadd.f32 0.0, %v2524
        %2526 = vmatmul.bf16.gmra.mxu0 %v1655
        %v2527 = vpop.f32.mrf.mxu0
        %v2528 = vadd.f32 0.0, %v2527
        %v2529 = vpop.f32.mrf.mxu0
        %v2530 = vadd.f32 0.0, %v2529
        %2531 = vmatmul.bf16.gmra.mxu0 %v1663
        %v2532 = vpop.f32.mrf.mxu0
        %v2533 = vadd.f32 0.0, %v2532
        %v2534 = vpop.f32.mrf.mxu0
        %v2535 = vadd.f32 0.0, %v2534
        %2536 = vmatmul.bf16.gmra.mxu0 %v1671
        %v2537 = vpop.f32.mrf.mxu0
        %v2538 = vadd.f32 0.0, %v2537
        %v2539 = vpop.f32.mrf.mxu0
        %v2540 = vadd.f32 0.0, %v2539
        %2541 = vmatmul.bf16.gmra.mxu0 %v1679
        %v2542 = vpop.f32.mrf.mxu0
        %v2543 = vadd.f32 0.0, %v2542
        %v2544 = vpop.f32.mrf.mxu0
        %v2545 = vadd.f32 0.0, %v2544
        %2546 = vmatmul.bf16.gmra.mxu0 %v1687
        %v2547 = vpop.f32.mrf.mxu0
        %v2548 = vadd.f32 0.0, %v2547
        %v2549 = vpop.f32.mrf.mxu0
        %v2550 = vadd.f32 0.0, %v2549
        %2551 = vmatmul.bf16.gmra.mxu0 %v1695
        %v2552 = vpop.f32.mrf.mxu0
        %v2553 = vadd.f32 0.0, %v2552
        %v2554 = vpop.f32.mrf.mxu0
        %v2555 = vadd.f32 0.0, %v2554
        %2556 = vmatmul.bf16.gmra.mxu0 %v1703
        %v2557 = vpop.f32.mrf.mxu0
        %v2558 = vadd.f32 0.0, %v2557
        %v2559 = vpop.f32.mrf.mxu0
        %v2560 = vadd.f32 0.0, %v2559
        %2561 = vmatmul.bf16.gmra.mxu0 %v1711
        %v2562 = vpop.f32.mrf.mxu0
        %v2563 = vadd.f32 0.0, %v2562
        %v2564 = vpop.f32.mrf.mxu0
        %v2565 = vadd.f32 0.0, %v2564
        %2566 = vmatmul.bf16.gmra.mxu0 %v1719
        %v2567 = vpop.f32.mrf.mxu0
        %v2568 = vadd.f32 0.0, %v2567
        %v2569 = vpop.f32.mrf.mxu0
        %v2570 = vadd.f32 0.0, %v2569
        %2571 = vmatmul.bf16.gmra.mxu0 %v1727
        %v2572 = vpop.f32.mrf.mxu0
        %v2573 = vadd.f32 0.0, %v2572
        %v2574 = vpop.f32.mrf.mxu0
        %v2575 = vadd.f32 0.0, %v2574
        %2576 = vmatmul.bf16.gmra.mxu0 %v1735
        %v2577 = vpop.f32.mrf.mxu0
        %v2578 = vadd.f32 0.0, %v2577
        %v2579 = vpop.f32.mrf.mxu0
        %v2580 = vadd.f32 0.0, %v2579
        %2581 = vmatmul.bf16.gmra.mxu0 %v1743
        %v2582 = vpop.f32.mrf.mxu0
        %v2583 = vadd.f32 0.0, %v2582
        %v2584 = vpop.f32.mrf.mxu0
        %v2585 = vadd.f32 0.0, %v2584
        %2586 = vmatmul.bf16.gmra.mxu0 %v1751
        %v2587 = vpop.f32.mrf.mxu0
        %v2588 = vadd.f32 0.0, %v2587
        %v2589 = vpop.f32.mrf.mxu0
        %v2590 = vadd.f32 0.0, %v2589
        %2591 = vmatmul.bf16.gmra.mxu0 %v1759
        %v2592 = vpop.f32.mrf.mxu0
        %v2593 = vadd.f32 0.0, %v2592
        %v2594 = vpop.f32.mrf.mxu0
        %v2595 = vadd.f32 0.0, %v2594
        %2596 = vmatmul.bf16.gmra.mxu0 %v1767
        %v2597 = vpop.f32.mrf.mxu0
        %v2598 = vadd.f32 0.0, %v2597
        %v2599 = vpop.f32.mrf.mxu0
        %v2600 = vadd.f32 0.0, %v2599
        %2601 = vmatmul.bf16.gmra.mxu0 %v1775
        %v2602 = vpop.f32.mrf.mxu0
        %v2603 = vadd.f32 0.0, %v2602
        %v2604 = vpop.f32.mrf.mxu0
        %v2605 = vadd.f32 0.0, %v2604
        %2606 = vmatmul.bf16.gmra.mxu0 %v1783
        %v2607 = vpop.f32.mrf.mxu0
        %v2608 = vadd.f32 0.0, %v2607
        %v2609 = vpop.f32.mrf.mxu0
        %v2610 = vadd.f32 0.0, %v2609
        %2611 = vmatmul.bf16.gmra.mxu0 %v1791
        %v2612 = vpop.f32.mrf.mxu0
        %v2613 = vadd.f32 0.0, %v2612
        %v2614 = vpop.f32.mrf.mxu0
        %v2615 = vadd.f32 0.0, %v2614
        %2616 = vmatmul.bf16.gmra.mxu0 %v1799
        %v2617 = vpop.f32.mrf.mxu0
        %v2618 = vadd.f32 0.0, %v2617
        %v2619 = vpop.f32.mrf.mxu0
        %v2620 = vadd.f32 0.0, %v2619
        %2621 = vmatmul.bf16.gmra.mxu0 %v1807
        %v2622 = vpop.f32.mrf.mxu0
        %v2623 = vadd.f32 0.0, %v2622
        %v2624 = vpop.f32.mrf.mxu0
        %v2625 = vadd.f32 0.0, %v2624
        %2626 = vmatmul.bf16.gmra.mxu0 %v1815
        %v2627 = vpop.f32.mrf.mxu0
        %v2628 = vadd.f32 0.0, %v2627
        %v2629 = vpop.f32.mrf.mxu0
        %v2630 = vadd.f32 0.0, %v2629
        %2631 = vdwg.mxu0
        %2632 = vmatpush.bf16.msra.mxu0 %v2350
        %2633 = vmatpush.bf16.msra.mxu0 %v2349
        %2634 = vmatpush.bf16.msra.mxu0 %v2348
        %2635 = vmatpush.bf16.msra.mxu0 %v2347
        %2636 = vmatpush.bf16.msra.mxu0 %v2346
        %2637 = vmatpush.bf16.msra.mxu0 %v2345
        %2638 = vmatpush.bf16.msra.mxu0 %v2344
        %2639 = vmatpush.bf16.msra.mxu0 %v2343
        %2640 = vmatmul.bf16.gmra.mxu0 %v1568
        %v2641 = vpop.f32.mrf.mxu0
        %v2642 = vadd.f32 %v2473, %v2641
        %v2643 = vpop.f32.mrf.mxu0
        %v2644 = vadd.f32 %v2475, %v2643
        %2645 = vmatmul.bf16.gmra.mxu0 %v1576
        %v2646 = vpop.f32.mrf.mxu0
        %v2647 = vadd.f32 %v2478, %v2646
        %v2648 = vpop.f32.mrf.mxu0
        %v2649 = vadd.f32 %v2480, %v2648
        %2650 = vmatmul.bf16.gmra.mxu0 %v1584
        %v2651 = vpop.f32.mrf.mxu0
        %v2652 = vadd.f32 %v2483, %v2651
        %v2653 = vpop.f32.mrf.mxu0
        %v2654 = vadd.f32 %v2485, %v2653
        %2655 = vmatmul.bf16.gmra.mxu0 %v1592
        %v2656 = vpop.f32.mrf.mxu0
        %v2657 = vadd.f32 %v2488, %v2656
        %v2658 = vpop.f32.mrf.mxu0
        %v2659 = vadd.f32 %v2490, %v2658
        %2660 = vmatmul.bf16.gmra.mxu0 %v1600
        %v2661 = vpop.f32.mrf.mxu0
        %v2662 = vadd.f32 %v2493, %v2661
        %v2663 = vpop.f32.mrf.mxu0
        %v2664 = vadd.f32 %v2495, %v2663
        %2665 = vmatmul.bf16.gmra.mxu0 %v1608
        %v2666 = vpop.f32.mrf.mxu0
        %v2667 = vadd.f32 %v2498, %v2666
        %v2668 = vpop.f32.mrf.mxu0
        %v2669 = vadd.f32 %v2500, %v2668
        %2670 = vmatmul.bf16.gmra.mxu0 %v1616
        %v2671 = vpop.f32.mrf.mxu0
        %v2672 = vadd.f32 %v2503, %v2671
        %v2673 = vpop.f32.mrf.mxu0
        %v2674 = vadd.f32 %v2505, %v2673
        %2675 = vmatmul.bf16.gmra.mxu0 %v1624
        %v2676 = vpop.f32.mrf.mxu0
        %v2677 = vadd.f32 %v2508, %v2676
        %v2678 = vpop.f32.mrf.mxu0
        %v2679 = vadd.f32 %v2510, %v2678
        %2680 = vmatmul.bf16.gmra.mxu0 %v1632
        %v2681 = vpop.f32.mrf.mxu0
        %v2682 = vadd.f32 %v2513, %v2681
        %v2683 = vpop.f32.mrf.mxu0
        %v2684 = vadd.f32 %v2515, %v2683
        %2685 = vmatmul.bf16.gmra.mxu0 %v1640
        %v2686 = vpop.f32.mrf.mxu0
        %v2687 = vadd.f32 %v2518, %v2686
        %v2688 = vpop.f32.mrf.mxu0
        %v2689 = vadd.f32 %v2520, %v2688
        %2690 = vmatmul.bf16.gmra.mxu0 %v1648
        %v2691 = vpop.f32.mrf.mxu0
        %v2692 = vadd.f32 %v2523, %v2691
        %v2693 = vpop.f32.mrf.mxu0
        %v2694 = vadd.f32 %v2525, %v2693
        %2695 = vmatmul.bf16.gmra.mxu0 %v1656
        %v2696 = vpop.f32.mrf.mxu0
        %v2697 = vadd.f32 %v2528, %v2696
        %v2698 = vpop.f32.mrf.mxu0
        %v2699 = vadd.f32 %v2530, %v2698
        %2700 = vmatmul.bf16.gmra.mxu0 %v1664
        %v2701 = vpop.f32.mrf.mxu0
        %v2702 = vadd.f32 %v2533, %v2701
        %v2703 = vpop.f32.mrf.mxu0
        %v2704 = vadd.f32 %v2535, %v2703
        %2705 = vmatmul.bf16.gmra.mxu0 %v1672
        %v2706 = vpop.f32.mrf.mxu0
        %v2707 = vadd.f32 %v2538, %v2706
        %v2708 = vpop.f32.mrf.mxu0
        %v2709 = vadd.f32 %v2540, %v2708
        %2710 = vmatmul.bf16.gmra.mxu0 %v1680
        %v2711 = vpop.f32.mrf.mxu0
        %v2712 = vadd.f32 %v2543, %v2711
        %v2713 = vpop.f32.mrf.mxu0
        %v2714 = vadd.f32 %v2545, %v2713
        %2715 = vmatmul.bf16.gmra.mxu0 %v1688
        %v2716 = vpop.f32.mrf.mxu0
        %v2717 = vadd.f32 %v2548, %v2716
        %v2718 = vpop.f32.mrf.mxu0
        %v2719 = vadd.f32 %v2550, %v2718
        %2720 = vmatmul.bf16.gmra.mxu0 %v1696
        %v2721 = vpop.f32.mrf.mxu0
        %v2722 = vadd.f32 %v2553, %v2721
        %v2723 = vpop.f32.mrf.mxu0
        %v2724 = vadd.f32 %v2555, %v2723
        %2725 = vmatmul.bf16.gmra.mxu0 %v1704
        %v2726 = vpop.f32.mrf.mxu0
        %v2727 = vadd.f32 %v2558, %v2726
        %v2728 = vpop.f32.mrf.mxu0
        %v2729 = vadd.f32 %v2560, %v2728
        %2730 = vmatmul.bf16.gmra.mxu0 %v1712
        %v2731 = vpop.f32.mrf.mxu0
        %v2732 = vadd.f32 %v2563, %v2731
        %v2733 = vpop.f32.mrf.mxu0
        %v2734 = vadd.f32 %v2565, %v2733
        %2735 = vmatmul.bf16.gmra.mxu0 %v1720
        %v2736 = vpop.f32.mrf.mxu0
        %v2737 = vadd.f32 %v2568, %v2736
        %v2738 = vpop.f32.mrf.mxu0
        %v2739 = vadd.f32 %v2570, %v2738
        %2740 = vmatmul.bf16.gmra.mxu0 %v1728
        %v2741 = vpop.f32.mrf.mxu0
        %v2742 = vadd.f32 %v2573, %v2741
        %v2743 = vpop.f32.mrf.mxu0
        %v2744 = vadd.f32 %v2575, %v2743
        %2745 = vmatmul.bf16.gmra.mxu0 %v1736
        %v2746 = vpop.f32.mrf.mxu0
        %v2747 = vadd.f32 %v2578, %v2746
        %v2748 = vpop.f32.mrf.mxu0
        %v2749 = vadd.f32 %v2580, %v2748
        %2750 = vmatmul.bf16.gmra.mxu0 %v1744
        %v2751 = vpop.f32.mrf.mxu0
        %v2752 = vadd.f32 %v2583, %v2751
        %v2753 = vpop.f32.mrf.mxu0
        %v2754 = vadd.f32 %v2585, %v2753
        %2755 = vmatmul.bf16.gmra.mxu0 %v1752
        %v2756 = vpop.f32.mrf.mxu0
        %v2757 = vadd.f32 %v2588, %v2756
        %v2758 = vpop.f32.mrf.mxu0
        %v2759 = vadd.f32 %v2590, %v2758
        %2760 = vmatmul.bf16.gmra.mxu0 %v1760
        %v2761 = vpop.f32.mrf.mxu0
        %v2762 = vadd.f32 %v2593, %v2761
        %v2763 = vpop.f32.mrf.mxu0
        %v2764 = vadd.f32 %v2595, %v2763
        %2765 = vmatmul.bf16.gmra.mxu0 %v1768
        %v2766 = vpop.f32.mrf.mxu0
        %v2767 = vadd.f32 %v2598, %v2766
        %v2768 = vpop.f32.mrf.mxu0
        %v2769 = vadd.f32 %v2600, %v2768
        %2770 = vmatmul.bf16.gmra.mxu0 %v1776
        %v2771 = vpop.f32.mrf.mxu0
        %v2772 = vadd.f32 %v2603, %v2771
        %v2773 = vpop.f32.mrf.mxu0
        %v2774 = vadd.f32 %v2605, %v2773
        %2775 = vmatmul.bf16.gmra.mxu0 %v1784
        %v2776 = vpop.f32.mrf.mxu0
        %v2777 = vadd.f32 %v2608, %v2776
        %v2778 = vpop.f32.mrf.mxu0
        %v2779 = vadd.f32 %v2610, %v2778
        %2780 = vmatmul.bf16.gmra.mxu0 %v1792
        %v2781 = vpop.f32.mrf.mxu0
        %v2782 = vadd.f32 %v2613, %v2781
        %v2783 = vpop.f32.mrf.mxu0
        %v2784 = vadd.f32 %v2615, %v2783
        %2785 = vmatmul.bf16.gmra.mxu0 %v1800
        %v2786 = vpop.f32.mrf.mxu0
        %v2787 = vadd.f32 %v2618, %v2786
        %v2788 = vpop.f32.mrf.mxu0
        %v2789 = vadd.f32 %v2620, %v2788
        %2790 = vmatmul.bf16.gmra.mxu0 %v1808
        %v2791 = vpop.f32.mrf.mxu0
        %v2792 = vadd.f32 %v2623, %v2791
        %v2793 = vpop.f32.mrf.mxu0
        %v2794 = vadd.f32 %v2625, %v2793
        %2795 = vmatmul.bf16.gmra.mxu0 %v1816
        %v2796 = vpop.f32.mrf.mxu0
        %v2797 = vadd.f32 %v2628, %v2796
        %v2798 = vpop.f32.mrf.mxu0
        %v2799 = vadd.f32 %v2630, %v2798
        %2800 = vdwg.mxu0
        %2801 = vmatpush.bf16.msra.mxu0 %v2358
        %2802 = vmatpush.bf16.msra.mxu0 %v2357
        %2803 = vmatpush.bf16.msra.mxu0 %v2356
        %2804 = vmatpush.bf16.msra.mxu0 %v2355
        %2805 = vmatpush.bf16.msra.mxu0 %v2354
        %2806 = vmatpush.bf16.msra.mxu0 %v2353
        %2807 = vmatpush.bf16.msra.mxu0 %v2352
        %2808 = vmatpush.bf16.msra.mxu0 %v2351
        %2809 = vmatmul.bf16.gmra.mxu0 %v1569
        %v2810 = vpop.f32.mrf.mxu0
        %v2811 = vadd.f32 %v2642, %v2810
        %v2812 = vpop.f32.mrf.mxu0
        %v2813 = vadd.f32 %v2644, %v2812
        %2814 = vmatmul.bf16.gmra.mxu0 %v1577
        %v2815 = vpop.f32.mrf.mxu0
        %v2816 = vadd.f32 %v2647, %v2815
        %v2817 = vpop.f32.mrf.mxu0
        %v2818 = vadd.f32 %v2649, %v2817
        %2819 = vmatmul.bf16.gmra.mxu0 %v1585
        %v2820 = vpop.f32.mrf.mxu0
        %v2821 = vadd.f32 %v2652, %v2820
        %v2822 = vpop.f32.mrf.mxu0
        %v2823 = vadd.f32 %v2654, %v2822
        %2824 = vmatmul.bf16.gmra.mxu0 %v1593
        %v2825 = vpop.f32.mrf.mxu0
        %v2826 = vadd.f32 %v2657, %v2825
        %v2827 = vpop.f32.mrf.mxu0
        %v2828 = vadd.f32 %v2659, %v2827
        %2829 = vmatmul.bf16.gmra.mxu0 %v1601
        %v2830 = vpop.f32.mrf.mxu0
        %v2831 = vadd.f32 %v2662, %v2830
        %v2832 = vpop.f32.mrf.mxu0
        %v2833 = vadd.f32 %v2664, %v2832
        %2834 = vmatmul.bf16.gmra.mxu0 %v1609
        %v2835 = vpop.f32.mrf.mxu0
        %v2836 = vadd.f32 %v2667, %v2835
        %v2837 = vpop.f32.mrf.mxu0
        %v2838 = vadd.f32 %v2669, %v2837
        %2839 = vmatmul.bf16.gmra.mxu0 %v1617
        %v2840 = vpop.f32.mrf.mxu0
        %v2841 = vadd.f32 %v2672, %v2840
        %v2842 = vpop.f32.mrf.mxu0
        %v2843 = vadd.f32 %v2674, %v2842
        %2844 = vmatmul.bf16.gmra.mxu0 %v1625
        %v2845 = vpop.f32.mrf.mxu0
        %v2846 = vadd.f32 %v2677, %v2845
        %v2847 = vpop.f32.mrf.mxu0
        %v2848 = vadd.f32 %v2679, %v2847
        %2849 = vmatmul.bf16.gmra.mxu0 %v1633
        %v2850 = vpop.f32.mrf.mxu0
        %v2851 = vadd.f32 %v2682, %v2850
        %v2852 = vpop.f32.mrf.mxu0
        %v2853 = vadd.f32 %v2684, %v2852
        %2854 = vmatmul.bf16.gmra.mxu0 %v1641
        %v2855 = vpop.f32.mrf.mxu0
        %v2856 = vadd.f32 %v2687, %v2855
        %v2857 = vpop.f32.mrf.mxu0
        %v2858 = vadd.f32 %v2689, %v2857
        %2859 = vmatmul.bf16.gmra.mxu0 %v1649
        %v2860 = vpop.f32.mrf.mxu0
        %v2861 = vadd.f32 %v2692, %v2860
        %v2862 = vpop.f32.mrf.mxu0
        %v2863 = vadd.f32 %v2694, %v2862
        %2864 = vmatmul.bf16.gmra.mxu0 %v1657
        %v2865 = vpop.f32.mrf.mxu0
        %v2866 = vadd.f32 %v2697, %v2865
        %v2867 = vpop.f32.mrf.mxu0
        %v2868 = vadd.f32 %v2699, %v2867
        %2869 = vmatmul.bf16.gmra.mxu0 %v1665
        %v2870 = vpop.f32.mrf.mxu0
        %v2871 = vadd.f32 %v2702, %v2870
        %v2872 = vpop.f32.mrf.mxu0
        %v2873 = vadd.f32 %v2704, %v2872
        %2874 = vmatmul.bf16.gmra.mxu0 %v1673
        %v2875 = vpop.f32.mrf.mxu0
        %v2876 = vadd.f32 %v2707, %v2875
        %v2877 = vpop.f32.mrf.mxu0
        %v2878 = vadd.f32 %v2709, %v2877
        %2879 = vmatmul.bf16.gmra.mxu0 %v1681
        %v2880 = vpop.f32.mrf.mxu0
        %v2881 = vadd.f32 %v2712, %v2880
        %v2882 = vpop.f32.mrf.mxu0
        %v2883 = vadd.f32 %v2714, %v2882
        %2884 = vmatmul.bf16.gmra.mxu0 %v1689
        %v2885 = vpop.f32.mrf.mxu0
        %v2886 = vadd.f32 %v2717, %v2885
        %v2887 = vpop.f32.mrf.mxu0
        %v2888 = vadd.f32 %v2719, %v2887
        %2889 = vmatmul.bf16.gmra.mxu0 %v1697
        %v2890 = vpop.f32.mrf.mxu0
        %v2891 = vadd.f32 %v2722, %v2890
        %v2892 = vpop.f32.mrf.mxu0
        %v2893 = vadd.f32 %v2724, %v2892
        %2894 = vmatmul.bf16.gmra.mxu0 %v1705
        %v2895 = vpop.f32.mrf.mxu0
        %v2896 = vadd.f32 %v2727, %v2895
        %v2897 = vpop.f32.mrf.mxu0
        %v2898 = vadd.f32 %v2729, %v2897
        %2899 = vmatmul.bf16.gmra.mxu0 %v1713
        %v2900 = vpop.f32.mrf.mxu0
        %v2901 = vadd.f32 %v2732, %v2900
        %v2902 = vpop.f32.mrf.mxu0
        %v2903 = vadd.f32 %v2734, %v2902
        %2904 = vmatmul.bf16.gmra.mxu0 %v1721
        %v2905 = vpop.f32.mrf.mxu0
        %v2906 = vadd.f32 %v2737, %v2905
        %v2907 = vpop.f32.mrf.mxu0
        %v2908 = vadd.f32 %v2739, %v2907
        %2909 = vmatmul.bf16.gmra.mxu0 %v1729
        %v2910 = vpop.f32.mrf.mxu0
        %v2911 = vadd.f32 %v2742, %v2910
        %v2912 = vpop.f32.mrf.mxu0
        %v2913 = vadd.f32 %v2744, %v2912
        %2914 = vmatmul.bf16.gmra.mxu0 %v1737
        %v2915 = vpop.f32.mrf.mxu0
        %v2916 = vadd.f32 %v2747, %v2915
        %v2917 = vpop.f32.mrf.mxu0
        %v2918 = vadd.f32 %v2749, %v2917
        %2919 = vmatmul.bf16.gmra.mxu0 %v1745
        %v2920 = vpop.f32.mrf.mxu0
        %v2921 = vadd.f32 %v2752, %v2920
        %v2922 = vpop.f32.mrf.mxu0
        %v2923 = vadd.f32 %v2754, %v2922
        %2924 = vmatmul.bf16.gmra.mxu0 %v1753
        %v2925 = vpop.f32.mrf.mxu0
        %v2926 = vadd.f32 %v2757, %v2925
        %v2927 = vpop.f32.mrf.mxu0
        %v2928 = vadd.f32 %v2759, %v2927
        %2929 = vmatmul.bf16.gmra.mxu0 %v1761
        %v2930 = vpop.f32.mrf.mxu0
        %v2931 = vadd.f32 %v2762, %v2930
        %v2932 = vpop.f32.mrf.mxu0
        %v2933 = vadd.f32 %v2764, %v2932
        %2934 = vmatmul.bf16.gmra.mxu0 %v1769
        %v2935 = vpop.f32.mrf.mxu0
        %v2936 = vadd.f32 %v2767, %v2935
        %v2937 = vpop.f32.mrf.mxu0
        %v2938 = vadd.f32 %v2769, %v2937
        %2939 = vmatmul.bf16.gmra.mxu0 %v1777
        %v2940 = vpop.f32.mrf.mxu0
        %v2941 = vadd.f32 %v2772, %v2940
        %v2942 = vpop.f32.mrf.mxu0
        %v2943 = vadd.f32 %v2774, %v2942
        %2944 = vmatmul.bf16.gmra.mxu0 %v1785
        %v2945 = vpop.f32.mrf.mxu0
        %v2946 = vadd.f32 %v2777, %v2945
        %v2947 = vpop.f32.mrf.mxu0
        %v2948 = vadd.f32 %v2779, %v2947
        %2949 = vmatmul.bf16.gmra.mxu0 %v1793
        %v2950 = vpop.f32.mrf.mxu0
        %v2951 = vadd.f32 %v2782, %v2950
        %v2952 = vpop.f32.mrf.mxu0
        %v2953 = vadd.f32 %v2784, %v2952
        %2954 = vmatmul.bf16.gmra.mxu0 %v1801
        %v2955 = vpop.f32.mrf.mxu0
        %v2956 = vadd.f32 %v2787, %v2955
        %v2957 = vpop.f32.mrf.mxu0
        %v2958 = vadd.f32 %v2789, %v2957
        %2959 = vmatmul.bf16.gmra.mxu0 %v1809
        %v2960 = vpop.f32.mrf.mxu0
        %v2961 = vadd.f32 %v2792, %v2960
        %v2962 = vpop.f32.mrf.mxu0
        %v2963 = vadd.f32 %v2794, %v2962
        %2964 = vmatmul.bf16.gmra.mxu0 %v1817
        %v2965 = vpop.f32.mrf.mxu0
        %v2966 = vadd.f32 %v2797, %v2965
        %v2967 = vpop.f32.mrf.mxu0
        %v2968 = vadd.f32 %v2799, %v2967
        %2969 = vdwg.mxu0
        %2970 = vmatpush.bf16.msra.mxu0 %v2366
        %2971 = vmatpush.bf16.msra.mxu0 %v2365
        %2972 = vmatpush.bf16.msra.mxu0 %v2364
        %2973 = vmatpush.bf16.msra.mxu0 %v2363
        %2974 = vmatpush.bf16.msra.mxu0 %v2362
        %2975 = vmatpush.bf16.msra.mxu0 %v2361
        %2976 = vmatpush.bf16.msra.mxu0 %v2360
        %2977 = vmatpush.bf16.msra.mxu0 %v2359
        %2978 = vmatmul.bf16.gmra.mxu0 %v1570
        %v2979 = vpop.f32.mrf.mxu0
        %v2980 = vadd.f32 %v2811, %v2979
        %v2981 = vpop.f32.mrf.mxu0
        %v2982 = vadd.f32 %v2813, %v2981
        %2983 = vmatmul.bf16.gmra.mxu0 %v1578
        %v2984 = vpop.f32.mrf.mxu0
        %v2985 = vadd.f32 %v2816, %v2984
        %v2986 = vpop.f32.mrf.mxu0
        %v2987 = vadd.f32 %v2818, %v2986
        %2988 = vmatmul.bf16.gmra.mxu0 %v1586
        %v2989 = vpop.f32.mrf.mxu0
        %v2990 = vadd.f32 %v2821, %v2989
        %v2991 = vpop.f32.mrf.mxu0
        %v2992 = vadd.f32 %v2823, %v2991
        %2993 = vmatmul.bf16.gmra.mxu0 %v1594
        %v2994 = vpop.f32.mrf.mxu0
        %v2995 = vadd.f32 %v2826, %v2994
        %v2996 = vpop.f32.mrf.mxu0
        %v2997 = vadd.f32 %v2828, %v2996
        %2998 = vmatmul.bf16.gmra.mxu0 %v1602
        %v2999 = vpop.f32.mrf.mxu0
        %v3000 = vadd.f32 %v2831, %v2999
        %v3001 = vpop.f32.mrf.mxu0
        %v3002 = vadd.f32 %v2833, %v3001
        %3003 = vmatmul.bf16.gmra.mxu0 %v1610
        %v3004 = vpop.f32.mrf.mxu0
        %v3005 = vadd.f32 %v2836, %v3004
        %v3006 = vpop.f32.mrf.mxu0
        %v3007 = vadd.f32 %v2838, %v3006
        %3008 = vmatmul.bf16.gmra.mxu0 %v1618
        %v3009 = vpop.f32.mrf.mxu0
        %v3010 = vadd.f32 %v2841, %v3009
        %v3011 = vpop.f32.mrf.mxu0
        %v3012 = vadd.f32 %v2843, %v3011
        %3013 = vmatmul.bf16.gmra.mxu0 %v1626
        %v3014 = vpop.f32.mrf.mxu0
        %v3015 = vadd.f32 %v2846, %v3014
        %v3016 = vpop.f32.mrf.mxu0
        %v3017 = vadd.f32 %v2848, %v3016
        %3018 = vmatmul.bf16.gmra.mxu0 %v1634
        %v3019 = vpop.f32.mrf.mxu0
        %v3020 = vadd.f32 %v2851, %v3019
        %v3021 = vpop.f32.mrf.mxu0
        %v3022 = vadd.f32 %v2853, %v3021
        %3023 = vmatmul.bf16.gmra.mxu0 %v1642
        %v3024 = vpop.f32.mrf.mxu0
        %v3025 = vadd.f32 %v2856, %v3024
        %v3026 = vpop.f32.mrf.mxu0
        %v3027 = vadd.f32 %v2858, %v3026
        %3028 = vmatmul.bf16.gmra.mxu0 %v1650
        %v3029 = vpop.f32.mrf.mxu0
        %v3030 = vadd.f32 %v2861, %v3029
        %v3031 = vpop.f32.mrf.mxu0
        %v3032 = vadd.f32 %v2863, %v3031
        %3033 = vmatmul.bf16.gmra.mxu0 %v1658
        %v3034 = vpop.f32.mrf.mxu0
        %v3035 = vadd.f32 %v2866, %v3034
        %v3036 = vpop.f32.mrf.mxu0
        %v3037 = vadd.f32 %v2868, %v3036
        %3038 = vmatmul.bf16.gmra.mxu0 %v1666
        %v3039 = vpop.f32.mrf.mxu0
        %v3040 = vadd.f32 %v2871, %v3039
        %v3041 = vpop.f32.mrf.mxu0
        %v3042 = vadd.f32 %v2873, %v3041
        %3043 = vmatmul.bf16.gmra.mxu0 %v1674
        %v3044 = vpop.f32.mrf.mxu0
        %v3045 = vadd.f32 %v2876, %v3044
        %v3046 = vpop.f32.mrf.mxu0
        %v3047 = vadd.f32 %v2878, %v3046
        %3048 = vmatmul.bf16.gmra.mxu0 %v1682
        %v3049 = vpop.f32.mrf.mxu0
        %v3050 = vadd.f32 %v2881, %v3049
        %v3051 = vpop.f32.mrf.mxu0
        %v3052 = vadd.f32 %v2883, %v3051
        %3053 = vmatmul.bf16.gmra.mxu0 %v1690
        %v3054 = vpop.f32.mrf.mxu0
        %v3055 = vadd.f32 %v2886, %v3054
        %v3056 = vpop.f32.mrf.mxu0
        %v3057 = vadd.f32 %v2888, %v3056
        %3058 = vmatmul.bf16.gmra.mxu0 %v1698
        %v3059 = vpop.f32.mrf.mxu0
        %v3060 = vadd.f32 %v2891, %v3059
        %v3061 = vpop.f32.mrf.mxu0
        %v3062 = vadd.f32 %v2893, %v3061
        %3063 = vmatmul.bf16.gmra.mxu0 %v1706
        %v3064 = vpop.f32.mrf.mxu0
        %v3065 = vadd.f32 %v2896, %v3064
        %v3066 = vpop.f32.mrf.mxu0
        %v3067 = vadd.f32 %v2898, %v3066
        %3068 = vmatmul.bf16.gmra.mxu0 %v1714
        %v3069 = vpop.f32.mrf.mxu0
        %v3070 = vadd.f32 %v2901, %v3069
        %v3071 = vpop.f32.mrf.mxu0
        %v3072 = vadd.f32 %v2903, %v3071
        %3073 = vmatmul.bf16.gmra.mxu0 %v1722
        %v3074 = vpop.f32.mrf.mxu0
        %v3075 = vadd.f32 %v2906, %v3074
        %v3076 = vpop.f32.mrf.mxu0
        %v3077 = vadd.f32 %v2908, %v3076
        %3078 = vmatmul.bf16.gmra.mxu0 %v1730
        %v3079 = vpop.f32.mrf.mxu0
        %v3080 = vadd.f32 %v2911, %v3079
        %v3081 = vpop.f32.mrf.mxu0
        %v3082 = vadd.f32 %v2913, %v3081
        %3083 = vmatmul.bf16.gmra.mxu0 %v1738
        %v3084 = vpop.f32.mrf.mxu0
        %v3085 = vadd.f32 %v2916, %v3084
        %v3086 = vpop.f32.mrf.mxu0
        %v3087 = vadd.f32 %v2918, %v3086
        %3088 = vmatmul.bf16.gmra.mxu0 %v1746
        %v3089 = vpop.f32.mrf.mxu0
        %v3090 = vadd.f32 %v2921, %v3089
        %v3091 = vpop.f32.mrf.mxu0
        %v3092 = vadd.f32 %v2923, %v3091
        %3093 = vmatmul.bf16.gmra.mxu0 %v1754
        %v3094 = vpop.f32.mrf.mxu0
        %v3095 = vadd.f32 %v2926, %v3094
        %v3096 = vpop.f32.mrf.mxu0
        %v3097 = vadd.f32 %v2928, %v3096
        %3098 = vmatmul.bf16.gmra.mxu0 %v1762
        %v3099 = vpop.f32.mrf.mxu0
        %v3100 = vadd.f32 %v2931, %v3099
        %v3101 = vpop.f32.mrf.mxu0
        %v3102 = vadd.f32 %v2933, %v3101
        %3103 = vmatmul.bf16.gmra.mxu0 %v1770
        %v3104 = vpop.f32.mrf.mxu0
        %v3105 = vadd.f32 %v2936, %v3104
        %v3106 = vpop.f32.mrf.mxu0
        %v3107 = vadd.f32 %v2938, %v3106
        %3108 = vmatmul.bf16.gmra.mxu0 %v1778
        %v3109 = vpop.f32.mrf.mxu0
        %v3110 = vadd.f32 %v2941, %v3109
        %v3111 = vpop.f32.mrf.mxu0
        %v3112 = vadd.f32 %v2943, %v3111
        %3113 = vmatmul.bf16.gmra.mxu0 %v1786
        %v3114 = vpop.f32.mrf.mxu0
        %v3115 = vadd.f32 %v2946, %v3114
        %v3116 = vpop.f32.mrf.mxu0
        %v3117 = vadd.f32 %v2948, %v3116
        %3118 = vmatmul.bf16.gmra.mxu0 %v1794
        %v3119 = vpop.f32.mrf.mxu0
        %v3120 = vadd.f32 %v2951, %v3119
        %v3121 = vpop.f32.mrf.mxu0
        %v3122 = vadd.f32 %v2953, %v3121
        %3123 = vmatmul.bf16.gmra.mxu0 %v1802
        %v3124 = vpop.f32.mrf.mxu0
        %v3125 = vadd.f32 %v2956, %v3124
        %v3126 = vpop.f32.mrf.mxu0
        %v3127 = vadd.f32 %v2958, %v3126
        %3128 = vmatmul.bf16.gmra.mxu0 %v1810
        %v3129 = vpop.f32.mrf.mxu0
        %v3130 = vadd.f32 %v2961, %v3129
        %v3131 = vpop.f32.mrf.mxu0
        %v3132 = vadd.f32 %v2963, %v3131
        %3133 = vmatmul.bf16.gmra.mxu0 %v1818
        %v3134 = vpop.f32.mrf.mxu0
        %v3135 = vadd.f32 %v2966, %v3134
        %v3136 = vpop.f32.mrf.mxu0
        %v3137 = vadd.f32 %v2968, %v3136
        %3138 = vdwg.mxu0
        %3139 = vmatpush.bf16.msra.mxu0 %v2374
        %3140 = vmatpush.bf16.msra.mxu0 %v2373
        %3141 = vmatpush.bf16.msra.mxu0 %v2372
        %3142 = vmatpush.bf16.msra.mxu0 %v2371
        %3143 = vmatpush.bf16.msra.mxu0 %v2370
        %3144 = vmatpush.bf16.msra.mxu0 %v2369
        %3145 = vmatpush.bf16.msra.mxu0 %v2368
        %3146 = vmatpush.bf16.msra.mxu0 %v2367
        %3147 = vmatmul.bf16.gmra.mxu0 %v1571
        %v3148 = vpop.f32.mrf.mxu0
        %v3149 = vadd.f32 %v2980, %v3148
        %v3150 = vpop.f32.mrf.mxu0
        %v3151 = vadd.f32 %v2982, %v3150
        %3152 = vmatmul.bf16.gmra.mxu0 %v1579
        %v3153 = vpop.f32.mrf.mxu0
        %v3154 = vadd.f32 %v2985, %v3153
        %v3155 = vpop.f32.mrf.mxu0
        %v3156 = vadd.f32 %v2987, %v3155
        %3157 = vmatmul.bf16.gmra.mxu0 %v1587
        %v3158 = vpop.f32.mrf.mxu0
        %v3159 = vadd.f32 %v2990, %v3158
        %v3160 = vpop.f32.mrf.mxu0
        %v3161 = vadd.f32 %v2992, %v3160
        %3162 = vmatmul.bf16.gmra.mxu0 %v1595
        %v3163 = vpop.f32.mrf.mxu0
        %v3164 = vadd.f32 %v2995, %v3163
        %v3165 = vpop.f32.mrf.mxu0
        %v3166 = vadd.f32 %v2997, %v3165
        %3167 = vmatmul.bf16.gmra.mxu0 %v1603
        %v3168 = vpop.f32.mrf.mxu0
        %v3169 = vadd.f32 %v3000, %v3168
        %v3170 = vpop.f32.mrf.mxu0
        %v3171 = vadd.f32 %v3002, %v3170
        %3172 = vmatmul.bf16.gmra.mxu0 %v1611
        %v3173 = vpop.f32.mrf.mxu0
        %v3174 = vadd.f32 %v3005, %v3173
        %v3175 = vpop.f32.mrf.mxu0
        %v3176 = vadd.f32 %v3007, %v3175
        %3177 = vmatmul.bf16.gmra.mxu0 %v1619
        %v3178 = vpop.f32.mrf.mxu0
        %v3179 = vadd.f32 %v3010, %v3178
        %v3180 = vpop.f32.mrf.mxu0
        %v3181 = vadd.f32 %v3012, %v3180
        %3182 = vmatmul.bf16.gmra.mxu0 %v1627
        %v3183 = vpop.f32.mrf.mxu0
        %v3184 = vadd.f32 %v3015, %v3183
        %v3185 = vpop.f32.mrf.mxu0
        %v3186 = vadd.f32 %v3017, %v3185
        %3187 = vmatmul.bf16.gmra.mxu0 %v1635
        %v3188 = vpop.f32.mrf.mxu0
        %v3189 = vadd.f32 %v3020, %v3188
        %v3190 = vpop.f32.mrf.mxu0
        %v3191 = vadd.f32 %v3022, %v3190
        %3192 = vmatmul.bf16.gmra.mxu0 %v1643
        %v3193 = vpop.f32.mrf.mxu0
        %v3194 = vadd.f32 %v3025, %v3193
        %v3195 = vpop.f32.mrf.mxu0
        %v3196 = vadd.f32 %v3027, %v3195
        %3197 = vmatmul.bf16.gmra.mxu0 %v1651
        %v3198 = vpop.f32.mrf.mxu0
        %v3199 = vadd.f32 %v3030, %v3198
        %v3200 = vpop.f32.mrf.mxu0
        %v3201 = vadd.f32 %v3032, %v3200
        %3202 = vmatmul.bf16.gmra.mxu0 %v1659
        %v3203 = vpop.f32.mrf.mxu0
        %v3204 = vadd.f32 %v3035, %v3203
        %v3205 = vpop.f32.mrf.mxu0
        %v3206 = vadd.f32 %v3037, %v3205
        %3207 = vmatmul.bf16.gmra.mxu0 %v1667
        %v3208 = vpop.f32.mrf.mxu0
        %v3209 = vadd.f32 %v3040, %v3208
        %v3210 = vpop.f32.mrf.mxu0
        %v3211 = vadd.f32 %v3042, %v3210
        %3212 = vmatmul.bf16.gmra.mxu0 %v1675
        %v3213 = vpop.f32.mrf.mxu0
        %v3214 = vadd.f32 %v3045, %v3213
        %v3215 = vpop.f32.mrf.mxu0
        %v3216 = vadd.f32 %v3047, %v3215
        %3217 = vmatmul.bf16.gmra.mxu0 %v1683
        %v3218 = vpop.f32.mrf.mxu0
        %v3219 = vadd.f32 %v3050, %v3218
        %v3220 = vpop.f32.mrf.mxu0
        %v3221 = vadd.f32 %v3052, %v3220
        %3222 = vmatmul.bf16.gmra.mxu0 %v1691
        %v3223 = vpop.f32.mrf.mxu0
        %v3224 = vadd.f32 %v3055, %v3223
        %v3225 = vpop.f32.mrf.mxu0
        %v3226 = vadd.f32 %v3057, %v3225
        %3227 = vmatmul.bf16.gmra.mxu0 %v1699
        %v3228 = vpop.f32.mrf.mxu0
        %v3229 = vadd.f32 %v3060, %v3228
        %v3230 = vpop.f32.mrf.mxu0
        %v3231 = vadd.f32 %v3062, %v3230
        %3232 = vmatmul.bf16.gmra.mxu0 %v1707
        %v3233 = vpop.f32.mrf.mxu0
        %v3234 = vadd.f32 %v3065, %v3233
        %v3235 = vpop.f32.mrf.mxu0
        %v3236 = vadd.f32 %v3067, %v3235
        %3237 = vmatmul.bf16.gmra.mxu0 %v1715
        %v3238 = vpop.f32.mrf.mxu0
        %v3239 = vadd.f32 %v3070, %v3238
        %v3240 = vpop.f32.mrf.mxu0
        %v3241 = vadd.f32 %v3072, %v3240
        %3242 = vmatmul.bf16.gmra.mxu0 %v1723
        %v3243 = vpop.f32.mrf.mxu0
        %v3244 = vadd.f32 %v3075, %v3243
        %v3245 = vpop.f32.mrf.mxu0
        %v3246 = vadd.f32 %v3077, %v3245
        %3247 = vmatmul.bf16.gmra.mxu0 %v1731
        %v3248 = vpop.f32.mrf.mxu0
        %v3249 = vadd.f32 %v3080, %v3248
        %v3250 = vpop.f32.mrf.mxu0
        %v3251 = vadd.f32 %v3082, %v3250
        %3252 = vmatmul.bf16.gmra.mxu0 %v1739
        %v3253 = vpop.f32.mrf.mxu0
        %v3254 = vadd.f32 %v3085, %v3253
        %v3255 = vpop.f32.mrf.mxu0
        %v3256 = vadd.f32 %v3087, %v3255
        %3257 = vmatmul.bf16.gmra.mxu0 %v1747
        %v3258 = vpop.f32.mrf.mxu0
        %v3259 = vadd.f32 %v3090, %v3258
        %v3260 = vpop.f32.mrf.mxu0
        %v3261 = vadd.f32 %v3092, %v3260
        %3262 = vmatmul.bf16.gmra.mxu0 %v1755
        %v3263 = vpop.f32.mrf.mxu0
        %v3264 = vadd.f32 %v3095, %v3263
        %v3265 = vpop.f32.mrf.mxu0
        %v3266 = vadd.f32 %v3097, %v3265
        %3267 = vmatmul.bf16.gmra.mxu0 %v1763
        %v3268 = vpop.f32.mrf.mxu0
        %v3269 = vadd.f32 %v3100, %v3268
        %v3270 = vpop.f32.mrf.mxu0
        %v3271 = vadd.f32 %v3102, %v3270
        %3272 = vmatmul.bf16.gmra.mxu0 %v1771
        %v3273 = vpop.f32.mrf.mxu0
        %v3274 = vadd.f32 %v3105, %v3273
        %v3275 = vpop.f32.mrf.mxu0
        %v3276 = vadd.f32 %v3107, %v3275
        %3277 = vmatmul.bf16.gmra.mxu0 %v1779
        %v3278 = vpop.f32.mrf.mxu0
        %v3279 = vadd.f32 %v3110, %v3278
        %v3280 = vpop.f32.mrf.mxu0
        %v3281 = vadd.f32 %v3112, %v3280
        %3282 = vmatmul.bf16.gmra.mxu0 %v1787
        %v3283 = vpop.f32.mrf.mxu0
        %v3284 = vadd.f32 %v3115, %v3283
        %v3285 = vpop.f32.mrf.mxu0
        %v3286 = vadd.f32 %v3117, %v3285
        %3287 = vmatmul.bf16.gmra.mxu0 %v1795
        %v3288 = vpop.f32.mrf.mxu0
        %v3289 = vadd.f32 %v3120, %v3288
        %v3290 = vpop.f32.mrf.mxu0
        %v3291 = vadd.f32 %v3122, %v3290
        %3292 = vmatmul.bf16.gmra.mxu0 %v1803
        %v3293 = vpop.f32.mrf.mxu0
        %v3294 = vadd.f32 %v3125, %v3293
        %v3295 = vpop.f32.mrf.mxu0
        %v3296 = vadd.f32 %v3127, %v3295
        %3297 = vmatmul.bf16.gmra.mxu0 %v1811
        %v3298 = vpop.f32.mrf.mxu0
        %v3299 = vadd.f32 %v3130, %v3298
        %v3300 = vpop.f32.mrf.mxu0
        %v3301 = vadd.f32 %v3132, %v3300
        %3302 = vmatmul.bf16.gmra.mxu0 %v1819
        %v3303 = vpop.f32.mrf.mxu0
        %v3304 = vadd.f32 %v3135, %v3303
        %v3305 = vpop.f32.mrf.mxu0
        %v3306 = vadd.f32 %v3137, %v3305
        %3307 = vdwg.mxu0
        %3308 = vmatpush.bf16.msra.mxu0 %v2382
        %3309 = vmatpush.bf16.msra.mxu0 %v2381
        %3310 = vmatpush.bf16.msra.mxu0 %v2380
        %3311 = vmatpush.bf16.msra.mxu0 %v2379
        %3312 = vmatpush.bf16.msra.mxu0 %v2378
        %3313 = vmatpush.bf16.msra.mxu0 %v2377
        %3314 = vmatpush.bf16.msra.mxu0 %v2376
        %3315 = vmatpush.bf16.msra.mxu0 %v2375
        %3316 = vmatmul.bf16.gmra.mxu0 %v1572
        %v3317 = vpop.f32.mrf.mxu0
        %v3318 = vadd.f32 %v3149, %v3317
        %v3319 = vpop.f32.mrf.mxu0
        %v3320 = vadd.f32 %v3151, %v3319
        %3321 = vmatmul.bf16.gmra.mxu0 %v1580
        %v3322 = vpop.f32.mrf.mxu0
        %v3323 = vadd.f32 %v3154, %v3322
        %v3324 = vpop.f32.mrf.mxu0
        %v3325 = vadd.f32 %v3156, %v3324
        %3326 = vmatmul.bf16.gmra.mxu0 %v1588
        %v3327 = vpop.f32.mrf.mxu0
        %v3328 = vadd.f32 %v3159, %v3327
        %v3329 = vpop.f32.mrf.mxu0
        %v3330 = vadd.f32 %v3161, %v3329
        %3331 = vmatmul.bf16.gmra.mxu0 %v1596
        %v3332 = vpop.f32.mrf.mxu0
        %v3333 = vadd.f32 %v3164, %v3332
        %v3334 = vpop.f32.mrf.mxu0
        %v3335 = vadd.f32 %v3166, %v3334
        %3336 = vmatmul.bf16.gmra.mxu0 %v1604
        %v3337 = vpop.f32.mrf.mxu0
        %v3338 = vadd.f32 %v3169, %v3337
        %v3339 = vpop.f32.mrf.mxu0
        %v3340 = vadd.f32 %v3171, %v3339
        %3341 = vmatmul.bf16.gmra.mxu0 %v1612
        %v3342 = vpop.f32.mrf.mxu0
        %v3343 = vadd.f32 %v3174, %v3342
        %v3344 = vpop.f32.mrf.mxu0
        %v3345 = vadd.f32 %v3176, %v3344
        %3346 = vmatmul.bf16.gmra.mxu0 %v1620
        %v3347 = vpop.f32.mrf.mxu0
        %v3348 = vadd.f32 %v3179, %v3347
        %v3349 = vpop.f32.mrf.mxu0
        %v3350 = vadd.f32 %v3181, %v3349
        %3351 = vmatmul.bf16.gmra.mxu0 %v1628
        %v3352 = vpop.f32.mrf.mxu0
        %v3353 = vadd.f32 %v3184, %v3352
        %v3354 = vpop.f32.mrf.mxu0
        %v3355 = vadd.f32 %v3186, %v3354
        %3356 = vmatmul.bf16.gmra.mxu0 %v1636
        %v3357 = vpop.f32.mrf.mxu0
        %v3358 = vadd.f32 %v3189, %v3357
        %v3359 = vpop.f32.mrf.mxu0
        %v3360 = vadd.f32 %v3191, %v3359
        %3361 = vmatmul.bf16.gmra.mxu0 %v1644
        %v3362 = vpop.f32.mrf.mxu0
        %v3363 = vadd.f32 %v3194, %v3362
        %v3364 = vpop.f32.mrf.mxu0
        %v3365 = vadd.f32 %v3196, %v3364
        %3366 = vmatmul.bf16.gmra.mxu0 %v1652
        %v3367 = vpop.f32.mrf.mxu0
        %v3368 = vadd.f32 %v3199, %v3367
        %v3369 = vpop.f32.mrf.mxu0
        %v3370 = vadd.f32 %v3201, %v3369
        %3371 = vmatmul.bf16.gmra.mxu0 %v1660
        %v3372 = vpop.f32.mrf.mxu0
        %v3373 = vadd.f32 %v3204, %v3372
        %v3374 = vpop.f32.mrf.mxu0
        %v3375 = vadd.f32 %v3206, %v3374
        %3376 = vmatmul.bf16.gmra.mxu0 %v1668
        %v3377 = vpop.f32.mrf.mxu0
        %v3378 = vadd.f32 %v3209, %v3377
        %v3379 = vpop.f32.mrf.mxu0
        %v3380 = vadd.f32 %v3211, %v3379
        %3381 = vmatmul.bf16.gmra.mxu0 %v1676
        %v3382 = vpop.f32.mrf.mxu0
        %v3383 = vadd.f32 %v3214, %v3382
        %v3384 = vpop.f32.mrf.mxu0
        %v3385 = vadd.f32 %v3216, %v3384
        %3386 = vmatmul.bf16.gmra.mxu0 %v1684
        %v3387 = vpop.f32.mrf.mxu0
        %v3388 = vadd.f32 %v3219, %v3387
        %v3389 = vpop.f32.mrf.mxu0
        %v3390 = vadd.f32 %v3221, %v3389
        %3391 = vmatmul.bf16.gmra.mxu0 %v1692
        %v3392 = vpop.f32.mrf.mxu0
        %v3393 = vadd.f32 %v3224, %v3392
        %v3394 = vpop.f32.mrf.mxu0
        %v3395 = vadd.f32 %v3226, %v3394
        %3396 = vmatmul.bf16.gmra.mxu0 %v1700
        %v3397 = vpop.f32.mrf.mxu0
        %v3398 = vadd.f32 %v3229, %v3397
        %v3399 = vpop.f32.mrf.mxu0
        %v3400 = vadd.f32 %v3231, %v3399
        %3401 = vmatmul.bf16.gmra.mxu0 %v1708
        %v3402 = vpop.f32.mrf.mxu0
        %v3403 = vadd.f32 %v3234, %v3402
        %v3404 = vpop.f32.mrf.mxu0
        %v3405 = vadd.f32 %v3236, %v3404
        %3406 = vmatmul.bf16.gmra.mxu0 %v1716
        %v3407 = vpop.f32.mrf.mxu0
        %v3408 = vadd.f32 %v3239, %v3407
        %v3409 = vpop.f32.mrf.mxu0
        %v3410 = vadd.f32 %v3241, %v3409
        %3411 = vmatmul.bf16.gmra.mxu0 %v1724
        %v3412 = vpop.f32.mrf.mxu0
        %v3413 = vadd.f32 %v3244, %v3412
        %v3414 = vpop.f32.mrf.mxu0
        %v3415 = vadd.f32 %v3246, %v3414
        %3416 = vmatmul.bf16.gmra.mxu0 %v1732
        %v3417 = vpop.f32.mrf.mxu0
        %v3418 = vadd.f32 %v3249, %v3417
        %v3419 = vpop.f32.mrf.mxu0
        %v3420 = vadd.f32 %v3251, %v3419
        %3421 = vmatmul.bf16.gmra.mxu0 %v1740
        %v3422 = vpop.f32.mrf.mxu0
        %v3423 = vadd.f32 %v3254, %v3422
        %v3424 = vpop.f32.mrf.mxu0
        %v3425 = vadd.f32 %v3256, %v3424
        %3426 = vmatmul.bf16.gmra.mxu0 %v1748
        %v3427 = vpop.f32.mrf.mxu0
        %v3428 = vadd.f32 %v3259, %v3427
        %v3429 = vpop.f32.mrf.mxu0
        %v3430 = vadd.f32 %v3261, %v3429
        %3431 = vmatmul.bf16.gmra.mxu0 %v1756
        %v3432 = vpop.f32.mrf.mxu0
        %v3433 = vadd.f32 %v3264, %v3432
        %v3434 = vpop.f32.mrf.mxu0
        %v3435 = vadd.f32 %v3266, %v3434
        %3436 = vmatmul.bf16.gmra.mxu0 %v1764
        %v3437 = vpop.f32.mrf.mxu0
        %v3438 = vadd.f32 %v3269, %v3437
        %v3439 = vpop.f32.mrf.mxu0
        %v3440 = vadd.f32 %v3271, %v3439
        %3441 = vmatmul.bf16.gmra.mxu0 %v1772
        %v3442 = vpop.f32.mrf.mxu0
        %v3443 = vadd.f32 %v3274, %v3442
        %v3444 = vpop.f32.mrf.mxu0
        %v3445 = vadd.f32 %v3276, %v3444
        %3446 = vmatmul.bf16.gmra.mxu0 %v1780
        %v3447 = vpop.f32.mrf.mxu0
        %v3448 = vadd.f32 %v3279, %v3447
        %v3449 = vpop.f32.mrf.mxu0
        %v3450 = vadd.f32 %v3281, %v3449
        %3451 = vmatmul.bf16.gmra.mxu0 %v1788
        %v3452 = vpop.f32.mrf.mxu0
        %v3453 = vadd.f32 %v3284, %v3452
        %v3454 = vpop.f32.mrf.mxu0
        %v3455 = vadd.f32 %v3286, %v3454
        %3456 = vmatmul.bf16.gmra.mxu0 %v1796
        %v3457 = vpop.f32.mrf.mxu0
        %v3458 = vadd.f32 %v3289, %v3457
        %v3459 = vpop.f32.mrf.mxu0
        %v3460 = vadd.f32 %v3291, %v3459
        %3461 = vmatmul.bf16.gmra.mxu0 %v1804
        %v3462 = vpop.f32.mrf.mxu0
        %v3463 = vadd.f32 %v3294, %v3462
        %v3464 = vpop.f32.mrf.mxu0
        %v3465 = vadd.f32 %v3296, %v3464
        %3466 = vmatmul.bf16.gmra.mxu0 %v1812
        %v3467 = vpop.f32.mrf.mxu0
        %v3468 = vadd.f32 %v3299, %v3467
        %v3469 = vpop.f32.mrf.mxu0
        %v3470 = vadd.f32 %v3301, %v3469
        %3471 = vmatmul.bf16.gmra.mxu0 %v1820
        %v3472 = vpop.f32.mrf.mxu0
        %v3473 = vadd.f32 %v3304, %v3472
        %v3474 = vpop.f32.mrf.mxu0
        %v3475 = vadd.f32 %v3306, %v3474
        %3476 = vdwg.mxu0
        %3477 = vmatpush.bf16.msra.mxu0 %v2390
        %3478 = vmatpush.bf16.msra.mxu0 %v2389
        %3479 = vmatpush.bf16.msra.mxu0 %v2388
        %3480 = vmatpush.bf16.msra.mxu0 %v2387
        %3481 = vmatpush.bf16.msra.mxu0 %v2386
        %3482 = vmatpush.bf16.msra.mxu0 %v2385
        %3483 = vmatpush.bf16.msra.mxu0 %v2384
        %3484 = vmatpush.bf16.msra.mxu0 %v2383
        %3485 = vmatmul.bf16.gmra.mxu0 %v1573
        %v3486 = vpop.f32.mrf.mxu0
        %v3487 = vadd.f32 %v3318, %v3486
        %v3488 = vpop.f32.mrf.mxu0
        %v3489 = vadd.f32 %v3320, %v3488
        %3490 = vmatmul.bf16.gmra.mxu0 %v1581
        %v3491 = vpop.f32.mrf.mxu0
        %v3492 = vadd.f32 %v3323, %v3491
        %v3493 = vpop.f32.mrf.mxu0
        %v3494 = vadd.f32 %v3325, %v3493
        %3495 = vmatmul.bf16.gmra.mxu0 %v1589
        %v3496 = vpop.f32.mrf.mxu0
        %v3497 = vadd.f32 %v3328, %v3496
        %v3498 = vpop.f32.mrf.mxu0
        %v3499 = vadd.f32 %v3330, %v3498
        %3500 = vmatmul.bf16.gmra.mxu0 %v1597
        %v3501 = vpop.f32.mrf.mxu0
        %v3502 = vadd.f32 %v3333, %v3501
        %v3503 = vpop.f32.mrf.mxu0
        %v3504 = vadd.f32 %v3335, %v3503
        %3505 = vmatmul.bf16.gmra.mxu0 %v1605
        %v3506 = vpop.f32.mrf.mxu0
        %v3507 = vadd.f32 %v3338, %v3506
        %v3508 = vpop.f32.mrf.mxu0
        %v3509 = vadd.f32 %v3340, %v3508
        %3510 = vmatmul.bf16.gmra.mxu0 %v1613
        %v3511 = vpop.f32.mrf.mxu0
        %v3512 = vadd.f32 %v3343, %v3511
        %v3513 = vpop.f32.mrf.mxu0
        %v3514 = vadd.f32 %v3345, %v3513
        %3515 = vmatmul.bf16.gmra.mxu0 %v1621
        %v3516 = vpop.f32.mrf.mxu0
        %v3517 = vadd.f32 %v3348, %v3516
        %v3518 = vpop.f32.mrf.mxu0
        %v3519 = vadd.f32 %v3350, %v3518
        %3520 = vmatmul.bf16.gmra.mxu0 %v1629
        %v3521 = vpop.f32.mrf.mxu0
        %v3522 = vadd.f32 %v3353, %v3521
        %v3523 = vpop.f32.mrf.mxu0
        %v3524 = vadd.f32 %v3355, %v3523
        %3525 = vmatmul.bf16.gmra.mxu0 %v1637
        %v3526 = vpop.f32.mrf.mxu0
        %v3527 = vadd.f32 %v3358, %v3526
        %v3528 = vpop.f32.mrf.mxu0
        %v3529 = vadd.f32 %v3360, %v3528
        %3530 = vmatmul.bf16.gmra.mxu0 %v1645
        %v3531 = vpop.f32.mrf.mxu0
        %v3532 = vadd.f32 %v3363, %v3531
        %v3533 = vpop.f32.mrf.mxu0
        %v3534 = vadd.f32 %v3365, %v3533
        %3535 = vmatmul.bf16.gmra.mxu0 %v1653
        %v3536 = vpop.f32.mrf.mxu0
        %v3537 = vadd.f32 %v3368, %v3536
        %v3538 = vpop.f32.mrf.mxu0
        %v3539 = vadd.f32 %v3370, %v3538
        %3540 = vmatmul.bf16.gmra.mxu0 %v1661
        %v3541 = vpop.f32.mrf.mxu0
        %v3542 = vadd.f32 %v3373, %v3541
        %v3543 = vpop.f32.mrf.mxu0
        %v3544 = vadd.f32 %v3375, %v3543
        %3545 = vmatmul.bf16.gmra.mxu0 %v1669
        %v3546 = vpop.f32.mrf.mxu0
        %v3547 = vadd.f32 %v3378, %v3546
        %v3548 = vpop.f32.mrf.mxu0
        %v3549 = vadd.f32 %v3380, %v3548
        %3550 = vmatmul.bf16.gmra.mxu0 %v1677
        %v3551 = vpop.f32.mrf.mxu0
        %v3552 = vadd.f32 %v3383, %v3551
        %v3553 = vpop.f32.mrf.mxu0
        %v3554 = vadd.f32 %v3385, %v3553
        %3555 = vmatmul.bf16.gmra.mxu0 %v1685
        %v3556 = vpop.f32.mrf.mxu0
        %v3557 = vadd.f32 %v3388, %v3556
        %v3558 = vpop.f32.mrf.mxu0
        %v3559 = vadd.f32 %v3390, %v3558
        %3560 = vmatmul.bf16.gmra.mxu0 %v1693
        %v3561 = vpop.f32.mrf.mxu0
        %v3562 = vadd.f32 %v3393, %v3561
        %v3563 = vpop.f32.mrf.mxu0
        %v3564 = vadd.f32 %v3395, %v3563
        %3565 = vmatmul.bf16.gmra.mxu0 %v1701
        %v3566 = vpop.f32.mrf.mxu0
        %v3567 = vadd.f32 %v3398, %v3566
        %v3568 = vpop.f32.mrf.mxu0
        %v3569 = vadd.f32 %v3400, %v3568
        %3570 = vmatmul.bf16.gmra.mxu0 %v1709
        %v3571 = vpop.f32.mrf.mxu0
        %v3572 = vadd.f32 %v3403, %v3571
        %v3573 = vpop.f32.mrf.mxu0
        %v3574 = vadd.f32 %v3405, %v3573
        %3575 = vmatmul.bf16.gmra.mxu0 %v1717
        %v3576 = vpop.f32.mrf.mxu0
        %v3577 = vadd.f32 %v3408, %v3576
        %v3578 = vpop.f32.mrf.mxu0
        %v3579 = vadd.f32 %v3410, %v3578
        %3580 = vmatmul.bf16.gmra.mxu0 %v1725
        %v3581 = vpop.f32.mrf.mxu0
        %v3582 = vadd.f32 %v3413, %v3581
        %v3583 = vpop.f32.mrf.mxu0
        %v3584 = vadd.f32 %v3415, %v3583
        %3585 = vmatmul.bf16.gmra.mxu0 %v1733
        %v3586 = vpop.f32.mrf.mxu0
        %v3587 = vadd.f32 %v3418, %v3586
        %v3588 = vpop.f32.mrf.mxu0
        %v3589 = vadd.f32 %v3420, %v3588
        %3590 = vmatmul.bf16.gmra.mxu0 %v1741
        %v3591 = vpop.f32.mrf.mxu0
        %v3592 = vadd.f32 %v3423, %v3591
        %v3593 = vpop.f32.mrf.mxu0
        %v3594 = vadd.f32 %v3425, %v3593
        %3595 = vmatmul.bf16.gmra.mxu0 %v1749
        %v3596 = vpop.f32.mrf.mxu0
        %v3597 = vadd.f32 %v3428, %v3596
        %v3598 = vpop.f32.mrf.mxu0
        %v3599 = vadd.f32 %v3430, %v3598
        %3600 = vmatmul.bf16.gmra.mxu0 %v1757
        %v3601 = vpop.f32.mrf.mxu0
        %v3602 = vadd.f32 %v3433, %v3601
        %v3603 = vpop.f32.mrf.mxu0
        %v3604 = vadd.f32 %v3435, %v3603
        %3605 = vmatmul.bf16.gmra.mxu0 %v1765
        %v3606 = vpop.f32.mrf.mxu0
        %v3607 = vadd.f32 %v3438, %v3606
        %v3608 = vpop.f32.mrf.mxu0
        %v3609 = vadd.f32 %v3440, %v3608
        %3610 = vmatmul.bf16.gmra.mxu0 %v1773
        %v3611 = vpop.f32.mrf.mxu0
        %v3612 = vadd.f32 %v3443, %v3611
        %v3613 = vpop.f32.mrf.mxu0
        %v3614 = vadd.f32 %v3445, %v3613
        %3615 = vmatmul.bf16.gmra.mxu0 %v1781
        %v3616 = vpop.f32.mrf.mxu0
        %v3617 = vadd.f32 %v3448, %v3616
        %v3618 = vpop.f32.mrf.mxu0
        %v3619 = vadd.f32 %v3450, %v3618
        %3620 = vmatmul.bf16.gmra.mxu0 %v1789
        %v3621 = vpop.f32.mrf.mxu0
        %v3622 = vadd.f32 %v3453, %v3621
        %v3623 = vpop.f32.mrf.mxu0
        %v3624 = vadd.f32 %v3455, %v3623
        %3625 = vmatmul.bf16.gmra.mxu0 %v1797
        %v3626 = vpop.f32.mrf.mxu0
        %v3627 = vadd.f32 %v3458, %v3626
        %v3628 = vpop.f32.mrf.mxu0
        %v3629 = vadd.f32 %v3460, %v3628
        %3630 = vmatmul.bf16.gmra.mxu0 %v1805
        %v3631 = vpop.f32.mrf.mxu0
        %v3632 = vadd.f32 %v3463, %v3631
        %v3633 = vpop.f32.mrf.mxu0
        %v3634 = vadd.f32 %v3465, %v3633
        %3635 = vmatmul.bf16.gmra.mxu0 %v1813
        %v3636 = vpop.f32.mrf.mxu0
        %v3637 = vadd.f32 %v3468, %v3636
        %v3638 = vpop.f32.mrf.mxu0
        %v3639 = vadd.f32 %v3470, %v3638
        %3640 = vmatmul.bf16.gmra.mxu0 %v1821
        %v3641 = vpop.f32.mrf.mxu0
        %v3642 = vadd.f32 %v3473, %v3641
        %v3643 = vpop.f32.mrf.mxu0
        %v3644 = vadd.f32 %v3475, %v3643
        %3645 = vdwg.mxu0
        %3646 = vmatpush.bf16.msra.mxu0 %v2398
        %3647 = vmatpush.bf16.msra.mxu0 %v2397
        %3648 = vmatpush.bf16.msra.mxu0 %v2396
        %3649 = vmatpush.bf16.msra.mxu0 %v2395
        %3650 = vmatpush.bf16.msra.mxu0 %v2394
        %3651 = vmatpush.bf16.msra.mxu0 %v2393
        %3652 = vmatpush.bf16.msra.mxu0 %v2392
        %3653 = vmatpush.bf16.msra.mxu0 %v2391
        %3654 = vmatmul.bf16.gmra.mxu0 %v1574
        %v3655 = vpop.f32.mrf.mxu0
        %v3656 = vadd.f32 %v3487, %v3655
        %v3657 = vpop.f32.mrf.mxu0
        %v3658 = vadd.f32 %v3489, %v3657
        %3659 = vmatmul.bf16.gmra.mxu0 %v1582
        %v3660 = vpop.f32.mrf.mxu0
        %v3661 = vadd.f32 %v3492, %v3660
        %v3662 = vpop.f32.mrf.mxu0
        %v3663 = vadd.f32 %v3494, %v3662
        %3664 = vmatmul.bf16.gmra.mxu0 %v1590
        %v3665 = vpop.f32.mrf.mxu0
        %v3666 = vadd.f32 %v3497, %v3665
        %v3667 = vpop.f32.mrf.mxu0
        %v3668 = vadd.f32 %v3499, %v3667
        %3669 = vmatmul.bf16.gmra.mxu0 %v1598
        %v3670 = vpop.f32.mrf.mxu0
        %v3671 = vadd.f32 %v3502, %v3670
        %v3672 = vpop.f32.mrf.mxu0
        %v3673 = vadd.f32 %v3504, %v3672
        %3674 = vmatmul.bf16.gmra.mxu0 %v1606
        %v3675 = vpop.f32.mrf.mxu0
        %v3676 = vadd.f32 %v3507, %v3675
        %v3677 = vpop.f32.mrf.mxu0
        %v3678 = vadd.f32 %v3509, %v3677
        %3679 = vmatmul.bf16.gmra.mxu0 %v1614
        %v3680 = vpop.f32.mrf.mxu0
        %v3681 = vadd.f32 %v3512, %v3680
        %v3682 = vpop.f32.mrf.mxu0
        %v3683 = vadd.f32 %v3514, %v3682
        %3684 = vmatmul.bf16.gmra.mxu0 %v1622
        %v3685 = vpop.f32.mrf.mxu0
        %v3686 = vadd.f32 %v3517, %v3685
        %v3687 = vpop.f32.mrf.mxu0
        %v3688 = vadd.f32 %v3519, %v3687
        %3689 = vmatmul.bf16.gmra.mxu0 %v1630
        %v3690 = vpop.f32.mrf.mxu0
        %v3691 = vadd.f32 %v3522, %v3690
        %v3692 = vpop.f32.mrf.mxu0
        %v3693 = vadd.f32 %v3524, %v3692
        %3694 = vmatmul.bf16.gmra.mxu0 %v1638
        %v3695 = vpop.f32.mrf.mxu0
        %v3696 = vadd.f32 %v3527, %v3695
        %v3697 = vpop.f32.mrf.mxu0
        %v3698 = vadd.f32 %v3529, %v3697
        %3699 = vmatmul.bf16.gmra.mxu0 %v1646
        %v3700 = vpop.f32.mrf.mxu0
        %v3701 = vadd.f32 %v3532, %v3700
        %v3702 = vpop.f32.mrf.mxu0
        %v3703 = vadd.f32 %v3534, %v3702
        %3704 = vmatmul.bf16.gmra.mxu0 %v1654
        %v3705 = vpop.f32.mrf.mxu0
        %v3706 = vadd.f32 %v3537, %v3705
        %v3707 = vpop.f32.mrf.mxu0
        %v3708 = vadd.f32 %v3539, %v3707
        %3709 = vmatmul.bf16.gmra.mxu0 %v1662
        %v3710 = vpop.f32.mrf.mxu0
        %v3711 = vadd.f32 %v3542, %v3710
        %v3712 = vpop.f32.mrf.mxu0
        %v3713 = vadd.f32 %v3544, %v3712
        %3714 = vmatmul.bf16.gmra.mxu0 %v1670
        %v3715 = vpop.f32.mrf.mxu0
        %v3716 = vadd.f32 %v3547, %v3715
        %v3717 = vpop.f32.mrf.mxu0
        %v3718 = vadd.f32 %v3549, %v3717
        %3719 = vmatmul.bf16.gmra.mxu0 %v1678
        %v3720 = vpop.f32.mrf.mxu0
        %v3721 = vadd.f32 %v3552, %v3720
        %v3722 = vpop.f32.mrf.mxu0
        %v3723 = vadd.f32 %v3554, %v3722
        %3724 = vmatmul.bf16.gmra.mxu0 %v1686
        %v3725 = vpop.f32.mrf.mxu0
        %v3726 = vadd.f32 %v3557, %v3725
        %v3727 = vpop.f32.mrf.mxu0
        %v3728 = vadd.f32 %v3559, %v3727
        %3729 = vmatmul.bf16.gmra.mxu0 %v1694
        %v3730 = vpop.f32.mrf.mxu0
        %v3731 = vadd.f32 %v3562, %v3730
        %v3732 = vpop.f32.mrf.mxu0
        %v3733 = vadd.f32 %v3564, %v3732
        %3734 = vmatmul.bf16.gmra.mxu0 %v1702
        %v3735 = vpop.f32.mrf.mxu0
        %v3736 = vadd.f32 %v3567, %v3735
        %v3737 = vpop.f32.mrf.mxu0
        %v3738 = vadd.f32 %v3569, %v3737
        %3739 = vmatmul.bf16.gmra.mxu0 %v1710
        %v3740 = vpop.f32.mrf.mxu0
        %v3741 = vadd.f32 %v3572, %v3740
        %v3742 = vpop.f32.mrf.mxu0
        %v3743 = vadd.f32 %v3574, %v3742
        %3744 = vmatmul.bf16.gmra.mxu0 %v1718
        %v3745 = vpop.f32.mrf.mxu0
        %v3746 = vadd.f32 %v3577, %v3745
        %v3747 = vpop.f32.mrf.mxu0
        %v3748 = vadd.f32 %v3579, %v3747
        %3749 = vmatmul.bf16.gmra.mxu0 %v1726
        %v3750 = vpop.f32.mrf.mxu0
        %v3751 = vadd.f32 %v3582, %v3750
        %v3752 = vpop.f32.mrf.mxu0
        %v3753 = vadd.f32 %v3584, %v3752
        %3754 = vmatmul.bf16.gmra.mxu0 %v1734
        %v3755 = vpop.f32.mrf.mxu0
        %v3756 = vadd.f32 %v3587, %v3755
        %v3757 = vpop.f32.mrf.mxu0
        %v3758 = vadd.f32 %v3589, %v3757
        %3759 = vmatmul.bf16.gmra.mxu0 %v1742
        %v3760 = vpop.f32.mrf.mxu0
        %v3761 = vadd.f32 %v3592, %v3760
        %v3762 = vpop.f32.mrf.mxu0
        %v3763 = vadd.f32 %v3594, %v3762
        %3764 = vmatmul.bf16.gmra.mxu0 %v1750
        %v3765 = vpop.f32.mrf.mxu0
        %v3766 = vadd.f32 %v3597, %v3765
        %v3767 = vpop.f32.mrf.mxu0
        %v3768 = vadd.f32 %v3599, %v3767
        %3769 = vmatmul.bf16.gmra.mxu0 %v1758
        %v3770 = vpop.f32.mrf.mxu0
        %v3771 = vadd.f32 %v3602, %v3770
        %v3772 = vpop.f32.mrf.mxu0
        %v3773 = vadd.f32 %v3604, %v3772
        %3774 = vmatmul.bf16.gmra.mxu0 %v1766
        %v3775 = vpop.f32.mrf.mxu0
        %v3776 = vadd.f32 %v3607, %v3775
        %v3777 = vpop.f32.mrf.mxu0
        %v3778 = vadd.f32 %v3609, %v3777
        %3779 = vmatmul.bf16.gmra.mxu0 %v1774
        %v3780 = vpop.f32.mrf.mxu0
        %v3781 = vadd.f32 %v3612, %v3780
        %v3782 = vpop.f32.mrf.mxu0
        %v3783 = vadd.f32 %v3614, %v3782
        %3784 = vmatmul.bf16.gmra.mxu0 %v1782
        %v3785 = vpop.f32.mrf.mxu0
        %v3786 = vadd.f32 %v3617, %v3785
        %v3787 = vpop.f32.mrf.mxu0
        %v3788 = vadd.f32 %v3619, %v3787
        %3789 = vmatmul.bf16.gmra.mxu0 %v1790
        %v3790 = vpop.f32.mrf.mxu0
        %v3791 = vadd.f32 %v3622, %v3790
        %v3792 = vpop.f32.mrf.mxu0
        %v3793 = vadd.f32 %v3624, %v3792
        %3794 = vmatmul.bf16.gmra.mxu0 %v1798
        %v3795 = vpop.f32.mrf.mxu0
        %v3796 = vadd.f32 %v3627, %v3795
        %v3797 = vpop.f32.mrf.mxu0
        %v3798 = vadd.f32 %v3629, %v3797
        %3799 = vmatmul.bf16.gmra.mxu0 %v1806
        %v3800 = vpop.f32.mrf.mxu0
        %v3801 = vadd.f32 %v3632, %v3800
        %v3802 = vpop.f32.mrf.mxu0
        %v3803 = vadd.f32 %v3634, %v3802
        %3804 = vmatmul.bf16.gmra.mxu0 %v1814
        %v3805 = vpop.f32.mrf.mxu0
        %v3806 = vadd.f32 %v3637, %v3805
        %v3807 = vpop.f32.mrf.mxu0
        %v3808 = vadd.f32 %v3639, %v3807
        %3809 = vmatmul.bf16.gmra.mxu0 %v1822
        %v3810 = vpop.f32.mrf.mxu0
        %v3811 = vadd.f32 %v3642, %v3810
        %v3812 = vpop.f32.mrf.mxu0
        %v3813 = vadd.f32 %v3644, %v3812
        %3814 = vdwg.mxu0
        %v3815 = vadd.f32 %v351, %v3656
        %v3816 = vadd.f32 %v352, %v3658
        %v3817 = vadd.f32 %v353, %v3661
        %v3818 = vadd.f32 %v354, %v3663
        %v3819 = vadd.f32 %v355, %v3666
        %v3820 = vadd.f32 %v356, %v3668
        %v3821 = vadd.f32 %v357, %v3671
        %v3822 = vadd.f32 %v358, %v3673
        %v3823 = vadd.f32 %v359, %v3676
        %v3824 = vadd.f32 %v360, %v3678
        %v3825 = vadd.f32 %v361, %v3681
        %v3826 = vadd.f32 %v362, %v3683
        %v3827 = vadd.f32 %v363, %v3686
        %v3828 = vadd.f32 %v364, %v3688
        %v3829 = vadd.f32 %v365, %v3691
        %v3830 = vadd.f32 %v366, %v3693
        %v3831 = vadd.f32 %v367, %v3696
        %v3832 = vadd.f32 %v368, %v3698
        %v3833 = vadd.f32 %v369, %v3701
        %v3834 = vadd.f32 %v370, %v3703
        %v3835 = vadd.f32 %v371, %v3706
        %v3836 = vadd.f32 %v372, %v3708
        %v3837 = vadd.f32 %v373, %v3711
        %v3838 = vadd.f32 %v374, %v3713
        %v3839 = vadd.f32 %v375, %v3716
        %v3840 = vadd.f32 %v376, %v3718
        %v3841 = vadd.f32 %v377, %v3721
        %v3842 = vadd.f32 %v378, %v3723
        %v3843 = vadd.f32 %v379, %v3726
        %v3844 = vadd.f32 %v380, %v3728
        %v3845 = vadd.f32 %v381, %v3731
        %v3846 = vadd.f32 %v382, %v3733
        %v3847 = vadd.f32 %v383, %v3736
        %v3848 = vadd.f32 %v384, %v3738
        %v3849 = vadd.f32 %v385, %v3741
        %v3850 = vadd.f32 %v386, %v3743
        %v3851 = vadd.f32 %v387, %v3746
        %v3852 = vadd.f32 %v388, %v3748
        %v3853 = vadd.f32 %v389, %v3751
        %v3854 = vadd.f32 %v390, %v3753
        %v3855 = vadd.f32 %v391, %v3756
        %v3856 = vadd.f32 %v392, %v3758
        %v3857 = vadd.f32 %v393, %v3761
        %v3858 = vadd.f32 %v394, %v3763
        %v3859 = vadd.f32 %v395, %v3766
        %v3860 = vadd.f32 %v396, %v3768
        %v3861 = vadd.f32 %v397, %v3771
        %v3862 = vadd.f32 %v398, %v3773
        %v3863 = vadd.f32 %v399, %v3776
        %v3864 = vadd.f32 %v400, %v3778
        %v3865 = vadd.f32 %v401, %v3781
        %v3866 = vadd.f32 %v402, %v3783
        %v3867 = vadd.f32 %v403, %v3786
        %v3868 = vadd.f32 %v404, %v3788
        %v3869 = vadd.f32 %v405, %v3791
        %v3870 = vadd.f32 %v406, %v3793
        %v3871 = vadd.f32 %v407, %v3796
        %v3872 = vadd.f32 %v408, %v3798
        %v3873 = vadd.f32 %v409, %v3801
        %v3874 = vadd.f32 %v410, %v3803
        %v3875 = vadd.f32 %v411, %v3806
        %v3876 = vadd.f32 %v412, %v3808
        %v3877 = vadd.f32 %v413, %v3811
        %v3878 = vadd.f32 %v414, %v3813
        %vm3879 = vcmask 523264
        %3880 = vst.msk [vmem:[#allocation2] sm:$0xff] %vm3879, %v3815
        %3881 = vst.msk [vmem:[#allocation2 + $0x8] sm:$0xff] %vm3879, %v3816
        %3882 = vst.msk [vmem:[#allocation2 + $0x10] sm:$0xff] %vm3879, %v3817
        %3883 = vst.msk [vmem:[#allocation2 + $0x18] sm:$0xff] %vm3879, %v3818
        %3884 = vst.msk [vmem:[#allocation2 + $0x20] sm:$0xff] %vm3879, %v3819
        %3885 = vst.msk [vmem:[#allocation2 + $0x28] sm:$0xff] %vm3879, %v3820
        %3886 = vst.msk [vmem:[#allocation2 + $0x30] sm:$0xff] %vm3879, %v3821
        %3887 = vst.msk [vmem:[#allocation2 + $0x38] sm:$0xff] %vm3879, %v3822
        %3888 = vst.msk [vmem:[#allocation2 + $0x40] sm:$0xff] %vm3879, %v3823
        %3889 = vst.msk [vmem:[#allocation2 + $0x48] sm:$0xff] %vm3879, %v3824
        %3890 = vst.msk [vmem:[#allocation2 + $0x50] sm:$0xff] %vm3879, %v3825
        %3891 = vst.msk [vmem:[#allocation2 + $0x58] sm:$0xff] %vm3879, %v3826
        %3892 = vst.msk [vmem:[#allocation2 + $0x60] sm:$0xff] %vm3879, %v3827
        %3893 = vst.msk [vmem:[#allocation2 + $0x68] sm:$0xff] %vm3879, %v3828
        %3894 = vst.msk [vmem:[#allocation2 + $0x70] sm:$0xff] %vm3879, %v3829
        %3895 = vst.msk [vmem:[#allocation2 + $0x78] sm:$0xff] %vm3879, %v3830
        %3896 = vst.msk [vmem:[#allocation2 + $0x80] sm:$0xff] %vm3879, %v3831
        %3897 = vst.msk [vmem:[#allocation2 + $0x88] sm:$0xff] %vm3879, %v3832
        %3898 = vst.msk [vmem:[#allocation2 + $0x90] sm:$0xff] %vm3879, %v3833
        %3899 = vst.msk [vmem:[#allocation2 + $0x98] sm:$0xff] %vm3879, %v3834
        %3900 = vst.msk [vmem:[#allocation2 + $0xa0] sm:$0xff] %vm3879, %v3835
        %3901 = vst.msk [vmem:[#allocation2 + $0xa8] sm:$0xff] %vm3879, %v3836
        %3902 = vst.msk [vmem:[#allocation2 + $0xb0] sm:$0xff] %vm3879, %v3837
        %3903 = vst.msk [vmem:[#allocation2 + $0xb8] sm:$0xff] %vm3879, %v3838
        %3904 = vst.msk [vmem:[#allocation2 + $0xc0] sm:$0xff] %vm3879, %v3839
        %3905 = vst.msk [vmem:[#allocation2 + $0xc8] sm:$0xff] %vm3879, %v3840
        %3906 = vst.msk [vmem:[#allocation2 + $0xd0] sm:$0xff] %vm3879, %v3841
        %3907 = vst.msk [vmem:[#allocation2 + $0xd8] sm:$0xff] %vm3879, %v3842
        %3908 = vst.msk [vmem:[#allocation2 + $0xe0] sm:$0xff] %vm3879, %v3843
        %3909 = vst.msk [vmem:[#allocation2 + $0xe8] sm:$0xff] %vm3879, %v3844
        %3910 = vst.msk [vmem:[#allocation2 + $0xf0] sm:$0xff] %vm3879, %v3845
        %3911 = vst.msk [vmem:[#allocation2 + $0xf8] sm:$0xff] %vm3879, %v3846
        %3912 = vst.msk [vmem:[#allocation2 + $0x100] sm:$0xff] %vm3879, %v3847
        %3913 = vst.msk [vmem:[#allocation2 + $0x108] sm:$0xff] %vm3879, %v3848
        %3914 = vst.msk [vmem:[#allocation2 + $0x110] sm:$0xff] %vm3879, %v3849
        %3915 = vst.msk [vmem:[#allocation2 + $0x118] sm:$0xff] %vm3879, %v3850
        %3916 = vst.msk [vmem:[#allocation2 + $0x120] sm:$0xff] %vm3879, %v3851
        %3917 = vst.msk [vmem:[#allocation2 + $0x128] sm:$0xff] %vm3879, %v3852
        %3918 = vst.msk [vmem:[#allocation2 + $0x130] sm:$0xff] %vm3879, %v3853
        %3919 = vst.msk [vmem:[#allocation2 + $0x138] sm:$0xff] %vm3879, %v3854
        %3920 = vst.msk [vmem:[#allocation2 + $0x140] sm:$0xff] %vm3879, %v3855
        %3921 = vst.msk [vmem:[#allocation2 + $0x148] sm:$0xff] %vm3879, %v3856
        %3922 = vst.msk [vmem:[#allocation2 + $0x150] sm:$0xff] %vm3879, %v3857
        %3923 = vst.msk [vmem:[#allocation2 + $0x158] sm:$0xff] %vm3879, %v3858
        %3924 = vst.msk [vmem:[#allocation2 + $0x160] sm:$0xff] %vm3879, %v3859
        %3925 = vst.msk [vmem:[#allocation2 + $0x168] sm:$0xff] %vm3879, %v3860
        %3926 = vst.msk [vmem:[#allocation2 + $0x170] sm:$0xff] %vm3879, %v3861
        %3927 = vst.msk [vmem:[#allocation2 + $0x178] sm:$0xff] %vm3879, %v3862
        %3928 = vst.msk [vmem:[#allocation2 + $0x180] sm:$0xff] %vm3879, %v3863
        %3929 = vst.msk [vmem:[#allocation2 + $0x188] sm:$0xff] %vm3879, %v3864
        %3930 = vst.msk [vmem:[#allocation2 + $0x190] sm:$0xff] %vm3879, %v3865
        %3931 = vst.msk [vmem:[#allocation2 + $0x198] sm:$0xff] %vm3879, %v3866
        %3932 = vst.msk [vmem:[#allocation2 + $0x1a0] sm:$0xff] %vm3879, %v3867
        %3933 = vst.msk [vmem:[#allocation2 + $0x1a8] sm:$0xff] %vm3879, %v3868
        %3934 = vst.msk [vmem:[#allocation2 + $0x1b0] sm:$0xff] %vm3879, %v3869
        %3935 = vst.msk [vmem:[#allocation2 + $0x1b8] sm:$0xff] %vm3879, %v3870
        %3936 = vst.msk [vmem:[#allocation2 + $0x1c0] sm:$0xff] %vm3879, %v3871
        %3937 = vst.msk [vmem:[#allocation2 + $0x1c8] sm:$0xff] %vm3879, %v3872
        %3938 = vst.msk [vmem:[#allocation2 + $0x1d0] sm:$0xff] %vm3879, %v3873
        %3939 = vst.msk [vmem:[#allocation2 + $0x1d8] sm:$0xff] %vm3879, %v3874
        %3940 = vst.msk [vmem:[#allocation2 + $0x1e0] sm:$0xff] %vm3879, %v3875
        %3941 = vst.msk [vmem:[#allocation2 + $0x1e8] sm:$0xff] %vm3879, %v3876
        %3942 = vst.msk [vmem:[#allocation2 + $0x1f0] sm:$0xff] %vm3879, %v3877
        %3943 = vst.msk [vmem:[#allocation2 + $0x1f8] sm:$0xff] %vm3879, %v3878
        // Predicated region
        $region45: #{tpu_custom_call.1} parent=31 // pred_check
          %p3944 = pneg %p282
        $region46: #{tpu_custom_call.1} parent=31 // pred_check_branch
          %3946 = sbr.rel (%p3944) target = $region48
        $region47: #{tpu_custom_call.1} parent=31 // pred_region
          %v3947 = vld [vmem:[#allocation2] sm:$0xff]
          %v3948 = vld [vmem:[#allocation2 + $0x8] sm:$0xff]
          %v3949 = vld [vmem:[#allocation2 + $0x10] sm:$0xff]
          %v3950 = vld [vmem:[#allocation2 + $0x18] sm:$0xff]
          %v3951 = vld [vmem:[#allocation2 + $0x20] sm:$0xff]
          %v3952 = vld [vmem:[#allocation2 + $0x28] sm:$0xff]
          %v3953 = vld [vmem:[#allocation2 + $0x30] sm:$0xff]
          %v3954 = vld [vmem:[#allocation2 + $0x38] sm:$0xff]
          %v3955 = vld [vmem:[#allocation2 + $0x40] sm:$0xff]
          %v3956 = vld [vmem:[#allocation2 + $0x48] sm:$0xff]
          %v3957 = vld [vmem:[#allocation2 + $0x50] sm:$0xff]
          %v3958 = vld [vmem:[#allocation2 + $0x58] sm:$0xff]
          %v3959 = vld [vmem:[#allocation2 + $0x60] sm:$0xff]
          %v3960 = vld [vmem:[#allocation2 + $0x68] sm:$0xff]
          %v3961 = vld [vmem:[#allocation2 + $0x70] sm:$0xff]
          %v3962 = vld [vmem:[#allocation2 + $0x78] sm:$0xff]
          %v3963 = vld [vmem:[#allocation2 + $0x80] sm:$0xff]
          %v3964 = vld [vmem:[#allocation2 + $0x88] sm:$0xff]
          %v3965 = vld [vmem:[#allocation2 + $0x90] sm:$0xff]
          %v3966 = vld [vmem:[#allocation2 + $0x98] sm:$0xff]
          %v3967 = vld [vmem:[#allocation2 + $0xa0] sm:$0xff]
          %v3968 = vld [vmem:[#allocation2 + $0xa8] sm:$0xff]
          %v3969 = vld [vmem:[#allocation2 + $0xb0] sm:$0xff]
          %v3970 = vld [vmem:[#allocation2 + $0xb8] sm:$0xff]
          %v3971 = vld [vmem:[#allocation2 + $0xc0] sm:$0xff]
          %v3972 = vld [vmem:[#allocation2 + $0xc8] sm:$0xff]
          %v3973 = vld [vmem:[#allocation2 + $0xd0] sm:$0xff]
          %v3974 = vld [vmem:[#allocation2 + $0xd8] sm:$0xff]
          %v3975 = vld [vmem:[#allocation2 + $0xe0] sm:$0xff]
          %v3976 = vld [vmem:[#allocation2 + $0xe8] sm:$0xff]
          %v3977 = vld [vmem:[#allocation2 + $0xf0] sm:$0xff]
          %v3978 = vld [vmem:[#allocation2 + $0xf8] sm:$0xff]
          %v3979 = vld [vmem:[#allocation2 + $0x100] sm:$0xff]
          %v3980 = vld [vmem:[#allocation2 + $0x108] sm:$0xff]
          %v3981 = vld [vmem:[#allocation2 + $0x110] sm:$0xff]
          %v3982 = vld [vmem:[#allocation2 + $0x118] sm:$0xff]
          %v3983 = vld [vmem:[#allocation2 + $0x120] sm:$0xff]
          %v3984 = vld [vmem:[#allocation2 + $0x128] sm:$0xff]
          %v3985 = vld [vmem:[#allocation2 + $0x130] sm:$0xff]
          %v3986 = vld [vmem:[#allocation2 + $0x138] sm:$0xff]
          %v3987 = vld [vmem:[#allocation2 + $0x140] sm:$0xff]
          %v3988 = vld [vmem:[#allocation2 + $0x148] sm:$0xff]
          %v3989 = vld [vmem:[#allocation2 + $0x150] sm:$0xff]
          %v3990 = vld [vmem:[#allocation2 + $0x158] sm:$0xff]
          %v3991 = vld [vmem:[#allocation2 + $0x160] sm:$0xff]
          %v3992 = vld [vmem:[#allocation2 + $0x168] sm:$0xff]
          %v3993 = vld [vmem:[#allocation2 + $0x170] sm:$0xff]
          %v3994 = vld [vmem:[#allocation2 + $0x178] sm:$0xff]
          %v3995 = vld [vmem:[#allocation2 + $0x180] sm:$0xff]
          %v3996 = vld [vmem:[#allocation2 + $0x188] sm:$0xff]
          %v3997 = vld [vmem:[#allocation2 + $0x190] sm:$0xff]
          %v3998 = vld [vmem:[#allocation2 + $0x198] sm:$0xff]
          %v3999 = vld [vmem:[#allocation2 + $0x1a0] sm:$0xff]
          %v4000 = vld [vmem:[#allocation2 + $0x1a8] sm:$0xff]
          %v4001 = vld [vmem:[#allocation2 + $0x1b0] sm:$0xff]
          %v4002 = vld [vmem:[#allocation2 + $0x1b8] sm:$0xff]
          %v4003 = vld [vmem:[#allocation2 + $0x1c0] sm:$0xff]
          %v4004 = vld [vmem:[#allocation2 + $0x1c8] sm:$0xff]
          %v4005 = vld [vmem:[#allocation2 + $0x1d0] sm:$0xff]
          %v4006 = vld [vmem:[#allocation2 + $0x1d8] sm:$0xff]
          %v4007 = vld [vmem:[#allocation2 + $0x1e0] sm:$0xff]
          %v4008 = vld [vmem:[#allocation2 + $0x1e8] sm:$0xff]
          %v4009 = vld [vmem:[#allocation2 + $0x1f0] sm:$0xff]
          %v4010 = vld [vmem:[#allocation2 + $0x1f8] sm:$0xff]
          %v4011 = vld [vmem:[#allocation5] sm:$0x1]
          %v4013 = vperm.slane %v4011, 0
          %v4015 = vadd.f32 %v3947, %v4013
          %v4016 = vadd.f32 %v3948, %v4013
          %v4017 = vadd.f32 %v3949, %v4013
          %v4018 = vadd.f32 %v3950, %v4013
          %v4019 = vadd.f32 %v3951, %v4013
          %v4020 = vadd.f32 %v3952, %v4013
          %v4021 = vadd.f32 %v3953, %v4013
          %v4022 = vadd.f32 %v3954, %v4013
          %v4023 = vadd.f32 %v3955, %v4013
          %v4024 = vadd.f32 %v3956, %v4013
          %v4025 = vadd.f32 %v3957, %v4013
          %v4026 = vadd.f32 %v3958, %v4013
          %v4027 = vadd.f32 %v3959, %v4013
          %v4028 = vadd.f32 %v3960, %v4013
          %v4029 = vadd.f32 %v3961, %v4013
          %v4030 = vadd.f32 %v3962, %v4013
          %v4031 = vadd.f32 %v3963, %v4013
          %v4032 = vadd.f32 %v3964, %v4013
          %v4033 = vadd.f32 %v3965, %v4013
          %v4034 = vadd.f32 %v3966, %v4013
          %v4035 = vadd.f32 %v3967, %v4013
          %v4036 = vadd.f32 %v3968, %v4013
          %v4037 = vadd.f32 %v3969, %v4013
          %v4038 = vadd.f32 %v3970, %v4013
          %v4039 = vadd.f32 %v3971, %v4013
          %v4040 = vadd.f32 %v3972, %v4013
          %v4041 = vadd.f32 %v3973, %v4013
          %v4042 = vadd.f32 %v3974, %v4013
          %v4043 = vadd.f32 %v3975, %v4013
          %v4044 = vadd.f32 %v3976, %v4013
          %v4045 = vadd.f32 %v3977, %v4013
          %v4046 = vadd.f32 %v3978, %v4013
          %v4047 = vadd.f32 %v3979, %v4013
          %v4048 = vadd.f32 %v3980, %v4013
          %v4049 = vadd.f32 %v3981, %v4013
          %v4050 = vadd.f32 %v3982, %v4013
          %v4051 = vadd.f32 %v3983, %v4013
          %v4052 = vadd.f32 %v3984, %v4013
          %v4053 = vadd.f32 %v3985, %v4013
          %v4054 = vadd.f32 %v3986, %v4013
          %v4055 = vadd.f32 %v3987, %v4013
          %v4056 = vadd.f32 %v3988, %v4013
          %v4057 = vadd.f32 %v3989, %v4013
          %v4058 = vadd.f32 %v3990, %v4013
          %v4059 = vadd.f32 %v3991, %v4013
          %v4060 = vadd.f32 %v3992, %v4013
          %v4061 = vadd.f32 %v3993, %v4013
          %v4062 = vadd.f32 %v3994, %v4013
          %v4063 = vadd.f32 %v3995, %v4013
          %v4064 = vadd.f32 %v3996, %v4013
          %v4065 = vadd.f32 %v3997, %v4013
          %v4066 = vadd.f32 %v3998, %v4013
          %v4067 = vadd.f32 %v3999, %v4013
          %v4068 = vadd.f32 %v4000, %v4013
          %v4069 = vadd.f32 %v4001, %v4013
          %v4070 = vadd.f32 %v4002, %v4013
          %v4071 = vadd.f32 %v4003, %v4013
          %v4072 = vadd.f32 %v4004, %v4013
          %v4073 = vadd.f32 %v4005, %v4013
          %v4074 = vadd.f32 %v4006, %v4013
          %v4075 = vadd.f32 %v4007, %v4013
          %v4076 = vadd.f32 %v4008, %v4013
          %v4077 = vadd.f32 %v4009, %v4013
          %v4078 = vadd.f32 %v4010, %v4013
          %v4079 = vmax.f32 %v4015, 0.0
          %v4080 = vmax.f32 %v4016, 0.0
          %v4081 = vmax.f32 %v4017, 0.0
          %v4082 = vmax.f32 %v4018, 0.0
          %v4083 = vmax.f32 %v4019, 0.0
          %v4084 = vmax.f32 %v4020, 0.0
          %v4085 = vmax.f32 %v4021, 0.0
          %v4086 = vmax.f32 %v4022, 0.0
          %v4087 = vmax.f32 %v4023, 0.0
          %v4088 = vmax.f32 %v4024, 0.0
          %v4089 = vmax.f32 %v4025, 0.0
          %v4090 = vmax.f32 %v4026, 0.0
          %v4091 = vmax.f32 %v4027, 0.0
          %v4092 = vmax.f32 %v4028, 0.0
          %v4093 = vmax.f32 %v4029, 0.0
          %v4094 = vmax.f32 %v4030, 0.0
          %v4095 = vmax.f32 %v4031, 0.0
          %v4096 = vmax.f32 %v4032, 0.0
          %v4097 = vmax.f32 %v4033, 0.0
          %v4098 = vmax.f32 %v4034, 0.0
          %v4099 = vmax.f32 %v4035, 0.0
          %v4100 = vmax.f32 %v4036, 0.0
          %v4101 = vmax.f32 %v4037, 0.0
          %v4102 = vmax.f32 %v4038, 0.0
          %v4103 = vmax.f32 %v4039, 0.0
          %v4104 = vmax.f32 %v4040, 0.0
          %v4105 = vmax.f32 %v4041, 0.0
          %v4106 = vmax.f32 %v4042, 0.0
          %v4107 = vmax.f32 %v4043, 0.0
          %v4108 = vmax.f32 %v4044, 0.0
          %v4109 = vmax.f32 %v4045, 0.0
          %v4110 = vmax.f32 %v4046, 0.0
          %v4111 = vmax.f32 %v4047, 0.0
          %v4112 = vmax.f32 %v4048, 0.0
          %v4113 = vmax.f32 %v4049, 0.0
          %v4114 = vmax.f32 %v4050, 0.0
          %v4115 = vmax.f32 %v4051, 0.0
          %v4116 = vmax.f32 %v4052, 0.0
          %v4117 = vmax.f32 %v4053, 0.0
          %v4118 = vmax.f32 %v4054, 0.0
          %v4119 = vmax.f32 %v4055, 0.0
          %v4120 = vmax.f32 %v4056, 0.0
          %v4121 = vmax.f32 %v4057, 0.0
          %v4122 = vmax.f32 %v4058, 0.0
          %v4123 = vmax.f32 %v4059, 0.0
          %v4124 = vmax.f32 %v4060, 0.0
          %v4125 = vmax.f32 %v4061, 0.0
          %v4126 = vmax.f32 %v4062, 0.0
          %v4127 = vmax.f32 %v4063, 0.0
          %v4128 = vmax.f32 %v4064, 0.0
          %v4129 = vmax.f32 %v4065, 0.0
          %v4130 = vmax.f32 %v4066, 0.0
          %v4131 = vmax.f32 %v4067, 0.0
          %v4132 = vmax.f32 %v4068, 0.0
          %v4133 = vmax.f32 %v4069, 0.0
          %v4134 = vmax.f32 %v4070, 0.0
          %v4135 = vmax.f32 %v4071, 0.0
          %v4136 = vmax.f32 %v4072, 0.0
          %v4137 = vmax.f32 %v4073, 0.0
          %v4138 = vmax.f32 %v4074, 0.0
          %v4139 = vmax.f32 %v4075, 0.0
          %v4140 = vmax.f32 %v4076, 0.0
          %v4141 = vmax.f32 %v4077, 0.0
          %v4142 = vmax.f32 %v4078, 0.0
          %v4143 = vpack.c.bf16 %v4079, %v4079
          %v4144 = vpack.c.bf16 %v4080, %v4080
          %v4145 = vpack.c.bf16 %v4081, %v4081
          %v4146 = vpack.c.bf16 %v4082, %v4082
          %v4147 = vpack.c.bf16 %v4083, %v4083
          %v4148 = vpack.c.bf16 %v4084, %v4084
          %v4149 = vpack.c.bf16 %v4085, %v4085
          %v4150 = vpack.c.bf16 %v4086, %v4086
          %v4151 = vpack.c.bf16 %v4087, %v4087
          %v4152 = vpack.c.bf16 %v4088, %v4088
          %v4153 = vpack.c.bf16 %v4089, %v4089
          %v4154 = vpack.c.bf16 %v4090, %v4090
          %v4155 = vpack.c.bf16 %v4091, %v4091
          %v4156 = vpack.c.bf16 %v4092, %v4092
          %v4157 = vpack.c.bf16 %v4093, %v4093
          %v4158 = vpack.c.bf16 %v4094, %v4094
          %v4159 = vpack.c.bf16 %v4095, %v4095
          %v4160 = vpack.c.bf16 %v4096, %v4096
          %v4161 = vpack.c.bf16 %v4097, %v4097
          %v4162 = vpack.c.bf16 %v4098, %v4098
          %v4163 = vpack.c.bf16 %v4099, %v4099
          %v4164 = vpack.c.bf16 %v4100, %v4100
          %v4165 = vpack.c.bf16 %v4101, %v4101
          %v4166 = vpack.c.bf16 %v4102, %v4102
          %v4167 = vpack.c.bf16 %v4103, %v4103
          %v4168 = vpack.c.bf16 %v4104, %v4104
          %v4169 = vpack.c.bf16 %v4105, %v4105
          %v4170 = vpack.c.bf16 %v4106, %v4106
          %v4171 = vpack.c.bf16 %v4107, %v4107
          %v4172 = vpack.c.bf16 %v4108, %v4108
          %v4173 = vpack.c.bf16 %v4109, %v4109
          %v4174 = vpack.c.bf16 %v4110, %v4110
          %v4175 = vpack.c.bf16 %v4111, %v4111
          %v4176 = vpack.c.bf16 %v4112, %v4112
          %v4177 = vpack.c.bf16 %v4113, %v4113
          %v4178 = vpack.c.bf16 %v4114, %v4114
          %v4179 = vpack.c.bf16 %v4115, %v4115
          %v4180 = vpack.c.bf16 %v4116, %v4116
          %v4181 = vpack.c.bf16 %v4117, %v4117
          %v4182 = vpack.c.bf16 %v4118, %v4118
          %v4183 = vpack.c.bf16 %v4119, %v4119
          %v4184 = vpack.c.bf16 %v4120, %v4120
          %v4185 = vpack.c.bf16 %v4121, %v4121
          %v4186 = vpack.c.bf16 %v4122, %v4122
          %v4187 = vpack.c.bf16 %v4123, %v4123
          %v4188 = vpack.c.bf16 %v4124, %v4124
          %v4189 = vpack.c.bf16 %v4125, %v4125
          %v4190 = vpack.c.bf16 %v4126, %v4126
          %v4191 = vpack.c.bf16 %v4127, %v4127
          %v4192 = vpack.c.bf16 %v4128, %v4128
          %v4193 = vpack.c.bf16 %v4129, %v4129
          %v4194 = vpack.c.bf16 %v4130, %v4130
          %v4195 = vpack.c.bf16 %v4131, %v4131
          %v4196 = vpack.c.bf16 %v4132, %v4132
          %v4197 = vpack.c.bf16 %v4133, %v4133
          %v4198 = vpack.c.bf16 %v4134, %v4134
          %v4199 = vpack.c.bf16 %v4135, %v4135
          %v4200 = vpack.c.bf16 %v4136, %v4136
          %v4201 = vpack.c.bf16 %v4137, %v4137
          %v4202 = vpack.c.bf16 %v4138, %v4138
          %v4203 = vpack.c.bf16 %v4139, %v4139
          %v4204 = vpack.c.bf16 %v4140, %v4140
          %v4205 = vpack.c.bf16 %v4141, %v4141
          %v4206 = vpack.c.bf16 %v4142, %v4142
          %vm4207 = vcmask 519168
          %4208 = vst.msk [vmem:[%s280] sm:$0xf] %vm4207, %v4143
          %4209 = vst.msk [vmem:[%s280 + $0x4] sm:$0xf] %vm4207, %v4144
          %4210 = vst.msk [vmem:[%s280 + $0x8] sm:$0xf] %vm4207, %v4145
          %4211 = vst.msk [vmem:[%s280 + $0xc] sm:$0xf] %vm4207, %v4146
          %4212 = vst.msk [vmem:[%s280 + $0x10] sm:$0xf] %vm4207, %v4147
          %4213 = vst.msk [vmem:[%s280 + $0x14] sm:$0xf] %vm4207, %v4148
          %4214 = vst.msk [vmem:[%s280 + $0x18] sm:$0xf] %vm4207, %v4149
          %4215 = vst.msk [vmem:[%s280 + $0x1c] sm:$0xf] %vm4207, %v4150
          %4216 = vst.msk [vmem:[%s280 + $0x20] sm:$0xf] %vm4207, %v4151
          %4217 = vst.msk [vmem:[%s280 + $0x24] sm:$0xf] %vm4207, %v4152
          %4218 = vst.msk [vmem:[%s280 + $0x28] sm:$0xf] %vm4207, %v4153
          %4219 = vst.msk [vmem:[%s280 + $0x2c] sm:$0xf] %vm4207, %v4154
          %4220 = vst.msk [vmem:[%s280 + $0x30] sm:$0xf] %vm4207, %v4155
          %4221 = vst.msk [vmem:[%s280 + $0x34] sm:$0xf] %vm4207, %v4156
          %4222 = vst.msk [vmem:[%s280 + $0x38] sm:$0xf] %vm4207, %v4157
          %4223 = vst.msk [vmem:[%s280 + $0x3c] sm:$0xf] %vm4207, %v4158
          %4224 = vst.msk [vmem:[%s280 + $0x40] sm:$0xf] %vm4207, %v4159
          %4225 = vst.msk [vmem:[%s280 + $0x44] sm:$0xf] %vm4207, %v4160
          %4226 = vst.msk [vmem:[%s280 + $0x48] sm:$0xf] %vm4207, %v4161
          %4227 = vst.msk [vmem:[%s280 + $0x4c] sm:$0xf] %vm4207, %v4162
          %4228 = vst.msk [vmem:[%s280 + $0x50] sm:$0xf] %vm4207, %v4163
          %4229 = vst.msk [vmem:[%s280 + $0x54] sm:$0xf] %vm4207, %v4164
          %4230 = vst.msk [vmem:[%s280 + $0x58] sm:$0xf] %vm4207, %v4165
          %4231 = vst.msk [vmem:[%s280 + $0x5c] sm:$0xf] %vm4207, %v4166
          %4232 = vst.msk [vmem:[%s280 + $0x60] sm:$0xf] %vm4207, %v4167
          %4233 = vst.msk [vmem:[%s280 + $0x64] sm:$0xf] %vm4207, %v4168
          %4234 = vst.msk [vmem:[%s280 + $0x68] sm:$0xf] %vm4207, %v4169
          %4235 = vst.msk [vmem:[%s280 + $0x6c] sm:$0xf] %vm4207, %v4170
          %4236 = vst.msk [vmem:[%s280 + $0x70] sm:$0xf] %vm4207, %v4171
          %4237 = vst.msk [vmem:[%s280 + $0x74] sm:$0xf] %vm4207, %v4172
          %4238 = vst.msk [vmem:[%s280 + $0x78] sm:$0xf] %vm4207, %v4173
          %4239 = vst.msk [vmem:[%s280 + $0x7c] sm:$0xf] %vm4207, %v4174
          %4240 = vst.msk [vmem:[%s280 + $0x80] sm:$0xf] %vm4207, %v4175
          %4241 = vst.msk [vmem:[%s280 + $0x84] sm:$0xf] %vm4207, %v4176
          %4242 = vst.msk [vmem:[%s280 + $0x88] sm:$0xf] %vm4207, %v4177
          %4243 = vst.msk [vmem:[%s280 + $0x8c] sm:$0xf] %vm4207, %v4178
          %4244 = vst.msk [vmem:[%s280 + $0x90] sm:$0xf] %vm4207, %v4179
          %4245 = vst.msk [vmem:[%s280 + $0x94] sm:$0xf] %vm4207, %v4180
          %4246 = vst.msk [vmem:[%s280 + $0x98] sm:$0xf] %vm4207, %v4181
          %4247 = vst.msk [vmem:[%s280 + $0x9c] sm:$0xf] %vm4207, %v4182
          %4248 = vst.msk [vmem:[%s280 + $0xa0] sm:$0xf] %vm4207, %v4183
          %4249 = vst.msk [vmem:[%s280 + $0xa4] sm:$0xf] %vm4207, %v4184
          %4250 = vst.msk [vmem:[%s280 + $0xa8] sm:$0xf] %vm4207, %v4185
          %4251 = vst.msk [vmem:[%s280 + $0xac] sm:$0xf] %vm4207, %v4186
          %4252 = vst.msk [vmem:[%s280 + $0xb0] sm:$0xf] %vm4207, %v4187
          %4253 = vst.msk [vmem:[%s280 + $0xb4] sm:$0xf] %vm4207, %v4188
          %4254 = vst.msk [vmem:[%s280 + $0xb8] sm:$0xf] %vm4207, %v4189
          %4255 = vst.msk [vmem:[%s280 + $0xbc] sm:$0xf] %vm4207, %v4190
          %4256 = vst.msk [vmem:[%s280 + $0xc0] sm:$0xf] %vm4207, %v4191
          %4257 = vst.msk [vmem:[%s280 + $0xc4] sm:$0xf] %vm4207, %v4192
          %4258 = vst.msk [vmem:[%s280 + $0xc8] sm:$0xf] %vm4207, %v4193
          %4259 = vst.msk [vmem:[%s280 + $0xcc] sm:$0xf] %vm4207, %v4194
          %4260 = vst.msk [vmem:[%s280 + $0xd0] sm:$0xf] %vm4207, %v4195
          %4261 = vst.msk [vmem:[%s280 + $0xd4] sm:$0xf] %vm4207, %v4196
          %4262 = vst.msk [vmem:[%s280 + $0xd8] sm:$0xf] %vm4207, %v4197
          %4263 = vst.msk [vmem:[%s280 + $0xdc] sm:$0xf] %vm4207, %v4198
          %4264 = vst.msk [vmem:[%s280 + $0xe0] sm:$0xf] %vm4207, %v4199
          %4265 = vst.msk [vmem:[%s280 + $0xe4] sm:$0xf] %vm4207, %v4200
          %4266 = vst.msk [vmem:[%s280 + $0xe8] sm:$0xf] %vm4207, %v4201
          %4267 = vst.msk [vmem:[%s280 + $0xec] sm:$0xf] %vm4207, %v4202
          %4268 = vst.msk [vmem:[%s280 + $0xf0] sm:$0xf] %vm4207, %v4203
          %4269 = vst.msk [vmem:[%s280 + $0xf4] sm:$0xf] %vm4207, %v4204
          %4270 = vst.msk [vmem:[%s280 + $0xf8] sm:$0xf] %vm4207, %v4205
          %4271 = vst.msk [vmem:[%s280 + $0xfc] sm:$0xf] %vm4207, %v4206
        $region48: #{tpu_custom_call.1} parent=31 // pred_fallthru
          _
        %s4272 = smul.u32 64, %s23
        %p4273 = scmp.lt.s32.totalorder %s4272, 255
        %s4274 = scalar_select %p4273, %s4272, 255
        %p4275 = scmp.lt.s32.totalorder %s24, 0
        %s4276 = scalar_select %p4275, %s24, 0
        %s4277 = sadd.s32 %s4276, %s4274
        %s4278 = smul.addr %s4277, 4
        %s4279 = scalar_lea.vmem %s3, %s4278
        // Predicated region
        $region49: #{tpu_custom_call.1} parent=31 // pred_check
          %p4280 = pneg %p139
        $region50: #{tpu_custom_call.1} parent=31 // pred_check_branch
          %4282 = sbr.rel (%p4280) target = $region52
        $region51: #{tpu_custom_call.1} parent=31 // pred_region
          %s4283 = smul.u32 64, %s23
        $region52: #{tpu_custom_call.1} parent=31 // pred_fallthru
          _
      $region32: #{tpu_custom_call.1} parent=5 // pred_fallthru
        _
      %p4284 = scmp.le.s32.totalorder 2, %s13
      // Predicated region
      $region53: #{tpu_custom_call.1} parent=5 // pred_check
        %p4285 = pneg %p4284
      $region54: #{tpu_custom_call.1} parent=5 // pred_check_branch
        %4287 = sbr.rel (%p4285) target = $region56
      $region55: #{tpu_custom_call.1} parent=5 // pred_region
        %s4288 = ssub.s32 %s13, 2
        // Predicated region
        $region57: #{tpu_custom_call.1} parent=55 // pred_check
          %p4289 = pneg %p145
        $region58: #{tpu_custom_call.1} parent=55 // pred_check_branch
          %4291 = sbr.rel (%p4289) target = $region60
        $region59: #{tpu_custom_call.1} parent=55 // pred_region
          %s4292 = smul.u32 64, %s26
          %p4293 = scmp.lt.s32.totalorder %s4292, 255
          %s4294 = scalar_select %p4293, %s4292, 255
          %p4295 = scmp.lt.s32.totalorder %s27, 0
          %s4296 = scalar_select %p4295, %s27, 0
          %s4297 = sadd.s32 %s4296, %s4294
          %s4298 = smul.addr %s4297, 4
          %s4299 = scalar_lea.vmem %s3, %s4298
        $region60: #{tpu_custom_call.1} parent=55 // pred_fallthru
          _
      $region56: #{tpu_custom_call.1} parent=5 // pred_fallthru
        _
    $region6: #{tpu_custom_call.1} parent=1 // loop_footer
      %s17 = sadd.s32 1, %s13
    $region7: #{tpu_custom_call.1} parent=1 // loop_footer_branch
      %12 = sbr.rel target = $region3
    $region8: #{tpu_custom_call.1} parent=1 // loop_exit
      _
    %4300 = vsyncpa [#allocation4], 1
    %s4301 = scalar_lea.sflag [#allocation4], 1
    %4302 = vsyncpa %s4301, 1
    %4303 = vsyncpa [#allocation6], 1

</llo_original>
